<compile_context>
chip_gen: v5e
topology: v5e:2x2
jax: 0.10.0
libtpu: 0.0.40
codegen_flags: <defaults>
</compile_context>

<pallas_src>
import functools

import jax
import jax.numpy as jnp
from jax.experimental import pallas as pl
from jax.experimental.pallas import tpu as pltpu


def targetnet_head_kernel(feat_ref, w1_ref, b1_ref, w2_ref, b2_ref,
                          out_ref, acc_ref, *, inv_spatial, spatial_size,
                          tile_s):
    k = pl.program_id(1)                     # spatial-tile index (reduction)

    @pl.when(k == 0)
    def _init():
        acc_ref[...] = jnp.zeros_like(acc_ref)

    # Partial spatial sum: [1, C, tS] -> [1, C].  Lane-dim (spatial) reduce on
    # the XLU; accumulate in f32 (feat may be bf16).
    x = feat_ref[...].astype(jnp.float32)
    if spatial_size % tile_s != 0:
        # Tail tile: mask out-of-range lanes (only emitted when S % tS != 0).
        valid = jnp.minimum(tile_s, spatial_size - k * tile_s)
        lane = jax.lax.broadcasted_iota(jnp.int32, x.shape, dimension=2)
        x = jnp.where(lane < valid, x, 0.0)
    acc_ref[...] += jnp.sum(x, axis=-1)

    @pl.when(k == pl.num_programs(1) - 1)
    def _finalize():
        pooled = acc_ref[...] * jnp.float32(inv_spatial)          # [1, C]
        # dense_1 + ReLU
        h = jnp.dot(pooled, w1_ref[...],
                    preferred_element_type=jnp.float32) + b1_ref[...]
        h = jnp.maximum(h, 0.0)
        # dense_2 (lane-padded)
        o = jnp.dot(h, w2_ref[...],
                    preferred_element_type=jnp.float32) + b2_ref[...]
        out_ref[...] = o.reshape(out_ref.shape).astype(out_ref.dtype)


def _choose_spatial_tile(S, bytes_per_lane_col, target_bytes):
    """Lane-aligned spatial tile: largest multiple of 128 within target_bytes.

    Never required to divide S (the kernel masks the tail tile); falls back to
    the full spatial extent when it already fits the budget.
    """
    if S * bytes_per_lane_col <= target_bytes:
        return S                                        # single full-S block
    t = max(128, (target_bytes // bytes_per_lane_col) // 128 * 128)
    return S if t >= S else t


def targetnet_head(feat_ncdhw, w1, b1, w2, b2, *, target_block_bytes=8 << 20):
    """feat_ncdhw: [B, 512, D, H, W] (out512 of the base model), f32 or bf16.

    Weights stored as [in, out] (transpose of PyTorch nn.Linear weight).

    target_block_bytes: per-step feat tile budget.  8 MiB is a safe default on
    all generations (fits v7x's 64 MiB VMEM with 2x buffering + resident
    weights); v5e/v6e users may raise it to 16 MiB.
    """
    B, C, D, H, W = feat_ncdhw.shape
    S = D * H * W
    H1 = w1.shape[1]            # 1024
    n_class = w2.shape[1]       # e.g. 1

    # Native layout: [B, C, S] (free reshape, no transpose / extra HBM pass).
    feat = feat_ncdhw.reshape(B, C, S)

    # Pad dense_2 to a lane-dense output width (multiple of 128).
    NP = max(((n_class + 127) // 128) * 128, 128)
    w2p = jnp.zeros((H1, NP), dtype=w2.dtype).at[:, :n_class].set(w2)
    b2p = jnp.zeros((1, NP), dtype=b2.dtype).at[0, :n_class].set(b2)
    b1_2d = b1.reshape(1, H1)

    # One batch row per block so the B axis can be sharded across v7x cores.
    bB = 1
    bytes_per_lane_col = bB * C * feat.dtype.itemsize
    tS = _choose_spatial_tile(S, bytes_per_lane_col, target_block_bytes)
    num_s_tiles = pl.cdiv(S, tS)

    out_padded = pl.pallas_call(
        functools.partial(targetnet_head_kernel, inv_spatial=1.0 / S,
                          spatial_size=S, tile_s=tS),
        out_shape=jax.ShapeDtypeStruct((B, 1, NP), jnp.float32),
        grid=(B // bB, num_s_tiles),
        in_specs=[
            pl.BlockSpec((bB, C, tS), lambda b, k: (b, 0, k)),   # streamed feat
            pl.BlockSpec((C, H1), lambda b, k: (0, 0)),          # resident w1
            pl.BlockSpec((1, H1), lambda b, k: (0, 0)),          # resident b1
            pl.BlockSpec((H1, NP), lambda b, k: (0, 0)),         # resident w2
            pl.BlockSpec((1, NP), lambda b, k: (0, 0)),          # resident b2
        ],
        out_specs=pl.BlockSpec((bB, 1, NP), lambda b, k: (b, 0, 0)),
        scratch_shapes=[pltpu.VMEM((bB, C), jnp.float32)],       # pooled sum
        compiler_params=pltpu.CompilerParams(
            dimension_semantics=("parallel", "arbitrary"),
            vmem_limit_bytes=48 * 1024 * 1024,   # headroom on v7x's 64 MiB
        ),
    )(feat, w1, b1_2d, w2p, b2p)

    return out_padded[:, 0, :n_class]


def reference(feat_ncdhw, w1, b1, w2, b2):
    B, C = feat_ncdhw.shape[:2]
    pooled = jnp.mean(feat_ncdhw.reshape(B, C, -1).astype(jnp.float32), axis=-1)
    h = jnp.maximum(pooled @ w1 + b1, 0.0)
    return h @ w2 + b2


if __name__ == "__main__":
    key = jax.random.PRNGKey(0)
    k_feat, k_w1, k_b1, k_w2, k_b2 = jax.random.split(key, 5)

    # Small synthetic "out512" feature map: B=2, C=512 (fixed by dense_1),
    # spatial D,H,W = 5,6,7 -> S=210 (exercises the masked tail-tile path).
    B, C, D, H, W = 2, 512, 5, 6, 7
    H1, n_class = 1024, 1

    feat = jax.random.normal(
        k_feat, (B, C, D, H, W), dtype=jnp.float32).astype(jnp.bfloat16)

    # Deterministic parameter init (stored as [in, out], i.e. PyTorch W.T).
    w1 = jax.random.normal(k_w1, (C, H1), dtype=jnp.float32) * 0.02
    b1 = jax.random.normal(k_b1, (H1,), dtype=jnp.float32) * 0.02
    w2 = jax.random.normal(k_w2, (H1, n_class), dtype=jnp.float32) * 0.02
    b2 = jax.random.normal(k_b2, (n_class,), dtype=jnp.float32) * 0.02

    # Small block budget so the multi-tile accumulation + tail masking path is
    # exercised at this tiny shape (S=210 -> tS=128, 2 spatial steps, 82 tail).
    out = targetnet_head(feat, w1, b1, w2, b2, target_block_bytes=160 * 1024)
    out = jax.block_until_ready(out)

    ref = reference(feat, w1, b1, w2, b2)
    assert out.shape == (B, n_class)
    assert jnp.allclose(out, ref, atol=2e-3, rtol=2e-3), (out, ref)

    print("KERNEL_OK")
</pallas_src>

<mosaic_0001>
module attributes {stable_mosaic.version = 11 : i64} {
  func.func @targetnet_head_kernel(%arg0: i32, %arg1: i32, %arg2: memref<1x512x128xbf16, #tpu.memory_space<vmem>>, %arg3: memref<512x1024xf32, #tpu.memory_space<vmem>>, %arg4: memref<1x1024xf32, #tpu.memory_space<vmem>>, %arg5: memref<1024x128xf32, #tpu.memory_space<vmem>>, %arg6: memref<1x128xf32, #tpu.memory_space<vmem>>, %arg7: memref<1x1x128xf32, #tpu.memory_space<vmem>>, %arg8: memref<1x512xf32, #tpu.memory_space<vmem>>) attributes {dimension_semantics = [#tpu.dimension_semantics<parallel>, #tpu.dimension_semantics<arbitrary>], iteration_bounds = array<i64: 2, 2>, scalar_prefetch = 0 : i64, scratch_operands = 1 : i64, tpu.core_type = #tpu.core_type<tc>, window_params = [{transform_indices = @transform_0, window_bounds = array<i64: 1, 512, 128>}, {pipeline_mode = #tpu.pipeline_mode<synchronous>, transform_indices = @transform_1, window_bounds = array<i64: 512, 1024>}, {pipeline_mode = #tpu.pipeline_mode<synchronous>, transform_indices = @transform_2, window_bounds = array<i64: 1, 1024>}, {pipeline_mode = #tpu.pipeline_mode<synchronous>, transform_indices = @transform_3, window_bounds = array<i64: 1024, 128>}, {pipeline_mode = #tpu.pipeline_mode<synchronous>, transform_indices = @transform_4, window_bounds = array<i64: 1, 128>}, {transform_indices = @transform_5, window_bounds = array<i64: 1, 1, 128>}]} {
    %c0_i32 = arith.constant 0 : i32
    %0 = arith.cmpi eq, %arg1, %c0_i32 : i32
    %1 = arith.extui %0 : i1 to i32
    %c0_i32_0 = arith.constant 0 : i32
    %2 = arith.cmpi ne, %1, %c0_i32_0 : i32
    scf.if %2 {
      %cst_10 = arith.constant 0.000000e+00 : f32
      %20 = vector.broadcast %cst_10 : f32 to vector<1x512xf32>
      %c0_11 = arith.constant 0 : index
      %c0_12 = arith.constant 0 : index
      %21 = vector.load %arg8[%c0_11, %c0_12] : memref<1x512xf32, #tpu.memory_space<vmem>>, vector<1x512xf32>
      tpu.vector_store %arg8[%c0_11, %c0_12], %20 {strides = array<i32>} : memref<1x512xf32, #tpu.memory_space<vmem>>, vector<1x512xf32>,
    } else {
    }
    %c0 = arith.constant 0 : index
    %c0_1 = arith.constant 0 : index
    %c0_2 = arith.constant 0 : index
    %3 = vector.load %arg2[%c0, %c0_1, %c0_2] : memref<1x512x128xbf16, #tpu.memory_space<vmem>>, vector<1x512x128xbf16>
    %4 = arith.extf %3 : vector<1x512x128xbf16> to vector<1x512x128xf32>
    %c128_i32 = arith.constant 128 : i32
    %5 = arith.muli %arg1, %c128_i32 : i32
    %c210_i32 = arith.constant 210 : i32
    %6 = arith.subi %c210_i32, %5 : i32
    %c128_i32_3 = arith.constant 128 : i32
    %7 = arith.minsi %c128_i32_3, %6 : i32
    %8 = tpu.iota {dimensions = array<i32: 2>} : vector<1x512x128xi32>
    %9 = vector.broadcast %7 : i32 to vector<1x512x128xi32>
    %10 = arith.cmpi slt, %8, %9 : vector<1x512x128xi32>
    %cst = arith.constant 0.000000e+00 : f32
    %11 = vector.broadcast %cst : f32 to vector<1x512x128xf32>
    %12 = arith.select %10, %4, %11 : vector<1x512x128xi1>, vector<1x512x128xf32>
    %c0_4 = arith.constant 0 : index
    %c0_5 = arith.constant 0 : index
    %13 = vector.load %arg8[%c0_4, %c0_5] : memref<1x512xf32, #tpu.memory_space<vmem>>, vector<1x512xf32>
    %cst_6 = arith.constant dense<0.000000e+00> : vector<1x512xf32>
    %14 = vector.multi_reduction <add>, %12, %cst_6 [2] : vector<1x512x128xf32> to vector<1x512xf32>
    %15 = arith.addf %13, %14 : vector<1x512xf32>
    %c0_7 = arith.constant 0 : index
    %c0_8 = arith.constant 0 : index
    %16 = vector.load %arg8[%c0_7, %c0_8] : memref<1x512xf32, #tpu.memory_space<vmem>>, vector<1x512xf32>
    tpu.vector_store %arg8[%c0_7, %c0_8], %15 {strides = array<i32>} : memref<1x512xf32, #tpu.memory_space<vmem>>, vector<1x512xf32>,
    %c1_i32 = arith.constant 1 : i32
    %17 = arith.cmpi eq, %arg1, %c1_i32 : i32
    %18 = arith.extui %17 : i1 to i32
    %c0_i32_9 = arith.constant 0 : i32
    %19 = arith.cmpi ne, %18, %c0_i32_9 : i32
    scf.if %19 {
      %c0_10 = arith.constant 0 : index
      %c0_11 = arith.constant 0 : index
      %20 = vector.load %arg8[%c0_10, %c0_11] : memref<1x512xf32, #tpu.memory_space<vmem>>, vector<1x512xf32>
      %cst_12 = arith.constant 0.00476190494 : f32
      %21 = vector.broadcast %cst_12 : f32 to vector<1x512xf32>
      %22 = arith.mulf %20, %21 : vector<1x512xf32>
      %c0_13 = arith.constant 0 : index
      %c0_14 = arith.constant 0 : index
      %23 = vector.load %arg3[%c0_13, %c0_14] : memref<512x1024xf32, #tpu.memory_space<vmem>>, vector<512x1024xf32>
      %cst_15 = arith.constant dense<0.000000e+00> : vector<1x1024xf32>
      %24 = tpu.matmul %22, %23, %cst_15 {dimension_numbers = #tpu.dot_dimension_numbers<[1], [0], [0], [1], [0, 0, 1, 1], [], []>} : vector<1x512xf32>, vector<512x1024xf32>, vector<1x1024xf32> -> vector<1x1024xf32>
      %c0_16 = arith.constant 0 : index
      %c0_17 = arith.constant 0 : index
      %25 = vector.load %arg4[%c0_16, %c0_17] : memref<1x1024xf32, #tpu.memory_space<vmem>>, vector<1x1024xf32>
      %26 = arith.addf %24, %25 : vector<1x1024xf32>
      %cst_18 = arith.constant 0.000000e+00 : f32
      %27 = vector.broadcast %cst_18 : f32 to vector<1x1024xf32>
      %28 = arith.maximumf %26, %27 : vector<1x1024xf32>
      %c0_19 = arith.constant 0 : index
      %c0_20 = arith.constant 0 : index
      %29 = vector.load %arg5[%c0_19, %c0_20] : memref<1024x128xf32, #tpu.memory_space<vmem>>, vector<1024x128xf32>
      %cst_21 = arith.constant dense<0.000000e+00> : vector<1x128xf32>
      %30 = tpu.matmul %28, %29, %cst_21 {dimension_numbers = #tpu.dot_dimension_numbers<[1], [0], [0], [1], [0, 0, 1, 1], [], []>} : vector<1x1024xf32>, vector<1024x128xf32>, vector<1x128xf32> -> vector<1x128xf32>
      %c0_22 = arith.constant 0 : index
      %c0_23 = arith.constant 0 : index
      %31 = vector.load %arg6[%c0_22, %c0_23] : memref<1x128xf32, #tpu.memory_space<vmem>>, vector<1x128xf32>
      %32 = arith.addf %30, %31 : vector<1x128xf32>
      %33 = vector.shape_cast %32 : vector<1x128xf32> to vector<1x1x128xf32>
      %c0_24 = arith.constant 0 : index
      %c0_25 = arith.constant 0 : index
      %c0_26 = arith.constant 0 : index
      %34 = vector.load %arg7[%c0_24, %c0_25, %c0_26] : memref<1x1x128xf32, #tpu.memory_space<vmem>>, vector<1x1x128xf32>
      tpu.vector_store %arg7[%c0_24, %c0_25, %c0_26], %33 {strides = array<i32>} : memref<1x1x128xf32, #tpu.memory_space<vmem>>, vector<1x1x128xf32>,
    } else {
    }
    return
  }
  func.func @transform_0(%arg0: i32, %arg1: i32) -> (i32, i32, i32) {
    %c0_i32 = arith.constant 0 : i32
    %c0_i32_0 = arith.constant 0 : i32
    return %arg0, %c0_i32, %arg1 : i32, i32, i32
  }
  func.func @transform_1(%arg0: i32, %arg1: i32) -> (i32, i32) {
    %c0_i32 = arith.constant 0 : i32
    %c0_i32_0 = arith.constant 0 : i32
    %c0_i32_1 = arith.constant 0 : i32
    return %c0_i32, %c0_i32_0 : i32, i32
  }
  func.func @transform_2(%arg0: i32, %arg1: i32) -> (i32, i32) {
    %c0_i32 = arith.constant 0 : i32
    %c0_i32_0 = arith.constant 0 : i32
    %c0_i32_1 = arith.constant 0 : i32
    return %c0_i32, %c0_i32_0 : i32, i32
  }
  func.func @transform_3(%arg0: i32, %arg1: i32) -> (i32, i32) {
    %c0_i32 = arith.constant 0 : i32
    %c0_i32_0 = arith.constant 0 : i32
    %c0_i32_1 = arith.constant 0 : i32
    return %c0_i32, %c0_i32_0 : i32, i32
  }
  func.func @transform_4(%arg0: i32, %arg1: i32) -> (i32, i32) {
    %c0_i32 = arith.constant 0 : i32
    %c0_i32_0 = arith.constant 0 : i32
    %c0_i32_1 = arith.constant 0 : i32
    return %c0_i32, %c0_i32_0 : i32, i32
  }
  func.func @transform_5(%arg0: i32, %arg1: i32) -> (i32, i32, i32) {
    %c0_i32 = arith.constant 0 : i32
    %c0_i32_0 = arith.constant 0 : i32
    %c0_i32_1 = arith.constant 0 : i32
    return %arg0, %c0_i32, %c0_i32_0 : i32, i32, i32
  }
}

</mosaic_0001>

<llo_original>
// kernel: tpu_custom_call.1
$region0: #{tpu_custom_call.1}
  #allocation0 [shape = 'u32[]', space=smem, size = 0x4, offset = 0x4, fixed_abs, tag = 'smem constant byte address 0x4 - core index']
  #allocation1 [shape = 'u32[72,128]{1,0:T(1,128)}', space=vmem, size = 0x9000, scoped, tag = 'internal scratch']
  #allocation2 [shape = 'f32[1,512]{1,0:T(1,128)}', space=vmem, size = 0x800, scoped, tag = 'scratch operand']
  %s0 = inlined_call_operand.vmem [shape: bf16[2,512,210], index: 0, kind: input, shape index: {}]
  %s1 = inlined_call_operand.hbm [shape: f32[512,1024], index: 1, kind: input, shape index: {}]
  %s2 = inlined_call_operand.hbm [shape: f32[1,1024], index: 2, kind: input, shape index: {}]
  %s3 = inlined_call_operand.hbm [shape: f32[1024,128], index: 3, kind: input, shape index: {}]
  %s4 = inlined_call_operand.hbm [shape: f32[1,128], index: 4, kind: input, shape index: {}]
  %s5 = inlined_call_operand.hbm [shape: f32[2,1,128], index: 5, kind: output, shape index: {}]
  %s6 = sld [smem:[#allocation0]]
  $region118: #{tpu_custom_call.1} parent=0
    _
  %s8 = ssub.s32 1, %s6
  %s9 = scalar_select 0, %s8, %s6
  $region1: #{tpu_custom_call.1} parent=0
    #allocation3 [shape = 'u8[262144]{0}', space=vmem, size = 0x40000, scoped, tag = 'input window, operand 0']
    #allocation4 [shape = 'u8[2097152]{0}', space=vmem, size = 0x200000, scoped, tag = 'input window, operand 1, single buffered']
    #allocation5 [shape = 's32[2]{0}', space=sflag, size = 0x8, scoped, tag = 'scoped memory for tpu_custom_call.1']
    #allocation6 [shape = 's32[2]{0}', space=sflag, size = 0x8, scoped, tag = 'scoped memory for tpu_custom_call.1']
    #allocation7 [shape = 'u8[4096]{0}', space=vmem, size = 0x1000, scoped, tag = 'input window, operand 2, single buffered']
    #allocation8 [shape = 's32[1]{0}', space=sflag, size = 0x4, scoped, tag = 'scoped memory for tpu_custom_call.1']
    #allocation9 [shape = 'u8[524288]{0}', space=vmem, size = 0x80000, scoped, tag = 'input window, operand 3, single buffered']
    #allocation10 [shape = 'u8[512]{0}', space=vmem, size = 0x400, scoped, tag = 'input window, operand 4, single buffered']
    #allocation11 [shape = 's32[1]{0}', space=sflag, size = 0x4, scoped, tag = 'scoped memory for tpu_custom_call.1']
    #allocation12 [shape = 'u8[1024]{0}', space=vmem, size = 0x400, scoped, tag = 'output window, operand 0']
    %10 = vsyncpa [#allocation5], 0
    %11 = vsyncpa [#allocation8], 0
    %12 = vsyncpa [#allocation11], 0
    %13 = vsyncpa [#allocation6], 0
    %s14 = scalar_lea.sflag [#allocation6], 1
    %15 = vsyncpa %s14, 0
    loop: start=0, step=1, limit=6
    $region2: #{tpu_custom_call.1} parent=1 // loop_pre_header
      _
    $region3: #{tpu_custom_call.1} parent=1 // loop_header
      %s17 = sphi 0, %s21
      %p18 = scmp.ge.s32.totalorder %s17, 6
      %s24 = sphi 0, %s36
      %s25 = sphi 0, %s32
      %s26 = sphi 0, %s24
      %s27 = sphi 0, %s25
      %s28 = sphi 0, %s26
      %s29 = sphi 0, %s27
      %s41 = sphi 0, %s43
      %s44 = sphi 0, %s41
      %s45 = sphi 0, %s44
      %s61 = sphi 0, %s45
      %s65 = sphi 0, %s65
      %s67 = sphi 0, %s65
      %s68 = sphi 0, %s67
      %s82 = sphi 0, %s68
      %s86 = sphi 0, %s86
      %s88 = sphi 0, %s86
      %s89 = sphi 0, %s88
      %s103 = sphi 0, %s89
      %s107 = sphi 0, %s107
      %s109 = sphi 0, %s107
      %s110 = sphi 0, %s109
      %s124 = sphi 0, %s110
      %s128 = sphi 0, %s128
      %s130 = sphi 0, %s128
      %s131 = sphi 0, %s130
      %s145 = sphi 0, %s131
      %s151 = sphi 0, %s153
      %s154 = sphi 0, %s151
      %s155 = sphi 0, %s154
      %s171 = sphi 0, %s155
    $region4: #{tpu_custom_call.1} parent=1 // loop_header_branch
      %20 = sbr.rel (%p18) target = $region8
    $region5: #{tpu_custom_call.1} parent=1 // loop_body
      %s22 = ssub.s32 %s17, 1
      %s23 = ssub.s32 %s17, 2
      %s30 = sadd.s32 1, %s25
      %p31 = scmp.ge.s32.totalorder %s30, 2
      %s32 = scalar_select %p31, 0, %s30
      %s33 = sadd.s32 1, %s24
      %s34 = scalar_select %p31, %s33, %s24
      %p35 = scmp.ge.s32.totalorder %s34, 2
      %s36 = scalar_select %p35, 0, %s34
      %s37 = ssub.s32 %s24, %s36
      %s38 = ssub.s32 %s25, %s32
      %s39 = sor.u32 %s37, %s38
      %p40 = scmp.eq.s32.totalorder %s39, 0
      %s42 = sadd.s32 %s41, 1
      %s43 = scalar_select %p40, %s41, %s42
      %p46 = pneg %p40
      %p47 = scmp.eq.s32.totalorder %s17, 3
      %p48 = por %p46, %p47
      %p49 = scmp.ne.s32.totalorder %s41, %s44
      %p50 = scmp.eq.s32.totalorder %s17, 0
      %p51 = por %p49, %p50
      %p52 = scmp.ne.s32.totalorder %s41, %s44
      %p53 = scmp.eq.s32.totalorder %s22, 3
      %p54 = por %p52, %p53
      %p55 = scmp.ne.s32.totalorder %s44, %s45
      %p56 = scmp.eq.s32.totalorder %s22, 0
      %p57 = por %p55, %p56
      %p58 = scmp.ne.s32.totalorder %s44, %s45
      %p59 = scmp.eq.s32.totalorder %s23, 3
      %p60 = por %p58, %p59
      %p62 = scmp.ne.s32.totalorder %s45, %s61
      %p63 = scmp.eq.s32.totalorder %s23, 0
      %p64 = por %p62, %p63
      %s66 = sadd.s32 %s65, 1
      %p69 = scmp.eq.s32.totalorder %s17, 3
      %p70 = scmp.ne.s32.totalorder %s65, %s67
      %p71 = scmp.eq.s32.totalorder %s17, 0
      %p72 = por %p70, %p71
      %p73 = scmp.ne.s32.totalorder %s65, %s67
      %p74 = scmp.eq.s32.totalorder %s22, 3
      %p75 = por %p73, %p74
      %p76 = scmp.ne.s32.totalorder %s67, %s68
      %p77 = scmp.eq.s32.totalorder %s22, 0
      %p78 = por %p76, %p77
      %p79 = scmp.ne.s32.totalorder %s67, %s68
      %p80 = scmp.eq.s32.totalorder %s23, 3
      %p81 = por %p79, %p80
      %p83 = scmp.ne.s32.totalorder %s68, %s82
      %p84 = scmp.eq.s32.totalorder %s23, 0
      %p85 = por %p83, %p84
      %s87 = sadd.s32 %s86, 1
      %p90 = scmp.eq.s32.totalorder %s17, 3
      %p91 = scmp.ne.s32.totalorder %s86, %s88
      %p92 = scmp.eq.s32.totalorder %s17, 0
      %p93 = por %p91, %p92
      %p94 = scmp.ne.s32.totalorder %s86, %s88
      %p95 = scmp.eq.s32.totalorder %s22, 3
      %p96 = por %p94, %p95
      %p97 = scmp.ne.s32.totalorder %s88, %s89
      %p98 = scmp.eq.s32.totalorder %s22, 0
      %p99 = por %p97, %p98
      %p100 = scmp.ne.s32.totalorder %s88, %s89
      %p101 = scmp.eq.s32.totalorder %s23, 3
      %p102 = por %p100, %p101
      %p104 = scmp.ne.s32.totalorder %s89, %s103
      %p105 = scmp.eq.s32.totalorder %s23, 0
      %p106 = por %p104, %p105
      %s108 = sadd.s32 %s107, 1
      %p111 = scmp.eq.s32.totalorder %s17, 3
      %p112 = scmp.ne.s32.totalorder %s107, %s109
      %p113 = scmp.eq.s32.totalorder %s17, 0
      %p114 = por %p112, %p113
      %p115 = scmp.ne.s32.totalorder %s107, %s109
      %p116 = scmp.eq.s32.totalorder %s22, 3
      %p117 = por %p115, %p116
      %p118 = scmp.ne.s32.totalorder %s109, %s110
      %p119 = scmp.eq.s32.totalorder %s22, 0
      %p120 = por %p118, %p119
      %p121 = scmp.ne.s32.totalorder %s109, %s110
      %p122 = scmp.eq.s32.totalorder %s23, 3
      %p123 = por %p121, %p122
      %p125 = scmp.ne.s32.totalorder %s110, %s124
      %p126 = scmp.eq.s32.totalorder %s23, 0
      %p127 = por %p125, %p126
      %s129 = sadd.s32 %s128, 1
      %p132 = scmp.eq.s32.totalorder %s17, 3
      %p133 = scmp.ne.s32.totalorder %s128, %s130
      %p134 = scmp.eq.s32.totalorder %s17, 0
      %p135 = por %p133, %p134
      %p136 = scmp.ne.s32.totalorder %s128, %s130
      %p137 = scmp.eq.s32.totalorder %s22, 3
      %p138 = por %p136, %p137
      %p139 = scmp.ne.s32.totalorder %s130, %s131
      %p140 = scmp.eq.s32.totalorder %s22, 0
      %p141 = por %p139, %p140
      %p142 = scmp.ne.s32.totalorder %s130, %s131
      %p143 = scmp.eq.s32.totalorder %s23, 3
      %p144 = por %p142, %p143
      %p146 = scmp.ne.s32.totalorder %s131, %s145
      %p147 = scmp.eq.s32.totalorder %s23, 0
      %p148 = por %p146, %p147
      %s149 = ssub.s32 %s24, %s36
      %p150 = scmp.eq.s32.totalorder %s149, 0
      %s152 = sadd.s32 %s151, 1
      %s153 = scalar_select %p150, %s151, %s152
      %p156 = pneg %p150
      %p157 = scmp.eq.s32.totalorder %s17, 3
      %p158 = por %p156, %p157
      %p159 = scmp.ne.s32.totalorder %s151, %s154
      %p160 = scmp.eq.s32.totalorder %s17, 0
      %p161 = por %p159, %p160
      %p162 = scmp.ne.s32.totalorder %s151, %s154
      %p163 = scmp.eq.s32.totalorder %s22, 3
      %p164 = por %p162, %p163
      %p165 = scmp.ne.s32.totalorder %s154, %s155
      %p166 = scmp.eq.s32.totalorder %s22, 0
      %p167 = por %p165, %p166
      %p168 = scmp.ne.s32.totalorder %s154, %s155
      %p169 = scmp.eq.s32.totalorder %s23, 3
      %p170 = por %p168, %p169
      %p172 = scmp.ne.s32.totalorder %s155, %s171
      %p173 = scmp.eq.s32.totalorder %s23, 0
      %p174 = por %p172, %p173
      %p175 = scmp.le.s32.totalorder 1, %s17
      %p176 = scmp.lt.s32.totalorder %s17, 5
      %p177 = pnand %p175, %p176
      %p178 = pneg %p177
      // Predicated region
      $region9: #{tpu_custom_call.1} parent=5 // pred_check
        _
      $region10: #{tpu_custom_call.1} parent=5 // pred_check_branch
        %180 = sbr.rel (%p177) target = $region12
      $region11: #{tpu_custom_call.1} parent=5 // pred_region
        %s181 = ssub.s32 %s17, 1
        // Predicated region
        $region13: #{tpu_custom_call.1} parent=11 // pred_check
          %p182 = pneg %p78
        $region14: #{tpu_custom_call.1} parent=11 // pred_check_branch
          %184 = sbr.rel (%p182) target = $region16
        $region15: #{tpu_custom_call.1} parent=11 // pred_region
          %186 = vsyncadd [#allocation5], 0
          %s187 = sshll.u32 %s1, 4
          %s188 = int_to_ptr.hbm [resolvable:$true] %s187
          %s189 = sshll.u32 [#allocation4], 4
          %s190 = int_to_ptr.vmem [resolvable:$true] %s189
          %195 = dma.hbm_to_vmem [thread:$0]  %s188, 65536, %s190, [#allocation5], 1024, 1024, 64
        $region16: #{tpu_custom_call.1} parent=11 // pred_fallthru
          _
        // Predicated region
        $region17: #{tpu_custom_call.1} parent=11 // pred_check
          %p196 = pneg %p99
        $region18: #{tpu_custom_call.1} parent=11 // pred_check_branch
          %198 = sbr.rel (%p196) target = $region20
        $region19: #{tpu_custom_call.1} parent=11 // pred_region
          %200 = vsyncadd [#allocation8], 0
          %s202 = sshll.u32 %s2, 4
          %s203 = int_to_ptr.hbm [resolvable:$true] %s202
          %s204 = sshll.u32 [#allocation7], 4
          %s205 = int_to_ptr.vmem [resolvable:$true] %s204
          %207 = dma.hbm_to_vmem [thread:$0]  %s203, 128, %s205, [#allocation8]
        $region20: #{tpu_custom_call.1} parent=11 // pred_fallthru
          _
        // Predicated region
        $region21: #{tpu_custom_call.1} parent=11 // pred_check
          %p208 = pneg %p120
        $region22: #{tpu_custom_call.1} parent=11 // pred_check_branch
          %210 = sbr.rel (%p208) target = $region24
        $region23: #{tpu_custom_call.1} parent=11 // pred_region
          %212 = vsyncadd [#allocation8], 0
          %s213 = sshll.u32 %s3, 4
          %s214 = int_to_ptr.hbm [resolvable:$true] %s213
          %s215 = sshll.u32 [#allocation9], 4
          %s216 = int_to_ptr.vmem [resolvable:$true] %s215
          %221 = dma.hbm_to_vmem [thread:$0]  %s214, 16384, %s216, [#allocation8], 128, 128, 8
        $region24: #{tpu_custom_call.1} parent=11 // pred_fallthru
          _
        // Predicated region
        $region25: #{tpu_custom_call.1} parent=11 // pred_check
          %p222 = pneg %p141
        $region26: #{tpu_custom_call.1} parent=11 // pred_check_branch
          %224 = sbr.rel (%p222) target = $region28
        $region27: #{tpu_custom_call.1} parent=11 // pred_region
          %226 = vsyncadd [#allocation11], 0
          %s228 = sshll.u32 %s4, 4
          %s229 = int_to_ptr.hbm [resolvable:$true] %s228
          %s230 = sshll.u32 [#allocation10], 4
          %s231 = int_to_ptr.vmem [resolvable:$true] %s230
          %233 = dma.hbm_to_vmem [thread:$0]  %s229, 16, %s231, [#allocation11]
        $region28: #{tpu_custom_call.1} parent=11 // pred_fallthru
          _
      $region12: #{tpu_custom_call.1} parent=5 // pred_fallthru
        _
      %p234 = scmp.lt.s32.totalorder %s17, 4
      // Predicated region
      $region29: #{tpu_custom_call.1} parent=5 // pred_check
        %p235 = pneg %p234
      $region30: #{tpu_custom_call.1} parent=5 // pred_check_branch
        %237 = sbr.rel (%p235) target = $region32
      $region31: #{tpu_custom_call.1} parent=5 // pred_region
        // Predicated region
        $region33: #{tpu_custom_call.1} parent=31 // pred_check
          %p238 = pneg %p51
        $region34: #{tpu_custom_call.1} parent=31 // pred_check_branch
          %240 = sbr.rel (%p238) target = $region36
        $region35: #{tpu_custom_call.1} parent=31 // pred_region
          %s241 = sand.u32 %s41, 1
          %s242 = sand.u32 %s41, 1
          %s243 = smul.addr %s242, 256
          %s244 = scalar_lea.vmem [#allocation3], %s243
          %s245 = smul.addr %s24, 128
          %s246 = sadd.s32 %s25, %s245
          %s247 = smul.addr %s246, 4
          %s248 = scalar_lea.vmem %s0, %s247
          // Predicated region
          $region37: #{tpu_custom_call.1} parent=35 // pred_check
            _
          $region38: #{tpu_custom_call.1} parent=35 // pred_check_branch
            %250 = sbr.rel (0) target = $region40
          $region39: #{tpu_custom_call.1} parent=35 // pred_region
            // Predicated region
            $region41: #{tpu_custom_call.1} parent=39 // pred_check
              _
            $region42: #{tpu_custom_call.1} parent=39 // pred_check_branch
              %252 = sbr.rel target = $region44
            $region43: #{tpu_custom_call.1} parent=39 // pred_region
              // Predicated region
              $region56: #{tpu_custom_call.1} parent=43 // pred_check
                _
              $region57: #{tpu_custom_call.1} parent=43 // pred_check_branch
                %394 = sbr.rel (0) target = $region59
              $region58: #{tpu_custom_call.1} parent=43 // pred_region
                loop: start=0, step=1, limit=1
                $region60: #{tpu_custom_call.1} parent=58 // loop_pre_header
                  _
                $region61: #{tpu_custom_call.1} parent=58 // loop_header
                  %s396 = sphi 0, %s400
                  %p397 = scmp.ge.s32.totalorder %s396, 1
                  %s401 = sphi %s248, %s248
                  %s402 = sphi %s244, %s244
                $region62: #{tpu_custom_call.1} parent=58 // loop_header_branch
                  %399 = sbr.rel (%p397) target = $region66
                $region63: #{tpu_custom_call.1} parent=58 // loop_body
                  _
                $region64: #{tpu_custom_call.1} parent=58 // loop_footer
                  %s400 = sadd.s32 1, %s396
                $region65: #{tpu_custom_call.1} parent=58 // loop_footer_branch
                  %395 = sbr.rel target = $region61
                $region66: #{tpu_custom_call.1} parent=58 // loop_exit
                  _
                %s404 = ssub.s32 16, 1
                loop: start=0, step=1, limit=1
                $region67: #{tpu_custom_call.1} parent=58 // loop_pre_header
                  _
                $region68: #{tpu_custom_call.1} parent=58 // loop_header
                  %s406 = sphi 0, %s410
                  %p407 = scmp.ge.s32.totalorder %s406, 1
                  %s411 = sphi %s248, %s248
                  %s412 = sphi %s244, %s244
                $region69: #{tpu_custom_call.1} parent=58 // loop_header_branch
                  %409 = sbr.rel (%p407) target = $region73
                $region70: #{tpu_custom_call.1} parent=58 // loop_body
                  %v413 = vld [vmem:[%s411] sm:%s404]
                  %414 = vst [vmem:[%s412] sm:%s404] %v413
                  %v415 = vld [vmem:[%s411 + $0x8] sm:%s404]
                  %416 = vst [vmem:[%s412 + $0x4] sm:%s404] %v415
                  %v417 = vld [vmem:[%s411 + $0x10] sm:%s404]
                  %418 = vst [vmem:[%s412 + $0x8] sm:%s404] %v417
                  %v419 = vld [vmem:[%s411 + $0x18] sm:%s404]
                  %420 = vst [vmem:[%s412 + $0xc] sm:%s404] %v419
                  %v421 = vld [vmem:[%s411 + $0x20] sm:%s404]
                  %422 = vst [vmem:[%s412 + $0x10] sm:%s404] %v421
                  %v423 = vld [vmem:[%s411 + $0x28] sm:%s404]
                  %424 = vst [vmem:[%s412 + $0x14] sm:%s404] %v423
                  %v425 = vld [vmem:[%s411 + $0x30] sm:%s404]
                  %426 = vst [vmem:[%s412 + $0x18] sm:%s404] %v425
                  %v427 = vld [vmem:[%s411 + $0x38] sm:%s404]
                  %428 = vst [vmem:[%s412 + $0x1c] sm:%s404] %v427
                  %v429 = vld [vmem:[%s411 + $0x40] sm:%s404]
                  %430 = vst [vmem:[%s412 + $0x20] sm:%s404] %v429
                  %v431 = vld [vmem:[%s411 + $0x48] sm:%s404]
                  %432 = vst [vmem:[%s412 + $0x24] sm:%s404] %v431
                  %v433 = vld [vmem:[%s411 + $0x50] sm:%s404]
                  %434 = vst [vmem:[%s412 + $0x28] sm:%s404] %v433
                  %v435 = vld [vmem:[%s411 + $0x58] sm:%s404]
                  %436 = vst [vmem:[%s412 + $0x2c] sm:%s404] %v435
                  %v437 = vld [vmem:[%s411 + $0x60] sm:%s404]
                  %438 = vst [vmem:[%s412 + $0x30] sm:%s404] %v437
                  %v439 = vld [vmem:[%s411 + $0x68] sm:%s404]
                  %440 = vst [vmem:[%s412 + $0x34] sm:%s404] %v439
                  %v441 = vld [vmem:[%s411 + $0x70] sm:%s404]
                  %442 = vst [vmem:[%s412 + $0x38] sm:%s404] %v441
                  %v443 = vld [vmem:[%s411 + $0x78] sm:%s404]
                  %444 = vst [vmem:[%s412 + $0x3c] sm:%s404] %v443
                  %v445 = vld [vmem:[%s411 + $0x80] sm:%s404]
                  %446 = vst [vmem:[%s412 + $0x40] sm:%s404] %v445
                  %v447 = vld [vmem:[%s411 + $0x88] sm:%s404]
                  %448 = vst [vmem:[%s412 + $0x44] sm:%s404] %v447
                  %v449 = vld [vmem:[%s411 + $0x90] sm:%s404]
                  %450 = vst [vmem:[%s412 + $0x48] sm:%s404] %v449
                  %v451 = vld [vmem:[%s411 + $0x98] sm:%s404]
                  %452 = vst [vmem:[%s412 + $0x4c] sm:%s404] %v451
                  %v453 = vld [vmem:[%s411 + $0xa0] sm:%s404]
                  %454 = vst [vmem:[%s412 + $0x50] sm:%s404] %v453
                  %v455 = vld [vmem:[%s411 + $0xa8] sm:%s404]
                  %456 = vst [vmem:[%s412 + $0x54] sm:%s404] %v455
                  %v457 = vld [vmem:[%s411 + $0xb0] sm:%s404]
                  %458 = vst [vmem:[%s412 + $0x58] sm:%s404] %v457
                  %v459 = vld [vmem:[%s411 + $0xb8] sm:%s404]
                  %460 = vst [vmem:[%s412 + $0x5c] sm:%s404] %v459
                  %v461 = vld [vmem:[%s411 + $0xc0] sm:%s404]
                  %462 = vst [vmem:[%s412 + $0x60] sm:%s404] %v461
                  %v463 = vld [vmem:[%s411 + $0xc8] sm:%s404]
                  %464 = vst [vmem:[%s412 + $0x64] sm:%s404] %v463
                  %v465 = vld [vmem:[%s411 + $0xd0] sm:%s404]
                  %466 = vst [vmem:[%s412 + $0x68] sm:%s404] %v465
                  %v467 = vld [vmem:[%s411 + $0xd8] sm:%s404]
                  %468 = vst [vmem:[%s412 + $0x6c] sm:%s404] %v467
                  %v469 = vld [vmem:[%s411 + $0xe0] sm:%s404]
                  %470 = vst [vmem:[%s412 + $0x70] sm:%s404] %v469
                  %v471 = vld [vmem:[%s411 + $0xe8] sm:%s404]
                  %472 = vst [vmem:[%s412 + $0x74] sm:%s404] %v471
                  %v473 = vld [vmem:[%s411 + $0xf0] sm:%s404]
                  %474 = vst [vmem:[%s412 + $0x78] sm:%s404] %v473
                  %v475 = vld [vmem:[%s411 + $0xf8] sm:%s404]
                  %476 = vst [vmem:[%s412 + $0x7c] sm:%s404] %v475
                  %v477 = vld [vmem:[%s411 + $0x100] sm:%s404]
                  %478 = vst [vmem:[%s412 + $0x80] sm:%s404] %v477
                  %v479 = vld [vmem:[%s411 + $0x108] sm:%s404]
                  %480 = vst [vmem:[%s412 + $0x84] sm:%s404] %v479
                  %v481 = vld [vmem:[%s411 + $0x110] sm:%s404]
                  %482 = vst [vmem:[%s412 + $0x88] sm:%s404] %v481
                  %v483 = vld [vmem:[%s411 + $0x118] sm:%s404]
                  %484 = vst [vmem:[%s412 + $0x8c] sm:%s404] %v483
                  %v485 = vld [vmem:[%s411 + $0x120] sm:%s404]
                  %486 = vst [vmem:[%s412 + $0x90] sm:%s404] %v485
                  %v487 = vld [vmem:[%s411 + $0x128] sm:%s404]
                  %488 = vst [vmem:[%s412 + $0x94] sm:%s404] %v487
                  %v489 = vld [vmem:[%s411 + $0x130] sm:%s404]
                  %490 = vst [vmem:[%s412 + $0x98] sm:%s404] %v489
                  %v491 = vld [vmem:[%s411 + $0x138] sm:%s404]
                  %492 = vst [vmem:[%s412 + $0x9c] sm:%s404] %v491
                  %v493 = vld [vmem:[%s411 + $0x140] sm:%s404]
                  %494 = vst [vmem:[%s412 + $0xa0] sm:%s404] %v493
                  %v495 = vld [vmem:[%s411 + $0x148] sm:%s404]
                  %496 = vst [vmem:[%s412 + $0xa4] sm:%s404] %v495
                  %v497 = vld [vmem:[%s411 + $0x150] sm:%s404]
                  %498 = vst [vmem:[%s412 + $0xa8] sm:%s404] %v497
                  %v499 = vld [vmem:[%s411 + $0x158] sm:%s404]
                  %500 = vst [vmem:[%s412 + $0xac] sm:%s404] %v499
                  %v501 = vld [vmem:[%s411 + $0x160] sm:%s404]
                  %502 = vst [vmem:[%s412 + $0xb0] sm:%s404] %v501
                  %v503 = vld [vmem:[%s411 + $0x168] sm:%s404]
                  %504 = vst [vmem:[%s412 + $0xb4] sm:%s404] %v503
                  %v505 = vld [vmem:[%s411 + $0x170] sm:%s404]
                  %506 = vst [vmem:[%s412 + $0xb8] sm:%s404] %v505
                  %v507 = vld [vmem:[%s411 + $0x178] sm:%s404]
                  %508 = vst [vmem:[%s412 + $0xbc] sm:%s404] %v507
                  %v509 = vld [vmem:[%s411 + $0x180] sm:%s404]
                  %510 = vst [vmem:[%s412 + $0xc0] sm:%s404] %v509
                  %v511 = vld [vmem:[%s411 + $0x188] sm:%s404]
                  %512 = vst [vmem:[%s412 + $0xc4] sm:%s404] %v511
                  %v513 = vld [vmem:[%s411 + $0x190] sm:%s404]
                  %514 = vst [vmem:[%s412 + $0xc8] sm:%s404] %v513
                  %v515 = vld [vmem:[%s411 + $0x198] sm:%s404]
                  %516 = vst [vmem:[%s412 + $0xcc] sm:%s404] %v515
                  %v517 = vld [vmem:[%s411 + $0x1a0] sm:%s404]
                  %518 = vst [vmem:[%s412 + $0xd0] sm:%s404] %v517
                  %v519 = vld [vmem:[%s411 + $0x1a8] sm:%s404]
                  %520 = vst [vmem:[%s412 + $0xd4] sm:%s404] %v519
                  %v521 = vld [vmem:[%s411 + $0x1b0] sm:%s404]
                  %522 = vst [vmem:[%s412 + $0xd8] sm:%s404] %v521
                  %v523 = vld [vmem:[%s411 + $0x1b8] sm:%s404]
                  %524 = vst [vmem:[%s412 + $0xdc] sm:%s404] %v523
                  %v525 = vld [vmem:[%s411 + $0x1c0] sm:%s404]
                  %526 = vst [vmem:[%s412 + $0xe0] sm:%s404] %v525
                  %v527 = vld [vmem:[%s411 + $0x1c8] sm:%s404]
                  %528 = vst [vmem:[%s412 + $0xe4] sm:%s404] %v527
                  %v529 = vld [vmem:[%s411 + $0x1d0] sm:%s404]
                  %530 = vst [vmem:[%s412 + $0xe8] sm:%s404] %v529
                  %v531 = vld [vmem:[%s411 + $0x1d8] sm:%s404]
                  %532 = vst [vmem:[%s412 + $0xec] sm:%s404] %v531
                  %v533 = vld [vmem:[%s411 + $0x1e0] sm:%s404]
                  %534 = vst [vmem:[%s412 + $0xf0] sm:%s404] %v533
                  %v535 = vld [vmem:[%s411 + $0x1e8] sm:%s404]
                  %536 = vst [vmem:[%s412 + $0xf4] sm:%s404] %v535
                  %v537 = vld [vmem:[%s411 + $0x1f0] sm:%s404]
                  %538 = vst [vmem:[%s412 + $0xf8] sm:%s404] %v537
                  %v539 = vld [vmem:[%s411 + $0x1f8] sm:%s404]
                  %540 = vst [vmem:[%s412 + $0xfc] sm:%s404] %v539
                $region71: #{tpu_custom_call.1} parent=58 // loop_footer
                  %s410 = sadd.s32 1, %s406
                $region72: #{tpu_custom_call.1} parent=58 // loop_footer_branch
                  %405 = sbr.rel target = $region68
                $region73: #{tpu_custom_call.1} parent=58 // loop_exit
                  _
              $region59: #{tpu_custom_call.1} parent=43 // pred_fallthru
                _
            $region44: #{tpu_custom_call.1} parent=39 // pred_fallthru
              _
            // Predicated region
            $region45: #{tpu_custom_call.1} parent=39 // pred_check
              _
            $region46: #{tpu_custom_call.1} parent=39 // pred_check_branch
              %254 = sbr.rel (0) target = $region48
            $region47: #{tpu_custom_call.1} parent=39 // pred_region
              %s256 = ssub.s32 16, 1
              loop: start=0, step=1, limit=1
              $region49: #{tpu_custom_call.1} parent=47 // loop_pre_header
                _
              $region50: #{tpu_custom_call.1} parent=47 // loop_header
                %s258 = sphi 0, %s262
                %p259 = scmp.ge.s32.totalorder %s258, 1
                %s263 = sphi %s248, %s248
                %s264 = sphi %s244, %s244
              $region51: #{tpu_custom_call.1} parent=47 // loop_header_branch
                %261 = sbr.rel (%p259) target = $region55
              $region52: #{tpu_custom_call.1} parent=47 // loop_body
                %v265 = vld [vmem:[%s263] sm:%s256]
                %266 = vst [vmem:[%s264] sm:%s256] %v265
                %v267 = vld [vmem:[%s263 + $0x8] sm:%s256]
                %268 = vst [vmem:[%s264 + $0x4] sm:%s256] %v267
                %v269 = vld [vmem:[%s263 + $0x10] sm:%s256]
                %270 = vst [vmem:[%s264 + $0x8] sm:%s256] %v269
                %v271 = vld [vmem:[%s263 + $0x18] sm:%s256]
                %272 = vst [vmem:[%s264 + $0xc] sm:%s256] %v271
                %v273 = vld [vmem:[%s263 + $0x20] sm:%s256]
                %274 = vst [vmem:[%s264 + $0x10] sm:%s256] %v273
                %v275 = vld [vmem:[%s263 + $0x28] sm:%s256]
                %276 = vst [vmem:[%s264 + $0x14] sm:%s256] %v275
                %v277 = vld [vmem:[%s263 + $0x30] sm:%s256]
                %278 = vst [vmem:[%s264 + $0x18] sm:%s256] %v277
                %v279 = vld [vmem:[%s263 + $0x38] sm:%s256]
                %280 = vst [vmem:[%s264 + $0x1c] sm:%s256] %v279
                %v281 = vld [vmem:[%s263 + $0x40] sm:%s256]
                %282 = vst [vmem:[%s264 + $0x20] sm:%s256] %v281
                %v283 = vld [vmem:[%s263 + $0x48] sm:%s256]
                %284 = vst [vmem:[%s264 + $0x24] sm:%s256] %v283
                %v285 = vld [vmem:[%s263 + $0x50] sm:%s256]
                %286 = vst [vmem:[%s264 + $0x28] sm:%s256] %v285
                %v287 = vld [vmem:[%s263 + $0x58] sm:%s256]
                %288 = vst [vmem:[%s264 + $0x2c] sm:%s256] %v287
                %v289 = vld [vmem:[%s263 + $0x60] sm:%s256]
                %290 = vst [vmem:[%s264 + $0x30] sm:%s256] %v289
                %v291 = vld [vmem:[%s263 + $0x68] sm:%s256]
                %292 = vst [vmem:[%s264 + $0x34] sm:%s256] %v291
                %v293 = vld [vmem:[%s263 + $0x70] sm:%s256]
                %294 = vst [vmem:[%s264 + $0x38] sm:%s256] %v293
                %v295 = vld [vmem:[%s263 + $0x78] sm:%s256]
                %296 = vst [vmem:[%s264 + $0x3c] sm:%s256] %v295
                %v297 = vld [vmem:[%s263 + $0x80] sm:%s256]
                %298 = vst [vmem:[%s264 + $0x40] sm:%s256] %v297
                %v299 = vld [vmem:[%s263 + $0x88] sm:%s256]
                %300 = vst [vmem:[%s264 + $0x44] sm:%s256] %v299
                %v301 = vld [vmem:[%s263 + $0x90] sm:%s256]
                %302 = vst [vmem:[%s264 + $0x48] sm:%s256] %v301
                %v303 = vld [vmem:[%s263 + $0x98] sm:%s256]
                %304 = vst [vmem:[%s264 + $0x4c] sm:%s256] %v303
                %v305 = vld [vmem:[%s263 + $0xa0] sm:%s256]
                %306 = vst [vmem:[%s264 + $0x50] sm:%s256] %v305
                %v307 = vld [vmem:[%s263 + $0xa8] sm:%s256]
                %308 = vst [vmem:[%s264 + $0x54] sm:%s256] %v307
                %v309 = vld [vmem:[%s263 + $0xb0] sm:%s256]
                %310 = vst [vmem:[%s264 + $0x58] sm:%s256] %v309
                %v311 = vld [vmem:[%s263 + $0xb8] sm:%s256]
                %312 = vst [vmem:[%s264 + $0x5c] sm:%s256] %v311
                %v313 = vld [vmem:[%s263 + $0xc0] sm:%s256]
                %314 = vst [vmem:[%s264 + $0x60] sm:%s256] %v313
                %v315 = vld [vmem:[%s263 + $0xc8] sm:%s256]
                %316 = vst [vmem:[%s264 + $0x64] sm:%s256] %v315
                %v317 = vld [vmem:[%s263 + $0xd0] sm:%s256]
                %318 = vst [vmem:[%s264 + $0x68] sm:%s256] %v317
                %v319 = vld [vmem:[%s263 + $0xd8] sm:%s256]
                %320 = vst [vmem:[%s264 + $0x6c] sm:%s256] %v319
                %v321 = vld [vmem:[%s263 + $0xe0] sm:%s256]
                %322 = vst [vmem:[%s264 + $0x70] sm:%s256] %v321
                %v323 = vld [vmem:[%s263 + $0xe8] sm:%s256]
                %324 = vst [vmem:[%s264 + $0x74] sm:%s256] %v323
                %v325 = vld [vmem:[%s263 + $0xf0] sm:%s256]
                %326 = vst [vmem:[%s264 + $0x78] sm:%s256] %v325
                %v327 = vld [vmem:[%s263 + $0xf8] sm:%s256]
                %328 = vst [vmem:[%s264 + $0x7c] sm:%s256] %v327
                %v329 = vld [vmem:[%s263 + $0x100] sm:%s256]
                %330 = vst [vmem:[%s264 + $0x80] sm:%s256] %v329
                %v331 = vld [vmem:[%s263 + $0x108] sm:%s256]
                %332 = vst [vmem:[%s264 + $0x84] sm:%s256] %v331
                %v333 = vld [vmem:[%s263 + $0x110] sm:%s256]
                %334 = vst [vmem:[%s264 + $0x88] sm:%s256] %v333
                %v335 = vld [vmem:[%s263 + $0x118] sm:%s256]
                %336 = vst [vmem:[%s264 + $0x8c] sm:%s256] %v335
                %v337 = vld [vmem:[%s263 + $0x120] sm:%s256]
                %338 = vst [vmem:[%s264 + $0x90] sm:%s256] %v337
                %v339 = vld [vmem:[%s263 + $0x128] sm:%s256]
                %340 = vst [vmem:[%s264 + $0x94] sm:%s256] %v339
                %v341 = vld [vmem:[%s263 + $0x130] sm:%s256]
                %342 = vst [vmem:[%s264 + $0x98] sm:%s256] %v341
                %v343 = vld [vmem:[%s263 + $0x138] sm:%s256]
                %344 = vst [vmem:[%s264 + $0x9c] sm:%s256] %v343
                %v345 = vld [vmem:[%s263 + $0x140] sm:%s256]
                %346 = vst [vmem:[%s264 + $0xa0] sm:%s256] %v345
                %v347 = vld [vmem:[%s263 + $0x148] sm:%s256]
                %348 = vst [vmem:[%s264 + $0xa4] sm:%s256] %v347
                %v349 = vld [vmem:[%s263 + $0x150] sm:%s256]
                %350 = vst [vmem:[%s264 + $0xa8] sm:%s256] %v349
                %v351 = vld [vmem:[%s263 + $0x158] sm:%s256]
                %352 = vst [vmem:[%s264 + $0xac] sm:%s256] %v351
                %v353 = vld [vmem:[%s263 + $0x160] sm:%s256]
                %354 = vst [vmem:[%s264 + $0xb0] sm:%s256] %v353
                %v355 = vld [vmem:[%s263 + $0x168] sm:%s256]
                %356 = vst [vmem:[%s264 + $0xb4] sm:%s256] %v355
                %v357 = vld [vmem:[%s263 + $0x170] sm:%s256]
                %358 = vst [vmem:[%s264 + $0xb8] sm:%s256] %v357
                %v359 = vld [vmem:[%s263 + $0x178] sm:%s256]
                %360 = vst [vmem:[%s264 + $0xbc] sm:%s256] %v359
                %v361 = vld [vmem:[%s263 + $0x180] sm:%s256]
                %362 = vst [vmem:[%s264 + $0xc0] sm:%s256] %v361
                %v363 = vld [vmem:[%s263 + $0x188] sm:%s256]
                %364 = vst [vmem:[%s264 + $0xc4] sm:%s256] %v363
                %v365 = vld [vmem:[%s263 + $0x190] sm:%s256]
                %366 = vst [vmem:[%s264 + $0xc8] sm:%s256] %v365
                %v367 = vld [vmem:[%s263 + $0x198] sm:%s256]
                %368 = vst [vmem:[%s264 + $0xcc] sm:%s256] %v367
                %v369 = vld [vmem:[%s263 + $0x1a0] sm:%s256]
                %370 = vst [vmem:[%s264 + $0xd0] sm:%s256] %v369
                %v371 = vld [vmem:[%s263 + $0x1a8] sm:%s256]
                %372 = vst [vmem:[%s264 + $0xd4] sm:%s256] %v371
                %v373 = vld [vmem:[%s263 + $0x1b0] sm:%s256]
                %374 = vst [vmem:[%s264 + $0xd8] sm:%s256] %v373
                %v375 = vld [vmem:[%s263 + $0x1b8] sm:%s256]
                %376 = vst [vmem:[%s264 + $0xdc] sm:%s256] %v375
                %v377 = vld [vmem:[%s263 + $0x1c0] sm:%s256]
                %378 = vst [vmem:[%s264 + $0xe0] sm:%s256] %v377
                %v379 = vld [vmem:[%s263 + $0x1c8] sm:%s256]
                %380 = vst [vmem:[%s264 + $0xe4] sm:%s256] %v379
                %v381 = vld [vmem:[%s263 + $0x1d0] sm:%s256]
                %382 = vst [vmem:[%s264 + $0xe8] sm:%s256] %v381
                %v383 = vld [vmem:[%s263 + $0x1d8] sm:%s256]
                %384 = vst [vmem:[%s264 + $0xec] sm:%s256] %v383
                %v385 = vld [vmem:[%s263 + $0x1e0] sm:%s256]
                %386 = vst [vmem:[%s264 + $0xf0] sm:%s256] %v385
                %v387 = vld [vmem:[%s263 + $0x1e8] sm:%s256]
                %388 = vst [vmem:[%s264 + $0xf4] sm:%s256] %v387
                %v389 = vld [vmem:[%s263 + $0x1f0] sm:%s256]
                %390 = vst [vmem:[%s264 + $0xf8] sm:%s256] %v389
                %v391 = vld [vmem:[%s263 + $0x1f8] sm:%s256]
                %392 = vst [vmem:[%s264 + $0xfc] sm:%s256] %v391
              $region53: #{tpu_custom_call.1} parent=47 // loop_footer
                %s262 = sadd.s32 1, %s258
              $region54: #{tpu_custom_call.1} parent=47 // loop_footer_branch
                %257 = sbr.rel target = $region50
              $region55: #{tpu_custom_call.1} parent=47 // loop_exit
                _
            $region48: #{tpu_custom_call.1} parent=39 // pred_fallthru
              _
          $region40: #{tpu_custom_call.1} parent=35 // pred_fallthru
            _
          %541 = vnop
        $region36: #{tpu_custom_call.1} parent=31 // pred_fallthru
          _
      $region32: #{tpu_custom_call.1} parent=5 // pred_fallthru
        _
      %p542 = scmp.le.s32.totalorder 1, %s17
      %p543 = scmp.lt.s32.totalorder %s17, 5
      %p544 = pnand %p542, %p543
      %p545 = pneg %p544
      // Predicated region
      $region74: #{tpu_custom_call.1} parent=5 // pred_check
        _
      $region75: #{tpu_custom_call.1} parent=5 // pred_check_branch
        %547 = sbr.rel (%p544) target = $region77
      $region76: #{tpu_custom_call.1} parent=5 // pred_region
        %s548 = ssub.s32 %s17, 1
        %s549 = sand.u32 %s44, 1
        %s550 = sand.u32 %s44, 1
        %s551 = smul.addr %s550, 256
        %s552 = scalar_lea.vmem [#allocation3], %s551
        // Predicated region
        $region78: #{tpu_custom_call.1} parent=76 // pred_check
          %p553 = pneg %p57
        $region79: #{tpu_custom_call.1} parent=76 // pred_check_branch
          %555 = sbr.rel (%p553) target = $region81
        $region80: #{tpu_custom_call.1} parent=76 // pred_region
          _
        $region81: #{tpu_custom_call.1} parent=76 // pred_fallthru
          _
        // Predicated region
        $region82: #{tpu_custom_call.1} parent=76 // pred_check
          %p556 = pneg %p78
        $region83: #{tpu_custom_call.1} parent=76 // pred_check_branch
          %558 = sbr.rel (%p556) target = $region85
        $region84: #{tpu_custom_call.1} parent=76 // pred_region
          %560 = dma.done [#allocation5], 65536
        $region85: #{tpu_custom_call.1} parent=76 // pred_fallthru
          _
        // Predicated region
        $region86: #{tpu_custom_call.1} parent=76 // pred_check
          %p561 = pneg %p99
        $region87: #{tpu_custom_call.1} parent=76 // pred_check_branch
          %563 = sbr.rel (%p561) target = $region89
        $region88: #{tpu_custom_call.1} parent=76 // pred_region
          %565 = dma.done [#allocation8], 128
        $region89: #{tpu_custom_call.1} parent=76 // pred_fallthru
          _
        // Predicated region
        $region90: #{tpu_custom_call.1} parent=76 // pred_check
          %p566 = pneg %p120
        $region91: #{tpu_custom_call.1} parent=76 // pred_check_branch
          %568 = sbr.rel (%p566) target = $region93
        $region92: #{tpu_custom_call.1} parent=76 // pred_region
          %570 = dma.done [#allocation8], 16384
        $region93: #{tpu_custom_call.1} parent=76 // pred_fallthru
          _
        // Predicated region
        $region94: #{tpu_custom_call.1} parent=76 // pred_check
          %p571 = pneg %p141
        $region95: #{tpu_custom_call.1} parent=76 // pred_check_branch
          %573 = sbr.rel (%p571) target = $region97
        $region96: #{tpu_custom_call.1} parent=76 // pred_region
          %575 = dma.done [#allocation11], 16
        $region97: #{tpu_custom_call.1} parent=76 // pred_fallthru
          _
        %s576 = sand.u32 %s44, 1
        %s577 = sand.u32 %s44, 1
        %s578 = smul.addr %s577, 256
        %s579 = scalar_lea.vmem [#allocation3], %s578
        %p580 = pneg %p57
        %p581 = pneg %p54
        %p582 = pneg %p78
        %p583 = pneg %p75
        %p584 = pneg %p99
        %p585 = pneg %p96
        %p586 = pneg %p120
        %p587 = pneg %p117
        %p588 = pneg %p141
        %p589 = pneg %p138
        %p590 = pneg %p167
        %p591 = pneg %p164
        %s592 = sand.u32 %s154, 1
        %s593 = scalar_lea.sflag [#allocation6], %s592
        %s594 = sand.u32 %s154, 1
        %s595 = scalar_lea.vmem [#allocation12], %s594
        %p596 = scmp.eq.s32.totalorder %s27, 0
        // Predicated region
        $region98: #{tpu_custom_call.1} parent=76 // pred_check
          %p597 = pneg %p596
        $region99: #{tpu_custom_call.1} parent=76 // pred_check_branch
          %599 = sbr.rel (%p597) target = $region101
        $region100: #{tpu_custom_call.1} parent=76 // pred_region
          %v600 = vlaneseq
          %vm601 = vcmp.ge.s32.totalorder %v600, 0
          %vm602 = vcmp.lt.s32.totalorder %v600, 512
          %vm603 = vmand %vm601, %vm602
          %604 = vst.msk [vmem:[#allocation2] sm:$0xf] %vm603, 0.0
        $region101: #{tpu_custom_call.1} parent=76 // pred_fallthru
          _
        %v605 = vld [vmem:[%s552] sm:$0xf]
        %v606 = vld [vmem:[%s552 + $0x4] sm:$0xf]
        %v607 = vld [vmem:[%s552 + $0x8] sm:$0xf]
        %v608 = vld [vmem:[%s552 + $0xc] sm:$0xf]
        %v609 = vld [vmem:[%s552 + $0x10] sm:$0xf]
        %v610 = vld [vmem:[%s552 + $0x14] sm:$0xf]
        %v611 = vld [vmem:[%s552 + $0x18] sm:$0xf]
        %v612 = vld [vmem:[%s552 + $0x1c] sm:$0xf]
        %v613 = vld [vmem:[%s552 + $0x20] sm:$0xf]
        %v614 = vld [vmem:[%s552 + $0x24] sm:$0xf]
        %v615 = vld [vmem:[%s552 + $0x28] sm:$0xf]
        %v616 = vld [vmem:[%s552 + $0x2c] sm:$0xf]
        %v617 = vld [vmem:[%s552 + $0x30] sm:$0xf]
        %v618 = vld [vmem:[%s552 + $0x34] sm:$0xf]
        %v619 = vld [vmem:[%s552 + $0x38] sm:$0xf]
        %v620 = vld [vmem:[%s552 + $0x3c] sm:$0xf]
        %v621 = vld [vmem:[%s552 + $0x40] sm:$0xf]
        %v622 = vld [vmem:[%s552 + $0x44] sm:$0xf]
        %v623 = vld [vmem:[%s552 + $0x48] sm:$0xf]
        %v624 = vld [vmem:[%s552 + $0x4c] sm:$0xf]
        %v625 = vld [vmem:[%s552 + $0x50] sm:$0xf]
        %v626 = vld [vmem:[%s552 + $0x54] sm:$0xf]
        %v627 = vld [vmem:[%s552 + $0x58] sm:$0xf]
        %v628 = vld [vmem:[%s552 + $0x5c] sm:$0xf]
        %v629 = vld [vmem:[%s552 + $0x60] sm:$0xf]
        %v630 = vld [vmem:[%s552 + $0x64] sm:$0xf]
        %v631 = vld [vmem:[%s552 + $0x68] sm:$0xf]
        %v632 = vld [vmem:[%s552 + $0x6c] sm:$0xf]
        %v633 = vld [vmem:[%s552 + $0x70] sm:$0xf]
        %v634 = vld [vmem:[%s552 + $0x74] sm:$0xf]
        %v635 = vld [vmem:[%s552 + $0x78] sm:$0xf]
        %v636 = vld [vmem:[%s552 + $0x7c] sm:$0xf]
        %v637 = vld [vmem:[%s552 + $0x80] sm:$0xf]
        %v638 = vld [vmem:[%s552 + $0x84] sm:$0xf]
        %v639 = vld [vmem:[%s552 + $0x88] sm:$0xf]
        %v640 = vld [vmem:[%s552 + $0x8c] sm:$0xf]
        %v641 = vld [vmem:[%s552 + $0x90] sm:$0xf]
        %v642 = vld [vmem:[%s552 + $0x94] sm:$0xf]
        %v643 = vld [vmem:[%s552 + $0x98] sm:$0xf]
        %v644 = vld [vmem:[%s552 + $0x9c] sm:$0xf]
        %v645 = vld [vmem:[%s552 + $0xa0] sm:$0xf]
        %v646 = vld [vmem:[%s552 + $0xa4] sm:$0xf]
        %v647 = vld [vmem:[%s552 + $0xa8] sm:$0xf]
        %v648 = vld [vmem:[%s552 + $0xac] sm:$0xf]
        %v649 = vld [vmem:[%s552 + $0xb0] sm:$0xf]
        %v650 = vld [vmem:[%s552 + $0xb4] sm:$0xf]
        %v651 = vld [vmem:[%s552 + $0xb8] sm:$0xf]
        %v652 = vld [vmem:[%s552 + $0xbc] sm:$0xf]
        %v653 = vld [vmem:[%s552 + $0xc0] sm:$0xf]
        %v654 = vld [vmem:[%s552 + $0xc4] sm:$0xf]
        %v655 = vld [vmem:[%s552 + $0xc8] sm:$0xf]
        %v656 = vld [vmem:[%s552 + $0xcc] sm:$0xf]
        %v657 = vld [vmem:[%s552 + $0xd0] sm:$0xf]
        %v658 = vld [vmem:[%s552 + $0xd4] sm:$0xf]
        %v659 = vld [vmem:[%s552 + $0xd8] sm:$0xf]
        %v660 = vld [vmem:[%s552 + $0xdc] sm:$0xf]
        %v661 = vld [vmem:[%s552 + $0xe0] sm:$0xf]
        %v662 = vld [vmem:[%s552 + $0xe4] sm:$0xf]
        %v663 = vld [vmem:[%s552 + $0xe8] sm:$0xf]
        %v664 = vld [vmem:[%s552 + $0xec] sm:$0xf]
        %v665 = vld [vmem:[%s552 + $0xf0] sm:$0xf]
        %v666 = vld [vmem:[%s552 + $0xf4] sm:$0xf]
        %v667 = vld [vmem:[%s552 + $0xf8] sm:$0xf]
        %v668 = vld [vmem:[%s552 + $0xfc] sm:$0xf]
        %v669 = vunpack.c.l.bf16 %v605
        %v670 = vunpack.c.l.bf16 %v606
        %v671 = vunpack.c.l.bf16 %v607
        %v672 = vunpack.c.l.bf16 %v608
        %v673 = vunpack.c.l.bf16 %v609
        %v674 = vunpack.c.l.bf16 %v610
        %v675 = vunpack.c.l.bf16 %v611
        %v676 = vunpack.c.l.bf16 %v612
        %v677 = vunpack.c.l.bf16 %v613
        %v678 = vunpack.c.l.bf16 %v614
        %v679 = vunpack.c.l.bf16 %v615
        %v680 = vunpack.c.l.bf16 %v616
        %v681 = vunpack.c.l.bf16 %v617
        %v682 = vunpack.c.l.bf16 %v618
        %v683 = vunpack.c.l.bf16 %v619
        %v684 = vunpack.c.l.bf16 %v620
        %v685 = vunpack.c.l.bf16 %v621
        %v686 = vunpack.c.l.bf16 %v622
        %v687 = vunpack.c.l.bf16 %v623
        %v688 = vunpack.c.l.bf16 %v624
        %v689 = vunpack.c.l.bf16 %v625
        %v690 = vunpack.c.l.bf16 %v626
        %v691 = vunpack.c.l.bf16 %v627
        %v692 = vunpack.c.l.bf16 %v628
        %v693 = vunpack.c.l.bf16 %v629
        %v694 = vunpack.c.l.bf16 %v630
        %v695 = vunpack.c.l.bf16 %v631
        %v696 = vunpack.c.l.bf16 %v632
        %v697 = vunpack.c.l.bf16 %v633
        %v698 = vunpack.c.l.bf16 %v634
        %v699 = vunpack.c.l.bf16 %v635
        %v700 = vunpack.c.l.bf16 %v636
        %v701 = vunpack.c.l.bf16 %v637
        %v702 = vunpack.c.l.bf16 %v638
        %v703 = vunpack.c.l.bf16 %v639
        %v704 = vunpack.c.l.bf16 %v640
        %v705 = vunpack.c.l.bf16 %v641
        %v706 = vunpack.c.l.bf16 %v642
        %v707 = vunpack.c.l.bf16 %v643
        %v708 = vunpack.c.l.bf16 %v644
        %v709 = vunpack.c.l.bf16 %v645
        %v710 = vunpack.c.l.bf16 %v646
        %v711 = vunpack.c.l.bf16 %v647
        %v712 = vunpack.c.l.bf16 %v648
        %v713 = vunpack.c.l.bf16 %v649
        %v714 = vunpack.c.l.bf16 %v650
        %v715 = vunpack.c.l.bf16 %v651
        %v716 = vunpack.c.l.bf16 %v652
        %v717 = vunpack.c.l.bf16 %v653
        %v718 = vunpack.c.l.bf16 %v654
        %v719 = vunpack.c.l.bf16 %v655
        %v720 = vunpack.c.l.bf16 %v656
        %v721 = vunpack.c.l.bf16 %v657
        %v722 = vunpack.c.l.bf16 %v658
        %v723 = vunpack.c.l.bf16 %v659
        %v724 = vunpack.c.l.bf16 %v660
        %v725 = vunpack.c.l.bf16 %v661
        %v726 = vunpack.c.l.bf16 %v662
        %v727 = vunpack.c.l.bf16 %v663
        %v728 = vunpack.c.l.bf16 %v664
        %v729 = vunpack.c.l.bf16 %v665
        %v730 = vunpack.c.l.bf16 %v666
        %v731 = vunpack.c.l.bf16 %v667
        %v732 = vunpack.c.l.bf16 %v668
        %s733 = smul.u32 %s27, 128
        %s734 = ssub.s32 210, %s733
        %p735 = scmp.lt.s32.totalorder %s734, 128
        %s736 = scalar_select %p735, %s734, 128
        %v737 = vlaneseq
        %v738 = vand.u32 %v737, 127
        %v739 = vstv %s736
        %vm740 = vcmp.lt.s32.totalorder %v738, %v739
        %v741 = vsel %vm740, %v669, 0.0
        %v742 = vsel %vm740, %v670, 0.0
        %v743 = vsel %vm740, %v671, 0.0
        %v744 = vsel %vm740, %v672, 0.0
        %v745 = vsel %vm740, %v673, 0.0
        %v746 = vsel %vm740, %v674, 0.0
        %v747 = vsel %vm740, %v675, 0.0
        %v748 = vsel %vm740, %v676, 0.0
        %v749 = vsel %vm740, %v677, 0.0
        %v750 = vsel %vm740, %v678, 0.0
        %v751 = vsel %vm740, %v679, 0.0
        %v752 = vsel %vm740, %v680, 0.0
        %v753 = vsel %vm740, %v681, 0.0
        %v754 = vsel %vm740, %v682, 0.0
        %v755 = vsel %vm740, %v683, 0.0
        %v756 = vsel %vm740, %v684, 0.0
        %v757 = vsel %vm740, %v685, 0.0
        %v758 = vsel %vm740, %v686, 0.0
        %v759 = vsel %vm740, %v687, 0.0
        %v760 = vsel %vm740, %v688, 0.0
        %v761 = vsel %vm740, %v689, 0.0
        %v762 = vsel %vm740, %v690, 0.0
        %v763 = vsel %vm740, %v691, 0.0
        %v764 = vsel %vm740, %v692, 0.0
        %v765 = vsel %vm740, %v693, 0.0
        %v766 = vsel %vm740, %v694, 0.0
        %v767 = vsel %vm740, %v695, 0.0
        %v768 = vsel %vm740, %v696, 0.0
        %v769 = vsel %vm740, %v697, 0.0
        %v770 = vsel %vm740, %v698, 0.0
        %v771 = vsel %vm740, %v699, 0.0
        %v772 = vsel %vm740, %v700, 0.0
        %v773 = vsel %vm740, %v701, 0.0
        %v774 = vsel %vm740, %v702, 0.0
        %v775 = vsel %vm740, %v703, 0.0
        %v776 = vsel %vm740, %v704, 0.0
        %v777 = vsel %vm740, %v705, 0.0
        %v778 = vsel %vm740, %v706, 0.0
        %v779 = vsel %vm740, %v707, 0.0
        %v780 = vsel %vm740, %v708, 0.0
        %v781 = vsel %vm740, %v709, 0.0
        %v782 = vsel %vm740, %v710, 0.0
        %v783 = vsel %vm740, %v711, 0.0
        %v784 = vsel %vm740, %v712, 0.0
        %v785 = vsel %vm740, %v713, 0.0
        %v786 = vsel %vm740, %v714, 0.0
        %v787 = vsel %vm740, %v715, 0.0
        %v788 = vsel %vm740, %v716, 0.0
        %v789 = vsel %vm740, %v717, 0.0
        %v790 = vsel %vm740, %v718, 0.0
        %v791 = vsel %vm740, %v719, 0.0
        %v792 = vsel %vm740, %v720, 0.0
        %v793 = vsel %vm740, %v721, 0.0
        %v794 = vsel %vm740, %v722, 0.0
        %v795 = vsel %vm740, %v723, 0.0
        %v796 = vsel %vm740, %v724, 0.0
        %v797 = vsel %vm740, %v725, 0.0
        %v798 = vsel %vm740, %v726, 0.0
        %v799 = vsel %vm740, %v727, 0.0
        %v800 = vsel %vm740, %v728, 0.0
        %v801 = vsel %vm740, %v729, 0.0
        %v802 = vsel %vm740, %v730, 0.0
        %v803 = vsel %vm740, %v731, 0.0
        %v804 = vsel %vm740, %v732, 0.0
        %v805 = vld [vmem:[#allocation2] sm:$0xf]
        %806 = vadd.xlane.f32.xlu0 %v741
        %v807 = vpop.xlane.xlu0 %806
        %808 = vadd.xlane.f32.xlu0 %v742
        %v809 = vpop.xlane.xlu0 %808
        %810 = vadd.xlane.f32.xlu0 %v743
        %v811 = vpop.xlane.xlu0 %810
        %812 = vadd.xlane.f32.xlu0 %v744
        %v813 = vpop.xlane.xlu0 %812
        %814 = vadd.xlane.f32.xlu0 %v745
        %v815 = vpop.xlane.xlu0 %814
        %816 = vadd.xlane.f32.xlu0 %v746
        %v817 = vpop.xlane.xlu0 %816
        %818 = vadd.xlane.f32.xlu0 %v747
        %v819 = vpop.xlane.xlu0 %818
        %820 = vadd.xlane.f32.xlu0 %v748
        %v821 = vpop.xlane.xlu0 %820
        %822 = vadd.xlane.f32.xlu0 %v749
        %v823 = vpop.xlane.xlu0 %822
        %824 = vadd.xlane.f32.xlu0 %v750
        %v825 = vpop.xlane.xlu0 %824
        %826 = vadd.xlane.f32.xlu0 %v751
        %v827 = vpop.xlane.xlu0 %826
        %828 = vadd.xlane.f32.xlu0 %v752
        %v829 = vpop.xlane.xlu0 %828
        %830 = vadd.xlane.f32.xlu0 %v753
        %v831 = vpop.xlane.xlu0 %830
        %832 = vadd.xlane.f32.xlu0 %v754
        %v833 = vpop.xlane.xlu0 %832
        %834 = vadd.xlane.f32.xlu0 %v755
        %v835 = vpop.xlane.xlu0 %834
        %836 = vadd.xlane.f32.xlu0 %v756
        %v837 = vpop.xlane.xlu0 %836
        %838 = vadd.xlane.f32.xlu0 %v757
        %v839 = vpop.xlane.xlu0 %838
        %840 = vadd.xlane.f32.xlu0 %v758
        %v841 = vpop.xlane.xlu0 %840
        %842 = vadd.xlane.f32.xlu0 %v759
        %v843 = vpop.xlane.xlu0 %842
        %844 = vadd.xlane.f32.xlu0 %v760
        %v845 = vpop.xlane.xlu0 %844
        %846 = vadd.xlane.f32.xlu0 %v761
        %v847 = vpop.xlane.xlu0 %846
        %848 = vadd.xlane.f32.xlu0 %v762
        %v849 = vpop.xlane.xlu0 %848
        %850 = vadd.xlane.f32.xlu0 %v763
        %v851 = vpop.xlane.xlu0 %850
        %852 = vadd.xlane.f32.xlu0 %v764
        %v853 = vpop.xlane.xlu0 %852
        %854 = vadd.xlane.f32.xlu0 %v765
        %v855 = vpop.xlane.xlu0 %854
        %856 = vadd.xlane.f32.xlu0 %v766
        %v857 = vpop.xlane.xlu0 %856
        %858 = vadd.xlane.f32.xlu0 %v767
        %v859 = vpop.xlane.xlu0 %858
        %860 = vadd.xlane.f32.xlu0 %v768
        %v861 = vpop.xlane.xlu0 %860
        %862 = vadd.xlane.f32.xlu0 %v769
        %v863 = vpop.xlane.xlu0 %862
        %864 = vadd.xlane.f32.xlu0 %v770
        %v865 = vpop.xlane.xlu0 %864
        %866 = vadd.xlane.f32.xlu0 %v771
        %v867 = vpop.xlane.xlu0 %866
        %868 = vadd.xlane.f32.xlu0 %v772
        %v869 = vpop.xlane.xlu0 %868
        %870 = vadd.xlane.f32.xlu0 %v773
        %v871 = vpop.xlane.xlu0 %870
        %872 = vadd.xlane.f32.xlu0 %v774
        %v873 = vpop.xlane.xlu0 %872
        %874 = vadd.xlane.f32.xlu0 %v775
        %v875 = vpop.xlane.xlu0 %874
        %876 = vadd.xlane.f32.xlu0 %v776
        %v877 = vpop.xlane.xlu0 %876
        %878 = vadd.xlane.f32.xlu0 %v777
        %v879 = vpop.xlane.xlu0 %878
        %880 = vadd.xlane.f32.xlu0 %v778
        %v881 = vpop.xlane.xlu0 %880
        %882 = vadd.xlane.f32.xlu0 %v779
        %v883 = vpop.xlane.xlu0 %882
        %884 = vadd.xlane.f32.xlu0 %v780
        %v885 = vpop.xlane.xlu0 %884
        %886 = vadd.xlane.f32.xlu0 %v781
        %v887 = vpop.xlane.xlu0 %886
        %888 = vadd.xlane.f32.xlu0 %v782
        %v889 = vpop.xlane.xlu0 %888
        %890 = vadd.xlane.f32.xlu0 %v783
        %v891 = vpop.xlane.xlu0 %890
        %892 = vadd.xlane.f32.xlu0 %v784
        %v893 = vpop.xlane.xlu0 %892
        %894 = vadd.xlane.f32.xlu0 %v785
        %v895 = vpop.xlane.xlu0 %894
        %896 = vadd.xlane.f32.xlu0 %v786
        %v897 = vpop.xlane.xlu0 %896
        %898 = vadd.xlane.f32.xlu0 %v787
        %v899 = vpop.xlane.xlu0 %898
        %900 = vadd.xlane.f32.xlu0 %v788
        %v901 = vpop.xlane.xlu0 %900
        %902 = vadd.xlane.f32.xlu0 %v789
        %v903 = vpop.xlane.xlu0 %902
        %904 = vadd.xlane.f32.xlu0 %v790
        %v905 = vpop.xlane.xlu0 %904
        %906 = vadd.xlane.f32.xlu0 %v791
        %v907 = vpop.xlane.xlu0 %906
        %908 = vadd.xlane.f32.xlu0 %v792
        %v909 = vpop.xlane.xlu0 %908
        %910 = vadd.xlane.f32.xlu0 %v793
        %v911 = vpop.xlane.xlu0 %910
        %912 = vadd.xlane.f32.xlu0 %v794
        %v913 = vpop.xlane.xlu0 %912
        %914 = vadd.xlane.f32.xlu0 %v795
        %v915 = vpop.xlane.xlu0 %914
        %916 = vadd.xlane.f32.xlu0 %v796
        %v917 = vpop.xlane.xlu0 %916
        %918 = vadd.xlane.f32.xlu0 %v797
        %v919 = vpop.xlane.xlu0 %918
        %920 = vadd.xlane.f32.xlu0 %v798
        %v921 = vpop.xlane.xlu0 %920
        %922 = vadd.xlane.f32.xlu0 %v799
        %v923 = vpop.xlane.xlu0 %922
        %924 = vadd.xlane.f32.xlu0 %v800
        %v925 = vpop.xlane.xlu0 %924
        %926 = vadd.xlane.f32.xlu0 %v801
        %v927 = vpop.xlane.xlu0 %926
        %928 = vadd.xlane.f32.xlu0 %v802
        %v929 = vpop.xlane.xlu0 %928
        %930 = vadd.xlane.f32.xlu0 %v803
        %v931 = vpop.xlane.xlu0 %930
        %932 = vadd.xlane.f32.xlu0 %v804
        %v933 = vpop.xlane.xlu0 %932
        %v998 = vperm.slane %v807, 0
        %v999 = vperm.slane %v807, 1
        %v1000 = vperm.slane %v807, 2
        %v1001 = vperm.slane %v807, 3
        %v1002 = vperm.slane %v807, 4
        %v1003 = vperm.slane %v807, 5
        %v1004 = vperm.slane %v807, 6
        %v1005 = vperm.slane %v807, 7
        %v1006 = vperm.slane %v809, 0
        %v1007 = vperm.slane %v809, 1
        %v1008 = vperm.slane %v809, 2
        %v1009 = vperm.slane %v809, 3
        %v1010 = vperm.slane %v809, 4
        %v1011 = vperm.slane %v809, 5
        %v1012 = vperm.slane %v809, 6
        %v1013 = vperm.slane %v809, 7
        %v1014 = vperm.slane %v811, 0
        %v1015 = vperm.slane %v811, 1
        %v1016 = vperm.slane %v811, 2
        %v1017 = vperm.slane %v811, 3
        %v1018 = vperm.slane %v811, 4
        %v1019 = vperm.slane %v811, 5
        %v1020 = vperm.slane %v811, 6
        %v1021 = vperm.slane %v811, 7
        %v1022 = vperm.slane %v813, 0
        %v1023 = vperm.slane %v813, 1
        %v1024 = vperm.slane %v813, 2
        %v1025 = vperm.slane %v813, 3
        %v1026 = vperm.slane %v813, 4
        %v1027 = vperm.slane %v813, 5
        %v1028 = vperm.slane %v813, 6
        %v1029 = vperm.slane %v813, 7
        %v1030 = vperm.slane %v815, 0
        %v1031 = vperm.slane %v815, 1
        %v1032 = vperm.slane %v815, 2
        %v1033 = vperm.slane %v815, 3
        %v1034 = vperm.slane %v815, 4
        %v1035 = vperm.slane %v815, 5
        %v1036 = vperm.slane %v815, 6
        %v1037 = vperm.slane %v815, 7
        %v1038 = vperm.slane %v817, 0
        %v1039 = vperm.slane %v817, 1
        %v1040 = vperm.slane %v817, 2
        %v1041 = vperm.slane %v817, 3
        %v1042 = vperm.slane %v817, 4
        %v1043 = vperm.slane %v817, 5
        %v1044 = vperm.slane %v817, 6
        %v1045 = vperm.slane %v817, 7
        %v1046 = vperm.slane %v819, 0
        %v1047 = vperm.slane %v819, 1
        %v1048 = vperm.slane %v819, 2
        %v1049 = vperm.slane %v819, 3
        %v1050 = vperm.slane %v819, 4
        %v1051 = vperm.slane %v819, 5
        %v1052 = vperm.slane %v819, 6
        %v1053 = vperm.slane %v819, 7
        %v1054 = vperm.slane %v821, 0
        %v1055 = vperm.slane %v821, 1
        %v1056 = vperm.slane %v821, 2
        %v1057 = vperm.slane %v821, 3
        %v1058 = vperm.slane %v821, 4
        %v1059 = vperm.slane %v821, 5
        %v1060 = vperm.slane %v821, 6
        %v1061 = vperm.slane %v821, 7
        %v1062 = vperm.slane %v823, 0
        %v1063 = vperm.slane %v823, 1
        %v1064 = vperm.slane %v823, 2
        %v1065 = vperm.slane %v823, 3
        %v1066 = vperm.slane %v823, 4
        %v1067 = vperm.slane %v823, 5
        %v1068 = vperm.slane %v823, 6
        %v1069 = vperm.slane %v823, 7
        %v1070 = vperm.slane %v825, 0
        %v1071 = vperm.slane %v825, 1
        %v1072 = vperm.slane %v825, 2
        %v1073 = vperm.slane %v825, 3
        %v1074 = vperm.slane %v825, 4
        %v1075 = vperm.slane %v825, 5
        %v1076 = vperm.slane %v825, 6
        %v1077 = vperm.slane %v825, 7
        %v1078 = vperm.slane %v827, 0
        %v1079 = vperm.slane %v827, 1
        %v1080 = vperm.slane %v827, 2
        %v1081 = vperm.slane %v827, 3
        %v1082 = vperm.slane %v827, 4
        %v1083 = vperm.slane %v827, 5
        %v1084 = vperm.slane %v827, 6
        %v1085 = vperm.slane %v827, 7
        %v1086 = vperm.slane %v829, 0
        %v1087 = vperm.slane %v829, 1
        %v1088 = vperm.slane %v829, 2
        %v1089 = vperm.slane %v829, 3
        %v1090 = vperm.slane %v829, 4
        %v1091 = vperm.slane %v829, 5
        %v1092 = vperm.slane %v829, 6
        %v1093 = vperm.slane %v829, 7
        %v1094 = vperm.slane %v831, 0
        %v1095 = vperm.slane %v831, 1
        %v1096 = vperm.slane %v831, 2
        %v1097 = vperm.slane %v831, 3
        %v1098 = vperm.slane %v831, 4
        %v1099 = vperm.slane %v831, 5
        %v1100 = vperm.slane %v831, 6
        %v1101 = vperm.slane %v831, 7
        %v1102 = vperm.slane %v833, 0
        %v1103 = vperm.slane %v833, 1
        %v1104 = vperm.slane %v833, 2
        %v1105 = vperm.slane %v833, 3
        %v1106 = vperm.slane %v833, 4
        %v1107 = vperm.slane %v833, 5
        %v1108 = vperm.slane %v833, 6
        %v1109 = vperm.slane %v833, 7
        %v1110 = vperm.slane %v835, 0
        %v1111 = vperm.slane %v835, 1
        %v1112 = vperm.slane %v835, 2
        %v1113 = vperm.slane %v835, 3
        %v1114 = vperm.slane %v835, 4
        %v1115 = vperm.slane %v835, 5
        %v1116 = vperm.slane %v835, 6
        %v1117 = vperm.slane %v835, 7
        %v1118 = vperm.slane %v837, 0
        %v1119 = vperm.slane %v837, 1
        %v1120 = vperm.slane %v837, 2
        %v1121 = vperm.slane %v837, 3
        %v1122 = vperm.slane %v837, 4
        %v1123 = vperm.slane %v837, 5
        %v1124 = vperm.slane %v837, 6
        %v1125 = vperm.slane %v837, 7
        %v1126 = vperm.slane %v839, 0
        %v1127 = vperm.slane %v839, 1
        %v1128 = vperm.slane %v839, 2
        %v1129 = vperm.slane %v839, 3
        %v1130 = vperm.slane %v839, 4
        %v1131 = vperm.slane %v839, 5
        %v1132 = vperm.slane %v839, 6
        %v1133 = vperm.slane %v839, 7
        %v1134 = vperm.slane %v841, 0
        %v1135 = vperm.slane %v841, 1
        %v1136 = vperm.slane %v841, 2
        %v1137 = vperm.slane %v841, 3
        %v1138 = vperm.slane %v841, 4
        %v1139 = vperm.slane %v841, 5
        %v1140 = vperm.slane %v841, 6
        %v1141 = vperm.slane %v841, 7
        %v1142 = vperm.slane %v843, 0
        %v1143 = vperm.slane %v843, 1
        %v1144 = vperm.slane %v843, 2
        %v1145 = vperm.slane %v843, 3
        %v1146 = vperm.slane %v843, 4
        %v1147 = vperm.slane %v843, 5
        %v1148 = vperm.slane %v843, 6
        %v1149 = vperm.slane %v843, 7
        %v1150 = vperm.slane %v845, 0
        %v1151 = vperm.slane %v845, 1
        %v1152 = vperm.slane %v845, 2
        %v1153 = vperm.slane %v845, 3
        %v1154 = vperm.slane %v845, 4
        %v1155 = vperm.slane %v845, 5
        %v1156 = vperm.slane %v845, 6
        %v1157 = vperm.slane %v845, 7
        %v1158 = vperm.slane %v847, 0
        %v1159 = vperm.slane %v847, 1
        %v1160 = vperm.slane %v847, 2
        %v1161 = vperm.slane %v847, 3
        %v1162 = vperm.slane %v847, 4
        %v1163 = vperm.slane %v847, 5
        %v1164 = vperm.slane %v847, 6
        %v1165 = vperm.slane %v847, 7
        %v1166 = vperm.slane %v849, 0
        %v1167 = vperm.slane %v849, 1
        %v1168 = vperm.slane %v849, 2
        %v1169 = vperm.slane %v849, 3
        %v1170 = vperm.slane %v849, 4
        %v1171 = vperm.slane %v849, 5
        %v1172 = vperm.slane %v849, 6
        %v1173 = vperm.slane %v849, 7
        %v1174 = vperm.slane %v851, 0
        %v1175 = vperm.slane %v851, 1
        %v1176 = vperm.slane %v851, 2
        %v1177 = vperm.slane %v851, 3
        %v1178 = vperm.slane %v851, 4
        %v1179 = vperm.slane %v851, 5
        %v1180 = vperm.slane %v851, 6
        %v1181 = vperm.slane %v851, 7
        %v1182 = vperm.slane %v853, 0
        %v1183 = vperm.slane %v853, 1
        %v1184 = vperm.slane %v853, 2
        %v1185 = vperm.slane %v853, 3
        %v1186 = vperm.slane %v853, 4
        %v1187 = vperm.slane %v853, 5
        %v1188 = vperm.slane %v853, 6
        %v1189 = vperm.slane %v853, 7
        %v1190 = vperm.slane %v855, 0
        %v1191 = vperm.slane %v855, 1
        %v1192 = vperm.slane %v855, 2
        %v1193 = vperm.slane %v855, 3
        %v1194 = vperm.slane %v855, 4
        %v1195 = vperm.slane %v855, 5
        %v1196 = vperm.slane %v855, 6
        %v1197 = vperm.slane %v855, 7
        %v1198 = vperm.slane %v857, 0
        %v1199 = vperm.slane %v857, 1
        %v1200 = vperm.slane %v857, 2
        %v1201 = vperm.slane %v857, 3
        %v1202 = vperm.slane %v857, 4
        %v1203 = vperm.slane %v857, 5
        %v1204 = vperm.slane %v857, 6
        %v1205 = vperm.slane %v857, 7
        %v1206 = vperm.slane %v859, 0
        %v1207 = vperm.slane %v859, 1
        %v1208 = vperm.slane %v859, 2
        %v1209 = vperm.slane %v859, 3
        %v1210 = vperm.slane %v859, 4
        %v1211 = vperm.slane %v859, 5
        %v1212 = vperm.slane %v859, 6
        %v1213 = vperm.slane %v859, 7
        %v1214 = vperm.slane %v861, 0
        %v1215 = vperm.slane %v861, 1
        %v1216 = vperm.slane %v861, 2
        %v1217 = vperm.slane %v861, 3
        %v1218 = vperm.slane %v861, 4
        %v1219 = vperm.slane %v861, 5
        %v1220 = vperm.slane %v861, 6
        %v1221 = vperm.slane %v861, 7
        %v1222 = vperm.slane %v863, 0
        %v1223 = vperm.slane %v863, 1
        %v1224 = vperm.slane %v863, 2
        %v1225 = vperm.slane %v863, 3
        %v1226 = vperm.slane %v863, 4
        %v1227 = vperm.slane %v863, 5
        %v1228 = vperm.slane %v863, 6
        %v1229 = vperm.slane %v863, 7
        %v1230 = vperm.slane %v865, 0
        %v1231 = vperm.slane %v865, 1
        %v1232 = vperm.slane %v865, 2
        %v1233 = vperm.slane %v865, 3
        %v1234 = vperm.slane %v865, 4
        %v1235 = vperm.slane %v865, 5
        %v1236 = vperm.slane %v865, 6
        %v1237 = vperm.slane %v865, 7
        %v1238 = vperm.slane %v867, 0
        %v1239 = vperm.slane %v867, 1
        %v1240 = vperm.slane %v867, 2
        %v1241 = vperm.slane %v867, 3
        %v1242 = vperm.slane %v867, 4
        %v1243 = vperm.slane %v867, 5
        %v1244 = vperm.slane %v867, 6
        %v1245 = vperm.slane %v867, 7
        %v1246 = vperm.slane %v869, 0
        %v1247 = vperm.slane %v869, 1
        %v1248 = vperm.slane %v869, 2
        %v1249 = vperm.slane %v869, 3
        %v1250 = vperm.slane %v869, 4
        %v1251 = vperm.slane %v869, 5
        %v1252 = vperm.slane %v869, 6
        %v1253 = vperm.slane %v869, 7
        %v1254 = vperm.slane %v871, 0
        %v1255 = vperm.slane %v871, 1
        %v1256 = vperm.slane %v871, 2
        %v1257 = vperm.slane %v871, 3
        %v1258 = vperm.slane %v871, 4
        %v1259 = vperm.slane %v871, 5
        %v1260 = vperm.slane %v871, 6
        %v1261 = vperm.slane %v871, 7
        %v1262 = vperm.slane %v873, 0
        %v1263 = vperm.slane %v873, 1
        %v1264 = vperm.slane %v873, 2
        %v1265 = vperm.slane %v873, 3
        %v1266 = vperm.slane %v873, 4
        %v1267 = vperm.slane %v873, 5
        %v1268 = vperm.slane %v873, 6
        %v1269 = vperm.slane %v873, 7
        %v1270 = vperm.slane %v875, 0
        %v1271 = vperm.slane %v875, 1
        %v1272 = vperm.slane %v875, 2
        %v1273 = vperm.slane %v875, 3
        %v1274 = vperm.slane %v875, 4
        %v1275 = vperm.slane %v875, 5
        %v1276 = vperm.slane %v875, 6
        %v1277 = vperm.slane %v875, 7
        %v1278 = vperm.slane %v877, 0
        %v1279 = vperm.slane %v877, 1
        %v1280 = vperm.slane %v877, 2
        %v1281 = vperm.slane %v877, 3
        %v1282 = vperm.slane %v877, 4
        %v1283 = vperm.slane %v877, 5
        %v1284 = vperm.slane %v877, 6
        %v1285 = vperm.slane %v877, 7
        %v1286 = vperm.slane %v879, 0
        %v1287 = vperm.slane %v879, 1
        %v1288 = vperm.slane %v879, 2
        %v1289 = vperm.slane %v879, 3
        %v1290 = vperm.slane %v879, 4
        %v1291 = vperm.slane %v879, 5
        %v1292 = vperm.slane %v879, 6
        %v1293 = vperm.slane %v879, 7
        %v1294 = vperm.slane %v881, 0
        %v1295 = vperm.slane %v881, 1
        %v1296 = vperm.slane %v881, 2
        %v1297 = vperm.slane %v881, 3
        %v1298 = vperm.slane %v881, 4
        %v1299 = vperm.slane %v881, 5
        %v1300 = vperm.slane %v881, 6
        %v1301 = vperm.slane %v881, 7
        %v1302 = vperm.slane %v883, 0
        %v1303 = vperm.slane %v883, 1
        %v1304 = vperm.slane %v883, 2
        %v1305 = vperm.slane %v883, 3
        %v1306 = vperm.slane %v883, 4
        %v1307 = vperm.slane %v883, 5
        %v1308 = vperm.slane %v883, 6
        %v1309 = vperm.slane %v883, 7
        %v1310 = vperm.slane %v885, 0
        %v1311 = vperm.slane %v885, 1
        %v1312 = vperm.slane %v885, 2
        %v1313 = vperm.slane %v885, 3
        %v1314 = vperm.slane %v885, 4
        %v1315 = vperm.slane %v885, 5
        %v1316 = vperm.slane %v885, 6
        %v1317 = vperm.slane %v885, 7
        %v1318 = vperm.slane %v887, 0
        %v1319 = vperm.slane %v887, 1
        %v1320 = vperm.slane %v887, 2
        %v1321 = vperm.slane %v887, 3
        %v1322 = vperm.slane %v887, 4
        %v1323 = vperm.slane %v887, 5
        %v1324 = vperm.slane %v887, 6
        %v1325 = vperm.slane %v887, 7
        %v1326 = vperm.slane %v889, 0
        %v1327 = vperm.slane %v889, 1
        %v1328 = vperm.slane %v889, 2
        %v1329 = vperm.slane %v889, 3
        %v1330 = vperm.slane %v889, 4
        %v1331 = vperm.slane %v889, 5
        %v1332 = vperm.slane %v889, 6
        %v1333 = vperm.slane %v889, 7
        %v1334 = vperm.slane %v891, 0
        %v1335 = vperm.slane %v891, 1
        %v1336 = vperm.slane %v891, 2
        %v1337 = vperm.slane %v891, 3
        %v1338 = vperm.slane %v891, 4
        %v1339 = vperm.slane %v891, 5
        %v1340 = vperm.slane %v891, 6
        %v1341 = vperm.slane %v891, 7
        %v1342 = vperm.slane %v893, 0
        %v1343 = vperm.slane %v893, 1
        %v1344 = vperm.slane %v893, 2
        %v1345 = vperm.slane %v893, 3
        %v1346 = vperm.slane %v893, 4
        %v1347 = vperm.slane %v893, 5
        %v1348 = vperm.slane %v893, 6
        %v1349 = vperm.slane %v893, 7
        %v1350 = vperm.slane %v895, 0
        %v1351 = vperm.slane %v895, 1
        %v1352 = vperm.slane %v895, 2
        %v1353 = vperm.slane %v895, 3
        %v1354 = vperm.slane %v895, 4
        %v1355 = vperm.slane %v895, 5
        %v1356 = vperm.slane %v895, 6
        %v1357 = vperm.slane %v895, 7
        %v1358 = vperm.slane %v897, 0
        %v1359 = vperm.slane %v897, 1
        %v1360 = vperm.slane %v897, 2
        %v1361 = vperm.slane %v897, 3
        %v1362 = vperm.slane %v897, 4
        %v1363 = vperm.slane %v897, 5
        %v1364 = vperm.slane %v897, 6
        %v1365 = vperm.slane %v897, 7
        %v1366 = vperm.slane %v899, 0
        %v1367 = vperm.slane %v899, 1
        %v1368 = vperm.slane %v899, 2
        %v1369 = vperm.slane %v899, 3
        %v1370 = vperm.slane %v899, 4
        %v1371 = vperm.slane %v899, 5
        %v1372 = vperm.slane %v899, 6
        %v1373 = vperm.slane %v899, 7
        %v1374 = vperm.slane %v901, 0
        %v1375 = vperm.slane %v901, 1
        %v1376 = vperm.slane %v901, 2
        %v1377 = vperm.slane %v901, 3
        %v1378 = vperm.slane %v901, 4
        %v1379 = vperm.slane %v901, 5
        %v1380 = vperm.slane %v901, 6
        %v1381 = vperm.slane %v901, 7
        %v1382 = vperm.slane %v903, 0
        %v1383 = vperm.slane %v903, 1
        %v1384 = vperm.slane %v903, 2
        %v1385 = vperm.slane %v903, 3
        %v1386 = vperm.slane %v903, 4
        %v1387 = vperm.slane %v903, 5
        %v1388 = vperm.slane %v903, 6
        %v1389 = vperm.slane %v903, 7
        %v1390 = vperm.slane %v905, 0
        %v1391 = vperm.slane %v905, 1
        %v1392 = vperm.slane %v905, 2
        %v1393 = vperm.slane %v905, 3
        %v1394 = vperm.slane %v905, 4
        %v1395 = vperm.slane %v905, 5
        %v1396 = vperm.slane %v905, 6
        %v1397 = vperm.slane %v905, 7
        %v1398 = vperm.slane %v907, 0
        %v1399 = vperm.slane %v907, 1
        %v1400 = vperm.slane %v907, 2
        %v1401 = vperm.slane %v907, 3
        %v1402 = vperm.slane %v907, 4
        %v1403 = vperm.slane %v907, 5
        %v1404 = vperm.slane %v907, 6
        %v1405 = vperm.slane %v907, 7
        %v1406 = vperm.slane %v909, 0
        %v1407 = vperm.slane %v909, 1
        %v1408 = vperm.slane %v909, 2
        %v1409 = vperm.slane %v909, 3
        %v1410 = vperm.slane %v909, 4
        %v1411 = vperm.slane %v909, 5
        %v1412 = vperm.slane %v909, 6
        %v1413 = vperm.slane %v909, 7
        %v1414 = vperm.slane %v911, 0
        %v1415 = vperm.slane %v911, 1
        %v1416 = vperm.slane %v911, 2
        %v1417 = vperm.slane %v911, 3
        %v1418 = vperm.slane %v911, 4
        %v1419 = vperm.slane %v911, 5
        %v1420 = vperm.slane %v911, 6
        %v1421 = vperm.slane %v911, 7
        %v1422 = vperm.slane %v913, 0
        %v1423 = vperm.slane %v913, 1
        %v1424 = vperm.slane %v913, 2
        %v1425 = vperm.slane %v913, 3
        %v1426 = vperm.slane %v913, 4
        %v1427 = vperm.slane %v913, 5
        %v1428 = vperm.slane %v913, 6
        %v1429 = vperm.slane %v913, 7
        %v1430 = vperm.slane %v915, 0
        %v1431 = vperm.slane %v915, 1
        %v1432 = vperm.slane %v915, 2
        %v1433 = vperm.slane %v915, 3
        %v1434 = vperm.slane %v915, 4
        %v1435 = vperm.slane %v915, 5
        %v1436 = vperm.slane %v915, 6
        %v1437 = vperm.slane %v915, 7
        %v1438 = vperm.slane %v917, 0
        %v1439 = vperm.slane %v917, 1
        %v1440 = vperm.slane %v917, 2
        %v1441 = vperm.slane %v917, 3
        %v1442 = vperm.slane %v917, 4
        %v1443 = vperm.slane %v917, 5
        %v1444 = vperm.slane %v917, 6
        %v1445 = vperm.slane %v917, 7
        %v1446 = vperm.slane %v919, 0
        %v1447 = vperm.slane %v919, 1
        %v1448 = vperm.slane %v919, 2
        %v1449 = vperm.slane %v919, 3
        %v1450 = vperm.slane %v919, 4
        %v1451 = vperm.slane %v919, 5
        %v1452 = vperm.slane %v919, 6
        %v1453 = vperm.slane %v919, 7
        %v1454 = vperm.slane %v921, 0
        %v1455 = vperm.slane %v921, 1
        %v1456 = vperm.slane %v921, 2
        %v1457 = vperm.slane %v921, 3
        %v1458 = vperm.slane %v921, 4
        %v1459 = vperm.slane %v921, 5
        %v1460 = vperm.slane %v921, 6
        %v1461 = vperm.slane %v921, 7
        %v1462 = vperm.slane %v923, 0
        %v1463 = vperm.slane %v923, 1
        %v1464 = vperm.slane %v923, 2
        %v1465 = vperm.slane %v923, 3
        %v1466 = vperm.slane %v923, 4
        %v1467 = vperm.slane %v923, 5
        %v1468 = vperm.slane %v923, 6
        %v1469 = vperm.slane %v923, 7
        %v1470 = vperm.slane %v925, 0
        %v1471 = vperm.slane %v925, 1
        %v1472 = vperm.slane %v925, 2
        %v1473 = vperm.slane %v925, 3
        %v1474 = vperm.slane %v925, 4
        %v1475 = vperm.slane %v925, 5
        %v1476 = vperm.slane %v925, 6
        %v1477 = vperm.slane %v925, 7
        %v1478 = vperm.slane %v927, 0
        %v1479 = vperm.slane %v927, 1
        %v1480 = vperm.slane %v927, 2
        %v1481 = vperm.slane %v927, 3
        %v1482 = vperm.slane %v927, 4
        %v1483 = vperm.slane %v927, 5
        %v1484 = vperm.slane %v927, 6
        %v1485 = vperm.slane %v927, 7
        %v1486 = vperm.slane %v929, 0
        %v1487 = vperm.slane %v929, 1
        %v1488 = vperm.slane %v929, 2
        %v1489 = vperm.slane %v929, 3
        %v1490 = vperm.slane %v929, 4
        %v1491 = vperm.slane %v929, 5
        %v1492 = vperm.slane %v929, 6
        %v1493 = vperm.slane %v929, 7
        %v1494 = vperm.slane %v931, 0
        %v1495 = vperm.slane %v931, 1
        %v1496 = vperm.slane %v931, 2
        %v1497 = vperm.slane %v931, 3
        %v1498 = vperm.slane %v931, 4
        %v1499 = vperm.slane %v931, 5
        %v1500 = vperm.slane %v931, 6
        %v1501 = vperm.slane %v931, 7
        %v1502 = vperm.slane %v933, 0
        %v1503 = vperm.slane %v933, 1
        %v1504 = vperm.slane %v933, 2
        %v1505 = vperm.slane %v933, 3
        %v1506 = vperm.slane %v933, 4
        %v1507 = vperm.slane %v933, 5
        %v1508 = vperm.slane %v933, 6
        %v1509 = vperm.slane %v933, 7
        %1510 = vst [vmem:[#allocation1] ss:$9 sm:$0xff] %v998
        %s1511 = scalar_lea.vmem [#allocation1], 1
        %1512 = vst [vmem:[%s1511] ss:$9 sm:$0xff] %v999
        %s1513 = scalar_lea.vmem [#allocation1], 2
        %1514 = vst [vmem:[%s1513] ss:$9 sm:$0xff] %v1000
        %s1515 = scalar_lea.vmem [#allocation1], 3
        %1516 = vst [vmem:[%s1515] ss:$9 sm:$0xff] %v1001
        %s1517 = scalar_lea.vmem [#allocation1], 4
        %1518 = vst [vmem:[%s1517] ss:$9 sm:$0xff] %v1002
        %s1519 = scalar_lea.vmem [#allocation1], 5
        %1520 = vst [vmem:[%s1519] ss:$9 sm:$0xff] %v1003
        %s1521 = scalar_lea.vmem [#allocation1], 6
        %1522 = vst [vmem:[%s1521] ss:$9 sm:$0xff] %v1004
        %s1523 = scalar_lea.vmem [#allocation1], 7
        %1524 = vst [vmem:[%s1523] ss:$9 sm:$0xff] %v1005
        %v1525 = vld [vmem:[#allocation1] sm:$0xff]
        %1526 = vst [vmem:[#allocation1] ss:$9 sm:$0xff] %v1006
        %1527 = vst [vmem:[%s1511] ss:$9 sm:$0xff] %v1007
        %1528 = vst [vmem:[%s1513] ss:$9 sm:$0xff] %v1008
        %1529 = vst [vmem:[%s1515] ss:$9 sm:$0xff] %v1009
        %1530 = vst [vmem:[%s1517] ss:$9 sm:$0xff] %v1010
        %1531 = vst [vmem:[%s1519] ss:$9 sm:$0xff] %v1011
        %1532 = vst [vmem:[%s1521] ss:$9 sm:$0xff] %v1012
        %1533 = vst [vmem:[%s1523] ss:$9 sm:$0xff] %v1013
        %v1534 = vld [vmem:[#allocation1] sm:$0xff]
        %1535 = vst [vmem:[#allocation1] ss:$9 sm:$0xff] %v1014
        %1536 = vst [vmem:[%s1511] ss:$9 sm:$0xff] %v1015
        %1537 = vst [vmem:[%s1513] ss:$9 sm:$0xff] %v1016
        %1538 = vst [vmem:[%s1515] ss:$9 sm:$0xff] %v1017
        %1539 = vst [vmem:[%s1517] ss:$9 sm:$0xff] %v1018
        %1540 = vst [vmem:[%s1519] ss:$9 sm:$0xff] %v1019
        %1541 = vst [vmem:[%s1521] ss:$9 sm:$0xff] %v1020
        %1542 = vst [vmem:[%s1523] ss:$9 sm:$0xff] %v1021
        %v1543 = vld [vmem:[#allocation1] sm:$0xff]
        %1544 = vst [vmem:[#allocation1] ss:$9 sm:$0xff] %v1022
        %1545 = vst [vmem:[%s1511] ss:$9 sm:$0xff] %v1023
        %1546 = vst [vmem:[%s1513] ss:$9 sm:$0xff] %v1024
        %1547 = vst [vmem:[%s1515] ss:$9 sm:$0xff] %v1025
        %1548 = vst [vmem:[%s1517] ss:$9 sm:$0xff] %v1026
        %1549 = vst [vmem:[%s1519] ss:$9 sm:$0xff] %v1027
        %1550 = vst [vmem:[%s1521] ss:$9 sm:$0xff] %v1028
        %1551 = vst [vmem:[%s1523] ss:$9 sm:$0xff] %v1029
        %v1552 = vld [vmem:[#allocation1] sm:$0xff]
        %1553 = vst [vmem:[#allocation1] ss:$9 sm:$0xff] %v1030
        %1554 = vst [vmem:[%s1511] ss:$9 sm:$0xff] %v1031
        %1555 = vst [vmem:[%s1513] ss:$9 sm:$0xff] %v1032
        %1556 = vst [vmem:[%s1515] ss:$9 sm:$0xff] %v1033
        %1557 = vst [vmem:[%s1517] ss:$9 sm:$0xff] %v1034
        %1558 = vst [vmem:[%s1519] ss:$9 sm:$0xff] %v1035
        %1559 = vst [vmem:[%s1521] ss:$9 sm:$0xff] %v1036
        %1560 = vst [vmem:[%s1523] ss:$9 sm:$0xff] %v1037
        %v1561 = vld [vmem:[#allocation1] sm:$0xff]
        %1562 = vst [vmem:[#allocation1] ss:$9 sm:$0xff] %v1038
        %1563 = vst [vmem:[%s1511] ss:$9 sm:$0xff] %v1039
        %1564 = vst [vmem:[%s1513] ss:$9 sm:$0xff] %v1040
        %1565 = vst [vmem:[%s1515] ss:$9 sm:$0xff] %v1041
        %1566 = vst [vmem:[%s1517] ss:$9 sm:$0xff] %v1042
        %1567 = vst [vmem:[%s1519] ss:$9 sm:$0xff] %v1043
        %1568 = vst [vmem:[%s1521] ss:$9 sm:$0xff] %v1044
        %1569 = vst [vmem:[%s1523] ss:$9 sm:$0xff] %v1045
        %v1570 = vld [vmem:[#allocation1] sm:$0xff]
        %1571 = vst [vmem:[#allocation1] ss:$9 sm:$0xff] %v1046
        %1572 = vst [vmem:[%s1511] ss:$9 sm:$0xff] %v1047
        %1573 = vst [vmem:[%s1513] ss:$9 sm:$0xff] %v1048
        %1574 = vst [vmem:[%s1515] ss:$9 sm:$0xff] %v1049
        %1575 = vst [vmem:[%s1517] ss:$9 sm:$0xff] %v1050
        %1576 = vst [vmem:[%s1519] ss:$9 sm:$0xff] %v1051
        %1577 = vst [vmem:[%s1521] ss:$9 sm:$0xff] %v1052
        %1578 = vst [vmem:[%s1523] ss:$9 sm:$0xff] %v1053
        %v1579 = vld [vmem:[#allocation1] sm:$0xff]
        %1580 = vst [vmem:[#allocation1] ss:$9 sm:$0xff] %v1054
        %1581 = vst [vmem:[%s1511] ss:$9 sm:$0xff] %v1055
        %1582 = vst [vmem:[%s1513] ss:$9 sm:$0xff] %v1056
        %1583 = vst [vmem:[%s1515] ss:$9 sm:$0xff] %v1057
        %1584 = vst [vmem:[%s1517] ss:$9 sm:$0xff] %v1058
        %1585 = vst [vmem:[%s1519] ss:$9 sm:$0xff] %v1059
        %1586 = vst [vmem:[%s1521] ss:$9 sm:$0xff] %v1060
        %1587 = vst [vmem:[%s1523] ss:$9 sm:$0xff] %v1061
        %v1588 = vld [vmem:[#allocation1] sm:$0xff]
        %1589 = vst [vmem:[#allocation1] ss:$9 sm:$0xff] %v1062
        %1590 = vst [vmem:[%s1511] ss:$9 sm:$0xff] %v1063
        %1591 = vst [vmem:[%s1513] ss:$9 sm:$0xff] %v1064
        %1592 = vst [vmem:[%s1515] ss:$9 sm:$0xff] %v1065
        %1593 = vst [vmem:[%s1517] ss:$9 sm:$0xff] %v1066
        %1594 = vst [vmem:[%s1519] ss:$9 sm:$0xff] %v1067
        %1595 = vst [vmem:[%s1521] ss:$9 sm:$0xff] %v1068
        %1596 = vst [vmem:[%s1523] ss:$9 sm:$0xff] %v1069
        %v1597 = vld [vmem:[#allocation1] sm:$0xff]
        %1598 = vst [vmem:[#allocation1] ss:$9 sm:$0xff] %v1070
        %1599 = vst [vmem:[%s1511] ss:$9 sm:$0xff] %v1071
        %1600 = vst [vmem:[%s1513] ss:$9 sm:$0xff] %v1072
        %1601 = vst [vmem:[%s1515] ss:$9 sm:$0xff] %v1073
        %1602 = vst [vmem:[%s1517] ss:$9 sm:$0xff] %v1074
        %1603 = vst [vmem:[%s1519] ss:$9 sm:$0xff] %v1075
        %1604 = vst [vmem:[%s1521] ss:$9 sm:$0xff] %v1076
        %1605 = vst [vmem:[%s1523] ss:$9 sm:$0xff] %v1077
        %v1606 = vld [vmem:[#allocation1] sm:$0xff]
        %1607 = vst [vmem:[#allocation1] ss:$9 sm:$0xff] %v1078
        %1608 = vst [vmem:[%s1511] ss:$9 sm:$0xff] %v1079
        %1609 = vst [vmem:[%s1513] ss:$9 sm:$0xff] %v1080
        %1610 = vst [vmem:[%s1515] ss:$9 sm:$0xff] %v1081
        %1611 = vst [vmem:[%s1517] ss:$9 sm:$0xff] %v1082
        %1612 = vst [vmem:[%s1519] ss:$9 sm:$0xff] %v1083
        %1613 = vst [vmem:[%s1521] ss:$9 sm:$0xff] %v1084
        %1614 = vst [vmem:[%s1523] ss:$9 sm:$0xff] %v1085
        %v1615 = vld [vmem:[#allocation1] sm:$0xff]
        %1616 = vst [vmem:[#allocation1] ss:$9 sm:$0xff] %v1086
        %1617 = vst [vmem:[%s1511] ss:$9 sm:$0xff] %v1087
        %1618 = vst [vmem:[%s1513] ss:$9 sm:$0xff] %v1088
        %1619 = vst [vmem:[%s1515] ss:$9 sm:$0xff] %v1089
        %1620 = vst [vmem:[%s1517] ss:$9 sm:$0xff] %v1090
        %1621 = vst [vmem:[%s1519] ss:$9 sm:$0xff] %v1091
        %1622 = vst [vmem:[%s1521] ss:$9 sm:$0xff] %v1092
        %1623 = vst [vmem:[%s1523] ss:$9 sm:$0xff] %v1093
        %v1624 = vld [vmem:[#allocation1] sm:$0xff]
        %1625 = vst [vmem:[#allocation1] ss:$9 sm:$0xff] %v1094
        %1626 = vst [vmem:[%s1511] ss:$9 sm:$0xff] %v1095
        %1627 = vst [vmem:[%s1513] ss:$9 sm:$0xff] %v1096
        %1628 = vst [vmem:[%s1515] ss:$9 sm:$0xff] %v1097
        %1629 = vst [vmem:[%s1517] ss:$9 sm:$0xff] %v1098
        %1630 = vst [vmem:[%s1519] ss:$9 sm:$0xff] %v1099
        %1631 = vst [vmem:[%s1521] ss:$9 sm:$0xff] %v1100
        %1632 = vst [vmem:[%s1523] ss:$9 sm:$0xff] %v1101
        %v1633 = vld [vmem:[#allocation1] sm:$0xff]
        %1634 = vst [vmem:[#allocation1] ss:$9 sm:$0xff] %v1102
        %1635 = vst [vmem:[%s1511] ss:$9 sm:$0xff] %v1103
        %1636 = vst [vmem:[%s1513] ss:$9 sm:$0xff] %v1104
        %1637 = vst [vmem:[%s1515] ss:$9 sm:$0xff] %v1105
        %1638 = vst [vmem:[%s1517] ss:$9 sm:$0xff] %v1106
        %1639 = vst [vmem:[%s1519] ss:$9 sm:$0xff] %v1107
        %1640 = vst [vmem:[%s1521] ss:$9 sm:$0xff] %v1108
        %1641 = vst [vmem:[%s1523] ss:$9 sm:$0xff] %v1109
        %v1642 = vld [vmem:[#allocation1] sm:$0xff]
        %1643 = vst [vmem:[#allocation1] ss:$9 sm:$0xff] %v1110
        %1644 = vst [vmem:[%s1511] ss:$9 sm:$0xff] %v1111
        %1645 = vst [vmem:[%s1513] ss:$9 sm:$0xff] %v1112
        %1646 = vst [vmem:[%s1515] ss:$9 sm:$0xff] %v1113
        %1647 = vst [vmem:[%s1517] ss:$9 sm:$0xff] %v1114
        %1648 = vst [vmem:[%s1519] ss:$9 sm:$0xff] %v1115
        %1649 = vst [vmem:[%s1521] ss:$9 sm:$0xff] %v1116
        %1650 = vst [vmem:[%s1523] ss:$9 sm:$0xff] %v1117
        %v1651 = vld [vmem:[#allocation1] sm:$0xff]
        %1652 = vst [vmem:[#allocation1] ss:$9 sm:$0xff] %v1118
        %1653 = vst [vmem:[%s1511] ss:$9 sm:$0xff] %v1119
        %1654 = vst [vmem:[%s1513] ss:$9 sm:$0xff] %v1120
        %1655 = vst [vmem:[%s1515] ss:$9 sm:$0xff] %v1121
        %1656 = vst [vmem:[%s1517] ss:$9 sm:$0xff] %v1122
        %1657 = vst [vmem:[%s1519] ss:$9 sm:$0xff] %v1123
        %1658 = vst [vmem:[%s1521] ss:$9 sm:$0xff] %v1124
        %1659 = vst [vmem:[%s1523] ss:$9 sm:$0xff] %v1125
        %v1660 = vld [vmem:[#allocation1] sm:$0xff]
        %1661 = vst [vmem:[#allocation1] ss:$9 sm:$0xff] %v1126
        %1662 = vst [vmem:[%s1511] ss:$9 sm:$0xff] %v1127
        %1663 = vst [vmem:[%s1513] ss:$9 sm:$0xff] %v1128
        %1664 = vst [vmem:[%s1515] ss:$9 sm:$0xff] %v1129
        %1665 = vst [vmem:[%s1517] ss:$9 sm:$0xff] %v1130
        %1666 = vst [vmem:[%s1519] ss:$9 sm:$0xff] %v1131
        %1667 = vst [vmem:[%s1521] ss:$9 sm:$0xff] %v1132
        %1668 = vst [vmem:[%s1523] ss:$9 sm:$0xff] %v1133
        %v1669 = vld [vmem:[#allocation1] sm:$0xff]
        %1670 = vst [vmem:[#allocation1] ss:$9 sm:$0xff] %v1134
        %1671 = vst [vmem:[%s1511] ss:$9 sm:$0xff] %v1135
        %1672 = vst [vmem:[%s1513] ss:$9 sm:$0xff] %v1136
        %1673 = vst [vmem:[%s1515] ss:$9 sm:$0xff] %v1137
        %1674 = vst [vmem:[%s1517] ss:$9 sm:$0xff] %v1138
        %1675 = vst [vmem:[%s1519] ss:$9 sm:$0xff] %v1139
        %1676 = vst [vmem:[%s1521] ss:$9 sm:$0xff] %v1140
        %1677 = vst [vmem:[%s1523] ss:$9 sm:$0xff] %v1141
        %v1678 = vld [vmem:[#allocation1] sm:$0xff]
        %1679 = vst [vmem:[#allocation1] ss:$9 sm:$0xff] %v1142
        %1680 = vst [vmem:[%s1511] ss:$9 sm:$0xff] %v1143
        %1681 = vst [vmem:[%s1513] ss:$9 sm:$0xff] %v1144
        %1682 = vst [vmem:[%s1515] ss:$9 sm:$0xff] %v1145
        %1683 = vst [vmem:[%s1517] ss:$9 sm:$0xff] %v1146
        %1684 = vst [vmem:[%s1519] ss:$9 sm:$0xff] %v1147
        %1685 = vst [vmem:[%s1521] ss:$9 sm:$0xff] %v1148
        %1686 = vst [vmem:[%s1523] ss:$9 sm:$0xff] %v1149
        %v1687 = vld [vmem:[#allocation1] sm:$0xff]
        %1688 = vst [vmem:[#allocation1] ss:$9 sm:$0xff] %v1150
        %1689 = vst [vmem:[%s1511] ss:$9 sm:$0xff] %v1151
        %1690 = vst [vmem:[%s1513] ss:$9 sm:$0xff] %v1152
        %1691 = vst [vmem:[%s1515] ss:$9 sm:$0xff] %v1153
        %1692 = vst [vmem:[%s1517] ss:$9 sm:$0xff] %v1154
        %1693 = vst [vmem:[%s1519] ss:$9 sm:$0xff] %v1155
        %1694 = vst [vmem:[%s1521] ss:$9 sm:$0xff] %v1156
        %1695 = vst [vmem:[%s1523] ss:$9 sm:$0xff] %v1157
        %v1696 = vld [vmem:[#allocation1] sm:$0xff]
        %1697 = vst [vmem:[#allocation1] ss:$9 sm:$0xff] %v1158
        %1698 = vst [vmem:[%s1511] ss:$9 sm:$0xff] %v1159
        %1699 = vst [vmem:[%s1513] ss:$9 sm:$0xff] %v1160
        %1700 = vst [vmem:[%s1515] ss:$9 sm:$0xff] %v1161
        %1701 = vst [vmem:[%s1517] ss:$9 sm:$0xff] %v1162
        %1702 = vst [vmem:[%s1519] ss:$9 sm:$0xff] %v1163
        %1703 = vst [vmem:[%s1521] ss:$9 sm:$0xff] %v1164
        %1704 = vst [vmem:[%s1523] ss:$9 sm:$0xff] %v1165
        %v1705 = vld [vmem:[#allocation1] sm:$0xff]
        %1706 = vst [vmem:[#allocation1] ss:$9 sm:$0xff] %v1166
        %1707 = vst [vmem:[%s1511] ss:$9 sm:$0xff] %v1167
        %1708 = vst [vmem:[%s1513] ss:$9 sm:$0xff] %v1168
        %1709 = vst [vmem:[%s1515] ss:$9 sm:$0xff] %v1169
        %1710 = vst [vmem:[%s1517] ss:$9 sm:$0xff] %v1170
        %1711 = vst [vmem:[%s1519] ss:$9 sm:$0xff] %v1171
        %1712 = vst [vmem:[%s1521] ss:$9 sm:$0xff] %v1172
        %1713 = vst [vmem:[%s1523] ss:$9 sm:$0xff] %v1173
        %v1714 = vld [vmem:[#allocation1] sm:$0xff]
        %1715 = vst [vmem:[#allocation1] ss:$9 sm:$0xff] %v1174
        %1716 = vst [vmem:[%s1511] ss:$9 sm:$0xff] %v1175
        %1717 = vst [vmem:[%s1513] ss:$9 sm:$0xff] %v1176
        %1718 = vst [vmem:[%s1515] ss:$9 sm:$0xff] %v1177
        %1719 = vst [vmem:[%s1517] ss:$9 sm:$0xff] %v1178
        %1720 = vst [vmem:[%s1519] ss:$9 sm:$0xff] %v1179
        %1721 = vst [vmem:[%s1521] ss:$9 sm:$0xff] %v1180
        %1722 = vst [vmem:[%s1523] ss:$9 sm:$0xff] %v1181
        %v1723 = vld [vmem:[#allocation1] sm:$0xff]
        %1724 = vst [vmem:[#allocation1] ss:$9 sm:$0xff] %v1182
        %1725 = vst [vmem:[%s1511] ss:$9 sm:$0xff] %v1183
        %1726 = vst [vmem:[%s1513] ss:$9 sm:$0xff] %v1184
        %1727 = vst [vmem:[%s1515] ss:$9 sm:$0xff] %v1185
        %1728 = vst [vmem:[%s1517] ss:$9 sm:$0xff] %v1186
        %1729 = vst [vmem:[%s1519] ss:$9 sm:$0xff] %v1187
        %1730 = vst [vmem:[%s1521] ss:$9 sm:$0xff] %v1188
        %1731 = vst [vmem:[%s1523] ss:$9 sm:$0xff] %v1189
        %v1732 = vld [vmem:[#allocation1] sm:$0xff]
        %1733 = vst [vmem:[#allocation1] ss:$9 sm:$0xff] %v1190
        %1734 = vst [vmem:[%s1511] ss:$9 sm:$0xff] %v1191
        %1735 = vst [vmem:[%s1513] ss:$9 sm:$0xff] %v1192
        %1736 = vst [vmem:[%s1515] ss:$9 sm:$0xff] %v1193
        %1737 = vst [vmem:[%s1517] ss:$9 sm:$0xff] %v1194
        %1738 = vst [vmem:[%s1519] ss:$9 sm:$0xff] %v1195
        %1739 = vst [vmem:[%s1521] ss:$9 sm:$0xff] %v1196
        %1740 = vst [vmem:[%s1523] ss:$9 sm:$0xff] %v1197
        %v1741 = vld [vmem:[#allocation1] sm:$0xff]
        %1742 = vst [vmem:[#allocation1] ss:$9 sm:$0xff] %v1198
        %1743 = vst [vmem:[%s1511] ss:$9 sm:$0xff] %v1199
        %1744 = vst [vmem:[%s1513] ss:$9 sm:$0xff] %v1200
        %1745 = vst [vmem:[%s1515] ss:$9 sm:$0xff] %v1201
        %1746 = vst [vmem:[%s1517] ss:$9 sm:$0xff] %v1202
        %1747 = vst [vmem:[%s1519] ss:$9 sm:$0xff] %v1203
        %1748 = vst [vmem:[%s1521] ss:$9 sm:$0xff] %v1204
        %1749 = vst [vmem:[%s1523] ss:$9 sm:$0xff] %v1205
        %v1750 = vld [vmem:[#allocation1] sm:$0xff]
        %1751 = vst [vmem:[#allocation1] ss:$9 sm:$0xff] %v1206
        %1752 = vst [vmem:[%s1511] ss:$9 sm:$0xff] %v1207
        %1753 = vst [vmem:[%s1513] ss:$9 sm:$0xff] %v1208
        %1754 = vst [vmem:[%s1515] ss:$9 sm:$0xff] %v1209
        %1755 = vst [vmem:[%s1517] ss:$9 sm:$0xff] %v1210
        %1756 = vst [vmem:[%s1519] ss:$9 sm:$0xff] %v1211
        %1757 = vst [vmem:[%s1521] ss:$9 sm:$0xff] %v1212
        %1758 = vst [vmem:[%s1523] ss:$9 sm:$0xff] %v1213
        %v1759 = vld [vmem:[#allocation1] sm:$0xff]
        %1760 = vst [vmem:[#allocation1] ss:$9 sm:$0xff] %v1214
        %1761 = vst [vmem:[%s1511] ss:$9 sm:$0xff] %v1215
        %1762 = vst [vmem:[%s1513] ss:$9 sm:$0xff] %v1216
        %1763 = vst [vmem:[%s1515] ss:$9 sm:$0xff] %v1217
        %1764 = vst [vmem:[%s1517] ss:$9 sm:$0xff] %v1218
        %1765 = vst [vmem:[%s1519] ss:$9 sm:$0xff] %v1219
        %1766 = vst [vmem:[%s1521] ss:$9 sm:$0xff] %v1220
        %1767 = vst [vmem:[%s1523] ss:$9 sm:$0xff] %v1221
        %v1768 = vld [vmem:[#allocation1] sm:$0xff]
        %1769 = vst [vmem:[#allocation1] ss:$9 sm:$0xff] %v1222
        %1770 = vst [vmem:[%s1511] ss:$9 sm:$0xff] %v1223
        %1771 = vst [vmem:[%s1513] ss:$9 sm:$0xff] %v1224
        %1772 = vst [vmem:[%s1515] ss:$9 sm:$0xff] %v1225
        %1773 = vst [vmem:[%s1517] ss:$9 sm:$0xff] %v1226
        %1774 = vst [vmem:[%s1519] ss:$9 sm:$0xff] %v1227
        %1775 = vst [vmem:[%s1521] ss:$9 sm:$0xff] %v1228
        %1776 = vst [vmem:[%s1523] ss:$9 sm:$0xff] %v1229
        %v1777 = vld [vmem:[#allocation1] sm:$0xff]
        %1778 = vst [vmem:[#allocation1] ss:$9 sm:$0xff] %v1230
        %1779 = vst [vmem:[%s1511] ss:$9 sm:$0xff] %v1231
        %1780 = vst [vmem:[%s1513] ss:$9 sm:$0xff] %v1232
        %1781 = vst [vmem:[%s1515] ss:$9 sm:$0xff] %v1233
        %1782 = vst [vmem:[%s1517] ss:$9 sm:$0xff] %v1234
        %1783 = vst [vmem:[%s1519] ss:$9 sm:$0xff] %v1235
        %1784 = vst [vmem:[%s1521] ss:$9 sm:$0xff] %v1236
        %1785 = vst [vmem:[%s1523] ss:$9 sm:$0xff] %v1237
        %v1786 = vld [vmem:[#allocation1] sm:$0xff]
        %1787 = vst [vmem:[#allocation1] ss:$9 sm:$0xff] %v1238
        %1788 = vst [vmem:[%s1511] ss:$9 sm:$0xff] %v1239
        %1789 = vst [vmem:[%s1513] ss:$9 sm:$0xff] %v1240
        %1790 = vst [vmem:[%s1515] ss:$9 sm:$0xff] %v1241
        %1791 = vst [vmem:[%s1517] ss:$9 sm:$0xff] %v1242
        %1792 = vst [vmem:[%s1519] ss:$9 sm:$0xff] %v1243
        %1793 = vst [vmem:[%s1521] ss:$9 sm:$0xff] %v1244
        %1794 = vst [vmem:[%s1523] ss:$9 sm:$0xff] %v1245
        %v1795 = vld [vmem:[#allocation1] sm:$0xff]
        %1796 = vst [vmem:[#allocation1] ss:$9 sm:$0xff] %v1246
        %1797 = vst [vmem:[%s1511] ss:$9 sm:$0xff] %v1247
        %1798 = vst [vmem:[%s1513] ss:$9 sm:$0xff] %v1248
        %1799 = vst [vmem:[%s1515] ss:$9 sm:$0xff] %v1249
        %1800 = vst [vmem:[%s1517] ss:$9 sm:$0xff] %v1250
        %1801 = vst [vmem:[%s1519] ss:$9 sm:$0xff] %v1251
        %1802 = vst [vmem:[%s1521] ss:$9 sm:$0xff] %v1252
        %1803 = vst [vmem:[%s1523] ss:$9 sm:$0xff] %v1253
        %v1804 = vld [vmem:[#allocation1] sm:$0xff]
        %1805 = vst [vmem:[#allocation1] ss:$9 sm:$0xff] %v1254
        %1806 = vst [vmem:[%s1511] ss:$9 sm:$0xff] %v1255
        %1807 = vst [vmem:[%s1513] ss:$9 sm:$0xff] %v1256
        %1808 = vst [vmem:[%s1515] ss:$9 sm:$0xff] %v1257
        %1809 = vst [vmem:[%s1517] ss:$9 sm:$0xff] %v1258
        %1810 = vst [vmem:[%s1519] ss:$9 sm:$0xff] %v1259
        %1811 = vst [vmem:[%s1521] ss:$9 sm:$0xff] %v1260
        %1812 = vst [vmem:[%s1523] ss:$9 sm:$0xff] %v1261
        %v1813 = vld [vmem:[#allocation1] sm:$0xff]
        %1814 = vst [vmem:[#allocation1] ss:$9 sm:$0xff] %v1262
        %1815 = vst [vmem:[%s1511] ss:$9 sm:$0xff] %v1263
        %1816 = vst [vmem:[%s1513] ss:$9 sm:$0xff] %v1264
        %1817 = vst [vmem:[%s1515] ss:$9 sm:$0xff] %v1265
        %1818 = vst [vmem:[%s1517] ss:$9 sm:$0xff] %v1266
        %1819 = vst [vmem:[%s1519] ss:$9 sm:$0xff] %v1267
        %1820 = vst [vmem:[%s1521] ss:$9 sm:$0xff] %v1268
        %1821 = vst [vmem:[%s1523] ss:$9 sm:$0xff] %v1269
        %v1822 = vld [vmem:[#allocation1] sm:$0xff]
        %1823 = vst [vmem:[#allocation1] ss:$9 sm:$0xff] %v1270
        %1824 = vst [vmem:[%s1511] ss:$9 sm:$0xff] %v1271
        %1825 = vst [vmem:[%s1513] ss:$9 sm:$0xff] %v1272
        %1826 = vst [vmem:[%s1515] ss:$9 sm:$0xff] %v1273
        %1827 = vst [vmem:[%s1517] ss:$9 sm:$0xff] %v1274
        %1828 = vst [vmem:[%s1519] ss:$9 sm:$0xff] %v1275
        %1829 = vst [vmem:[%s1521] ss:$9 sm:$0xff] %v1276
        %1830 = vst [vmem:[%s1523] ss:$9 sm:$0xff] %v1277
        %v1831 = vld [vmem:[#allocation1] sm:$0xff]
        %1832 = vst [vmem:[#allocation1] ss:$9 sm:$0xff] %v1278
        %1833 = vst [vmem:[%s1511] ss:$9 sm:$0xff] %v1279
        %1834 = vst [vmem:[%s1513] ss:$9 sm:$0xff] %v1280
        %1835 = vst [vmem:[%s1515] ss:$9 sm:$0xff] %v1281
        %1836 = vst [vmem:[%s1517] ss:$9 sm:$0xff] %v1282
        %1837 = vst [vmem:[%s1519] ss:$9 sm:$0xff] %v1283
        %1838 = vst [vmem:[%s1521] ss:$9 sm:$0xff] %v1284
        %1839 = vst [vmem:[%s1523] ss:$9 sm:$0xff] %v1285
        %v1840 = vld [vmem:[#allocation1] sm:$0xff]
        %1841 = vst [vmem:[#allocation1] ss:$9 sm:$0xff] %v1286
        %1842 = vst [vmem:[%s1511] ss:$9 sm:$0xff] %v1287
        %1843 = vst [vmem:[%s1513] ss:$9 sm:$0xff] %v1288
        %1844 = vst [vmem:[%s1515] ss:$9 sm:$0xff] %v1289
        %1845 = vst [vmem:[%s1517] ss:$9 sm:$0xff] %v1290
        %1846 = vst [vmem:[%s1519] ss:$9 sm:$0xff] %v1291
        %1847 = vst [vmem:[%s1521] ss:$9 sm:$0xff] %v1292
        %1848 = vst [vmem:[%s1523] ss:$9 sm:$0xff] %v1293
        %v1849 = vld [vmem:[#allocation1] sm:$0xff]
        %1850 = vst [vmem:[#allocation1] ss:$9 sm:$0xff] %v1294
        %1851 = vst [vmem:[%s1511] ss:$9 sm:$0xff] %v1295
        %1852 = vst [vmem:[%s1513] ss:$9 sm:$0xff] %v1296
        %1853 = vst [vmem:[%s1515] ss:$9 sm:$0xff] %v1297
        %1854 = vst [vmem:[%s1517] ss:$9 sm:$0xff] %v1298
        %1855 = vst [vmem:[%s1519] ss:$9 sm:$0xff] %v1299
        %1856 = vst [vmem:[%s1521] ss:$9 sm:$0xff] %v1300
        %1857 = vst [vmem:[%s1523] ss:$9 sm:$0xff] %v1301
        %v1858 = vld [vmem:[#allocation1] sm:$0xff]
        %1859 = vst [vmem:[#allocation1] ss:$9 sm:$0xff] %v1302
        %1860 = vst [vmem:[%s1511] ss:$9 sm:$0xff] %v1303
        %1861 = vst [vmem:[%s1513] ss:$9 sm:$0xff] %v1304
        %1862 = vst [vmem:[%s1515] ss:$9 sm:$0xff] %v1305
        %1863 = vst [vmem:[%s1517] ss:$9 sm:$0xff] %v1306
        %1864 = vst [vmem:[%s1519] ss:$9 sm:$0xff] %v1307
        %1865 = vst [vmem:[%s1521] ss:$9 sm:$0xff] %v1308
        %1866 = vst [vmem:[%s1523] ss:$9 sm:$0xff] %v1309
        %v1867 = vld [vmem:[#allocation1] sm:$0xff]
        %1868 = vst [vmem:[#allocation1] ss:$9 sm:$0xff] %v1310
        %1869 = vst [vmem:[%s1511] ss:$9 sm:$0xff] %v1311
        %1870 = vst [vmem:[%s1513] ss:$9 sm:$0xff] %v1312
        %1871 = vst [vmem:[%s1515] ss:$9 sm:$0xff] %v1313
        %1872 = vst [vmem:[%s1517] ss:$9 sm:$0xff] %v1314
        %1873 = vst [vmem:[%s1519] ss:$9 sm:$0xff] %v1315
        %1874 = vst [vmem:[%s1521] ss:$9 sm:$0xff] %v1316
        %1875 = vst [vmem:[%s1523] ss:$9 sm:$0xff] %v1317
        %v1876 = vld [vmem:[#allocation1] sm:$0xff]
        %1877 = vst [vmem:[#allocation1] ss:$9 sm:$0xff] %v1318
        %1878 = vst [vmem:[%s1511] ss:$9 sm:$0xff] %v1319
        %1879 = vst [vmem:[%s1513] ss:$9 sm:$0xff] %v1320
        %1880 = vst [vmem:[%s1515] ss:$9 sm:$0xff] %v1321
        %1881 = vst [vmem:[%s1517] ss:$9 sm:$0xff] %v1322
        %1882 = vst [vmem:[%s1519] ss:$9 sm:$0xff] %v1323
        %1883 = vst [vmem:[%s1521] ss:$9 sm:$0xff] %v1324
        %1884 = vst [vmem:[%s1523] ss:$9 sm:$0xff] %v1325
        %v1885 = vld [vmem:[#allocation1] sm:$0xff]
        %1886 = vst [vmem:[#allocation1] ss:$9 sm:$0xff] %v1326
        %1887 = vst [vmem:[%s1511] ss:$9 sm:$0xff] %v1327
        %1888 = vst [vmem:[%s1513] ss:$9 sm:$0xff] %v1328
        %1889 = vst [vmem:[%s1515] ss:$9 sm:$0xff] %v1329
        %1890 = vst [vmem:[%s1517] ss:$9 sm:$0xff] %v1330
        %1891 = vst [vmem:[%s1519] ss:$9 sm:$0xff] %v1331
        %1892 = vst [vmem:[%s1521] ss:$9 sm:$0xff] %v1332
        %1893 = vst [vmem:[%s1523] ss:$9 sm:$0xff] %v1333
        %v1894 = vld [vmem:[#allocation1] sm:$0xff]
        %1895 = vst [vmem:[#allocation1] ss:$9 sm:$0xff] %v1334
        %1896 = vst [vmem:[%s1511] ss:$9 sm:$0xff] %v1335
        %1897 = vst [vmem:[%s1513] ss:$9 sm:$0xff] %v1336
        %1898 = vst [vmem:[%s1515] ss:$9 sm:$0xff] %v1337
        %1899 = vst [vmem:[%s1517] ss:$9 sm:$0xff] %v1338
        %1900 = vst [vmem:[%s1519] ss:$9 sm:$0xff] %v1339
        %1901 = vst [vmem:[%s1521] ss:$9 sm:$0xff] %v1340
        %1902 = vst [vmem:[%s1523] ss:$9 sm:$0xff] %v1341
        %v1903 = vld [vmem:[#allocation1] sm:$0xff]
        %1904 = vst [vmem:[#allocation1] ss:$9 sm:$0xff] %v1342
        %1905 = vst [vmem:[%s1511] ss:$9 sm:$0xff] %v1343
        %1906 = vst [vmem:[%s1513] ss:$9 sm:$0xff] %v1344
        %1907 = vst [vmem:[%s1515] ss:$9 sm:$0xff] %v1345
        %1908 = vst [vmem:[%s1517] ss:$9 sm:$0xff] %v1346
        %1909 = vst [vmem:[%s1519] ss:$9 sm:$0xff] %v1347
        %1910 = vst [vmem:[%s1521] ss:$9 sm:$0xff] %v1348
        %1911 = vst [vmem:[%s1523] ss:$9 sm:$0xff] %v1349
        %v1912 = vld [vmem:[#allocation1] sm:$0xff]
        %1913 = vst [vmem:[#allocation1] ss:$9 sm:$0xff] %v1350
        %1914 = vst [vmem:[%s1511] ss:$9 sm:$0xff] %v1351
        %1915 = vst [vmem:[%s1513] ss:$9 sm:$0xff] %v1352
        %1916 = vst [vmem:[%s1515] ss:$9 sm:$0xff] %v1353
        %1917 = vst [vmem:[%s1517] ss:$9 sm:$0xff] %v1354
        %1918 = vst [vmem:[%s1519] ss:$9 sm:$0xff] %v1355
        %1919 = vst [vmem:[%s1521] ss:$9 sm:$0xff] %v1356
        %1920 = vst [vmem:[%s1523] ss:$9 sm:$0xff] %v1357
        %v1921 = vld [vmem:[#allocation1] sm:$0xff]
        %1922 = vst [vmem:[#allocation1] ss:$9 sm:$0xff] %v1358
        %1923 = vst [vmem:[%s1511] ss:$9 sm:$0xff] %v1359
        %1924 = vst [vmem:[%s1513] ss:$9 sm:$0xff] %v1360
        %1925 = vst [vmem:[%s1515] ss:$9 sm:$0xff] %v1361
        %1926 = vst [vmem:[%s1517] ss:$9 sm:$0xff] %v1362
        %1927 = vst [vmem:[%s1519] ss:$9 sm:$0xff] %v1363
        %1928 = vst [vmem:[%s1521] ss:$9 sm:$0xff] %v1364
        %1929 = vst [vmem:[%s1523] ss:$9 sm:$0xff] %v1365
        %v1930 = vld [vmem:[#allocation1] sm:$0xff]
        %1931 = vst [vmem:[#allocation1] ss:$9 sm:$0xff] %v1366
        %1932 = vst [vmem:[%s1511] ss:$9 sm:$0xff] %v1367
        %1933 = vst [vmem:[%s1513] ss:$9 sm:$0xff] %v1368
        %1934 = vst [vmem:[%s1515] ss:$9 sm:$0xff] %v1369
        %1935 = vst [vmem:[%s1517] ss:$9 sm:$0xff] %v1370
        %1936 = vst [vmem:[%s1519] ss:$9 sm:$0xff] %v1371
        %1937 = vst [vmem:[%s1521] ss:$9 sm:$0xff] %v1372
        %1938 = vst [vmem:[%s1523] ss:$9 sm:$0xff] %v1373
        %v1939 = vld [vmem:[#allocation1] sm:$0xff]
        %1940 = vst [vmem:[#allocation1] ss:$9 sm:$0xff] %v1374
        %1941 = vst [vmem:[%s1511] ss:$9 sm:$0xff] %v1375
        %1942 = vst [vmem:[%s1513] ss:$9 sm:$0xff] %v1376
        %1943 = vst [vmem:[%s1515] ss:$9 sm:$0xff] %v1377
        %1944 = vst [vmem:[%s1517] ss:$9 sm:$0xff] %v1378
        %1945 = vst [vmem:[%s1519] ss:$9 sm:$0xff] %v1379
        %1946 = vst [vmem:[%s1521] ss:$9 sm:$0xff] %v1380
        %1947 = vst [vmem:[%s1523] ss:$9 sm:$0xff] %v1381
        %v1948 = vld [vmem:[#allocation1] sm:$0xff]
        %1949 = vst [vmem:[#allocation1] ss:$9 sm:$0xff] %v1382
        %1950 = vst [vmem:[%s1511] ss:$9 sm:$0xff] %v1383
        %1951 = vst [vmem:[%s1513] ss:$9 sm:$0xff] %v1384
        %1952 = vst [vmem:[%s1515] ss:$9 sm:$0xff] %v1385
        %1953 = vst [vmem:[%s1517] ss:$9 sm:$0xff] %v1386
        %1954 = vst [vmem:[%s1519] ss:$9 sm:$0xff] %v1387
        %1955 = vst [vmem:[%s1521] ss:$9 sm:$0xff] %v1388
        %1956 = vst [vmem:[%s1523] ss:$9 sm:$0xff] %v1389
        %v1957 = vld [vmem:[#allocation1] sm:$0xff]
        %1958 = vst [vmem:[#allocation1] ss:$9 sm:$0xff] %v1390
        %1959 = vst [vmem:[%s1511] ss:$9 sm:$0xff] %v1391
        %1960 = vst [vmem:[%s1513] ss:$9 sm:$0xff] %v1392
        %1961 = vst [vmem:[%s1515] ss:$9 sm:$0xff] %v1393
        %1962 = vst [vmem:[%s1517] ss:$9 sm:$0xff] %v1394
        %1963 = vst [vmem:[%s1519] ss:$9 sm:$0xff] %v1395
        %1964 = vst [vmem:[%s1521] ss:$9 sm:$0xff] %v1396
        %1965 = vst [vmem:[%s1523] ss:$9 sm:$0xff] %v1397
        %v1966 = vld [vmem:[#allocation1] sm:$0xff]
        %1967 = vst [vmem:[#allocation1] ss:$9 sm:$0xff] %v1398
        %1968 = vst [vmem:[%s1511] ss:$9 sm:$0xff] %v1399
        %1969 = vst [vmem:[%s1513] ss:$9 sm:$0xff] %v1400
        %1970 = vst [vmem:[%s1515] ss:$9 sm:$0xff] %v1401
        %1971 = vst [vmem:[%s1517] ss:$9 sm:$0xff] %v1402
        %1972 = vst [vmem:[%s1519] ss:$9 sm:$0xff] %v1403
        %1973 = vst [vmem:[%s1521] ss:$9 sm:$0xff] %v1404
        %1974 = vst [vmem:[%s1523] ss:$9 sm:$0xff] %v1405
        %v1975 = vld [vmem:[#allocation1] sm:$0xff]
        %1976 = vst [vmem:[#allocation1] ss:$9 sm:$0xff] %v1406
        %1977 = vst [vmem:[%s1511] ss:$9 sm:$0xff] %v1407
        %1978 = vst [vmem:[%s1513] ss:$9 sm:$0xff] %v1408
        %1979 = vst [vmem:[%s1515] ss:$9 sm:$0xff] %v1409
        %1980 = vst [vmem:[%s1517] ss:$9 sm:$0xff] %v1410
        %1981 = vst [vmem:[%s1519] ss:$9 sm:$0xff] %v1411
        %1982 = vst [vmem:[%s1521] ss:$9 sm:$0xff] %v1412
        %1983 = vst [vmem:[%s1523] ss:$9 sm:$0xff] %v1413
        %v1984 = vld [vmem:[#allocation1] sm:$0xff]
        %1985 = vst [vmem:[#allocation1] ss:$9 sm:$0xff] %v1414
        %1986 = vst [vmem:[%s1511] ss:$9 sm:$0xff] %v1415
        %1987 = vst [vmem:[%s1513] ss:$9 sm:$0xff] %v1416
        %1988 = vst [vmem:[%s1515] ss:$9 sm:$0xff] %v1417
        %1989 = vst [vmem:[%s1517] ss:$9 sm:$0xff] %v1418
        %1990 = vst [vmem:[%s1519] ss:$9 sm:$0xff] %v1419
        %1991 = vst [vmem:[%s1521] ss:$9 sm:$0xff] %v1420
        %1992 = vst [vmem:[%s1523] ss:$9 sm:$0xff] %v1421
        %v1993 = vld [vmem:[#allocation1] sm:$0xff]
        %1994 = vst [vmem:[#allocation1] ss:$9 sm:$0xff] %v1422
        %1995 = vst [vmem:[%s1511] ss:$9 sm:$0xff] %v1423
        %1996 = vst [vmem:[%s1513] ss:$9 sm:$0xff] %v1424
        %1997 = vst [vmem:[%s1515] ss:$9 sm:$0xff] %v1425
        %1998 = vst [vmem:[%s1517] ss:$9 sm:$0xff] %v1426
        %1999 = vst [vmem:[%s1519] ss:$9 sm:$0xff] %v1427
        %2000 = vst [vmem:[%s1521] ss:$9 sm:$0xff] %v1428
        %2001 = vst [vmem:[%s1523] ss:$9 sm:$0xff] %v1429
        %v2002 = vld [vmem:[#allocation1] sm:$0xff]
        %2003 = vst [vmem:[#allocation1] ss:$9 sm:$0xff] %v1430
        %2004 = vst [vmem:[%s1511] ss:$9 sm:$0xff] %v1431
        %2005 = vst [vmem:[%s1513] ss:$9 sm:$0xff] %v1432
        %2006 = vst [vmem:[%s1515] ss:$9 sm:$0xff] %v1433
        %2007 = vst [vmem:[%s1517] ss:$9 sm:$0xff] %v1434
        %2008 = vst [vmem:[%s1519] ss:$9 sm:$0xff] %v1435
        %2009 = vst [vmem:[%s1521] ss:$9 sm:$0xff] %v1436
        %2010 = vst [vmem:[%s1523] ss:$9 sm:$0xff] %v1437
        %v2011 = vld [vmem:[#allocation1] sm:$0xff]
        %2012 = vst [vmem:[#allocation1] ss:$9 sm:$0xff] %v1438
        %2013 = vst [vmem:[%s1511] ss:$9 sm:$0xff] %v1439
        %2014 = vst [vmem:[%s1513] ss:$9 sm:$0xff] %v1440
        %2015 = vst [vmem:[%s1515] ss:$9 sm:$0xff] %v1441
        %2016 = vst [vmem:[%s1517] ss:$9 sm:$0xff] %v1442
        %2017 = vst [vmem:[%s1519] ss:$9 sm:$0xff] %v1443
        %2018 = vst [vmem:[%s1521] ss:$9 sm:$0xff] %v1444
        %2019 = vst [vmem:[%s1523] ss:$9 sm:$0xff] %v1445
        %v2020 = vld [vmem:[#allocation1] sm:$0xff]
        %2021 = vst [vmem:[#allocation1] ss:$9 sm:$0xff] %v1446
        %2022 = vst [vmem:[%s1511] ss:$9 sm:$0xff] %v1447
        %2023 = vst [vmem:[%s1513] ss:$9 sm:$0xff] %v1448
        %2024 = vst [vmem:[%s1515] ss:$9 sm:$0xff] %v1449
        %2025 = vst [vmem:[%s1517] ss:$9 sm:$0xff] %v1450
        %2026 = vst [vmem:[%s1519] ss:$9 sm:$0xff] %v1451
        %2027 = vst [vmem:[%s1521] ss:$9 sm:$0xff] %v1452
        %2028 = vst [vmem:[%s1523] ss:$9 sm:$0xff] %v1453
        %v2029 = vld [vmem:[#allocation1] sm:$0xff]
        %2030 = vst [vmem:[#allocation1] ss:$9 sm:$0xff] %v1454
        %2031 = vst [vmem:[%s1511] ss:$9 sm:$0xff] %v1455
        %2032 = vst [vmem:[%s1513] ss:$9 sm:$0xff] %v1456
        %2033 = vst [vmem:[%s1515] ss:$9 sm:$0xff] %v1457
        %2034 = vst [vmem:[%s1517] ss:$9 sm:$0xff] %v1458
        %2035 = vst [vmem:[%s1519] ss:$9 sm:$0xff] %v1459
        %2036 = vst [vmem:[%s1521] ss:$9 sm:$0xff] %v1460
        %2037 = vst [vmem:[%s1523] ss:$9 sm:$0xff] %v1461
        %v2038 = vld [vmem:[#allocation1] sm:$0xff]
        %2039 = vst [vmem:[#allocation1] ss:$9 sm:$0xff] %v1462
        %2040 = vst [vmem:[%s1511] ss:$9 sm:$0xff] %v1463
        %2041 = vst [vmem:[%s1513] ss:$9 sm:$0xff] %v1464
        %2042 = vst [vmem:[%s1515] ss:$9 sm:$0xff] %v1465
        %2043 = vst [vmem:[%s1517] ss:$9 sm:$0xff] %v1466
        %2044 = vst [vmem:[%s1519] ss:$9 sm:$0xff] %v1467
        %2045 = vst [vmem:[%s1521] ss:$9 sm:$0xff] %v1468
        %2046 = vst [vmem:[%s1523] ss:$9 sm:$0xff] %v1469
        %v2047 = vld [vmem:[#allocation1] sm:$0xff]
        %2048 = vst [vmem:[#allocation1] ss:$9 sm:$0xff] %v1470
        %2049 = vst [vmem:[%s1511] ss:$9 sm:$0xff] %v1471
        %2050 = vst [vmem:[%s1513] ss:$9 sm:$0xff] %v1472
        %2051 = vst [vmem:[%s1515] ss:$9 sm:$0xff] %v1473
        %2052 = vst [vmem:[%s1517] ss:$9 sm:$0xff] %v1474
        %2053 = vst [vmem:[%s1519] ss:$9 sm:$0xff] %v1475
        %2054 = vst [vmem:[%s1521] ss:$9 sm:$0xff] %v1476
        %2055 = vst [vmem:[%s1523] ss:$9 sm:$0xff] %v1477
        %v2056 = vld [vmem:[#allocation1] sm:$0xff]
        %2057 = vst [vmem:[#allocation1] ss:$9 sm:$0xff] %v1478
        %2058 = vst [vmem:[%s1511] ss:$9 sm:$0xff] %v1479
        %2059 = vst [vmem:[%s1513] ss:$9 sm:$0xff] %v1480
        %2060 = vst [vmem:[%s1515] ss:$9 sm:$0xff] %v1481
        %2061 = vst [vmem:[%s1517] ss:$9 sm:$0xff] %v1482
        %2062 = vst [vmem:[%s1519] ss:$9 sm:$0xff] %v1483
        %2063 = vst [vmem:[%s1521] ss:$9 sm:$0xff] %v1484
        %2064 = vst [vmem:[%s1523] ss:$9 sm:$0xff] %v1485
        %v2065 = vld [vmem:[#allocation1] sm:$0xff]
        %2066 = vst [vmem:[#allocation1] ss:$9 sm:$0xff] %v1486
        %2067 = vst [vmem:[%s1511] ss:$9 sm:$0xff] %v1487
        %2068 = vst [vmem:[%s1513] ss:$9 sm:$0xff] %v1488
        %2069 = vst [vmem:[%s1515] ss:$9 sm:$0xff] %v1489
        %2070 = vst [vmem:[%s1517] ss:$9 sm:$0xff] %v1490
        %2071 = vst [vmem:[%s1519] ss:$9 sm:$0xff] %v1491
        %2072 = vst [vmem:[%s1521] ss:$9 sm:$0xff] %v1492
        %2073 = vst [vmem:[%s1523] ss:$9 sm:$0xff] %v1493
        %v2074 = vld [vmem:[#allocation1] sm:$0xff]
        %2075 = vst [vmem:[#allocation1] ss:$9 sm:$0xff] %v1494
        %2076 = vst [vmem:[%s1511] ss:$9 sm:$0xff] %v1495
        %2077 = vst [vmem:[%s1513] ss:$9 sm:$0xff] %v1496
        %2078 = vst [vmem:[%s1515] ss:$9 sm:$0xff] %v1497
        %2079 = vst [vmem:[%s1517] ss:$9 sm:$0xff] %v1498
        %2080 = vst [vmem:[%s1519] ss:$9 sm:$0xff] %v1499
        %2081 = vst [vmem:[%s1521] ss:$9 sm:$0xff] %v1500
        %2082 = vst [vmem:[%s1523] ss:$9 sm:$0xff] %v1501
        %v2083 = vld [vmem:[#allocation1] sm:$0xff]
        %2084 = vst [vmem:[#allocation1] ss:$9 sm:$0xff] %v1502
        %2085 = vst [vmem:[%s1511] ss:$9 sm:$0xff] %v1503
        %2086 = vst [vmem:[%s1513] ss:$9 sm:$0xff] %v1504
        %2087 = vst [vmem:[%s1515] ss:$9 sm:$0xff] %v1505
        %2088 = vst [vmem:[%s1517] ss:$9 sm:$0xff] %v1506
        %2089 = vst [vmem:[%s1519] ss:$9 sm:$0xff] %v1507
        %2090 = vst [vmem:[%s1521] ss:$9 sm:$0xff] %v1508
        %2091 = vst [vmem:[%s1523] ss:$9 sm:$0xff] %v1509
        %v2092 = vld [vmem:[#allocation1] sm:$0xff]
        %2093 = vset.pattern.permute.xlu0 0
        %2094 = vperm.xlu0 %2093, %v1525
        %v2095 = vpop.permute.xlu0 %2094
        %2096 = vset.pattern.permute.xlu0 0
        %2097 = vperm.xlu0 %2096, %v1534
        %v2098 = vpop.permute.xlu0 %2097
        %2099 = vset.pattern.permute.xlu0 0
        %2100 = vperm.xlu0 %2099, %v1543
        %v2101 = vpop.permute.xlu0 %2100
        %2102 = vset.pattern.permute.xlu0 0
        %2103 = vperm.xlu0 %2102, %v1552
        %v2104 = vpop.permute.xlu0 %2103
        %2105 = vset.pattern.permute.xlu0 0
        %2106 = vperm.xlu0 %2105, %v1561
        %v2107 = vpop.permute.xlu0 %2106
        %2108 = vset.pattern.permute.xlu0 0
        %2109 = vperm.xlu0 %2108, %v1570
        %v2110 = vpop.permute.xlu0 %2109
        %2111 = vset.pattern.permute.xlu0 0
        %2112 = vperm.xlu0 %2111, %v1579
        %v2113 = vpop.permute.xlu0 %2112
        %2114 = vset.pattern.permute.xlu0 0
        %2115 = vperm.xlu0 %2114, %v1588
        %v2116 = vpop.permute.xlu0 %2115
        %2117 = vset.pattern.permute.xlu0 0
        %2118 = vperm.xlu0 %2117, %v1597
        %v2119 = vpop.permute.xlu0 %2118
        %2120 = vset.pattern.permute.xlu0 0
        %2121 = vperm.xlu0 %2120, %v1606
        %v2122 = vpop.permute.xlu0 %2121
        %2123 = vset.pattern.permute.xlu0 0
        %2124 = vperm.xlu0 %2123, %v1615
        %v2125 = vpop.permute.xlu0 %2124
        %2126 = vset.pattern.permute.xlu0 0
        %2127 = vperm.xlu0 %2126, %v1624
        %v2128 = vpop.permute.xlu0 %2127
        %2129 = vset.pattern.permute.xlu0 0
        %2130 = vperm.xlu0 %2129, %v1633
        %v2131 = vpop.permute.xlu0 %2130
        %2132 = vset.pattern.permute.xlu0 0
        %2133 = vperm.xlu0 %2132, %v1642
        %v2134 = vpop.permute.xlu0 %2133
        %2135 = vset.pattern.permute.xlu0 0
        %2136 = vperm.xlu0 %2135, %v1651
        %v2137 = vpop.permute.xlu0 %2136
        %2138 = vset.pattern.permute.xlu0 0
        %2139 = vperm.xlu0 %2138, %v1660
        %v2140 = vpop.permute.xlu0 %2139
        %2141 = vset.pattern.permute.xlu0 0
        %2142 = vperm.xlu0 %2141, %v1669
        %v2143 = vpop.permute.xlu0 %2142
        %2144 = vset.pattern.permute.xlu0 0
        %2145 = vperm.xlu0 %2144, %v1678
        %v2146 = vpop.permute.xlu0 %2145
        %2147 = vset.pattern.permute.xlu0 0
        %2148 = vperm.xlu0 %2147, %v1687
        %v2149 = vpop.permute.xlu0 %2148
        %2150 = vset.pattern.permute.xlu0 0
        %2151 = vperm.xlu0 %2150, %v1696
        %v2152 = vpop.permute.xlu0 %2151
        %2153 = vset.pattern.permute.xlu0 0
        %2154 = vperm.xlu0 %2153, %v1705
        %v2155 = vpop.permute.xlu0 %2154
        %2156 = vset.pattern.permute.xlu0 0
        %2157 = vperm.xlu0 %2156, %v1714
        %v2158 = vpop.permute.xlu0 %2157
        %2159 = vset.pattern.permute.xlu0 0
        %2160 = vperm.xlu0 %2159, %v1723
        %v2161 = vpop.permute.xlu0 %2160
        %2162 = vset.pattern.permute.xlu0 0
        %2163 = vperm.xlu0 %2162, %v1732
        %v2164 = vpop.permute.xlu0 %2163
        %2165 = vset.pattern.permute.xlu0 0
        %2166 = vperm.xlu0 %2165, %v1741
        %v2167 = vpop.permute.xlu0 %2166
        %2168 = vset.pattern.permute.xlu0 0
        %2169 = vperm.xlu0 %2168, %v1750
        %v2170 = vpop.permute.xlu0 %2169
        %2171 = vset.pattern.permute.xlu0 0
        %2172 = vperm.xlu0 %2171, %v1759
        %v2173 = vpop.permute.xlu0 %2172
        %2174 = vset.pattern.permute.xlu0 0
        %2175 = vperm.xlu0 %2174, %v1768
        %v2176 = vpop.permute.xlu0 %2175
        %2177 = vset.pattern.permute.xlu0 0
        %2178 = vperm.xlu0 %2177, %v1777
        %v2179 = vpop.permute.xlu0 %2178
        %2180 = vset.pattern.permute.xlu0 0
        %2181 = vperm.xlu0 %2180, %v1786
        %v2182 = vpop.permute.xlu0 %2181
        %2183 = vset.pattern.permute.xlu0 0
        %2184 = vperm.xlu0 %2183, %v1795
        %v2185 = vpop.permute.xlu0 %2184
        %2186 = vset.pattern.permute.xlu0 0
        %2187 = vperm.xlu0 %2186, %v1804
        %v2188 = vpop.permute.xlu0 %2187
        %2189 = vset.pattern.permute.xlu0 0
        %2190 = vperm.xlu0 %2189, %v1813
        %v2191 = vpop.permute.xlu0 %2190
        %2192 = vset.pattern.permute.xlu0 0
        %2193 = vperm.xlu0 %2192, %v1822
        %v2194 = vpop.permute.xlu0 %2193
        %2195 = vset.pattern.permute.xlu0 0
        %2196 = vperm.xlu0 %2195, %v1831
        %v2197 = vpop.permute.xlu0 %2196
        %2198 = vset.pattern.permute.xlu0 0
        %2199 = vperm.xlu0 %2198, %v1840
        %v2200 = vpop.permute.xlu0 %2199
        %2201 = vset.pattern.permute.xlu0 0
        %2202 = vperm.xlu0 %2201, %v1849
        %v2203 = vpop.permute.xlu0 %2202
        %2204 = vset.pattern.permute.xlu0 0
        %2205 = vperm.xlu0 %2204, %v1858
        %v2206 = vpop.permute.xlu0 %2205
        %2207 = vset.pattern.permute.xlu0 0
        %2208 = vperm.xlu0 %2207, %v1867
        %v2209 = vpop.permute.xlu0 %2208
        %2210 = vset.pattern.permute.xlu0 0
        %2211 = vperm.xlu0 %2210, %v1876
        %v2212 = vpop.permute.xlu0 %2211
        %2213 = vset.pattern.permute.xlu0 0
        %2214 = vperm.xlu0 %2213, %v1885
        %v2215 = vpop.permute.xlu0 %2214
        %2216 = vset.pattern.permute.xlu0 0
        %2217 = vperm.xlu0 %2216, %v1894
        %v2218 = vpop.permute.xlu0 %2217
        %2219 = vset.pattern.permute.xlu0 0
        %2220 = vperm.xlu0 %2219, %v1903
        %v2221 = vpop.permute.xlu0 %2220
        %2222 = vset.pattern.permute.xlu0 0
        %2223 = vperm.xlu0 %2222, %v1912
        %v2224 = vpop.permute.xlu0 %2223
        %2225 = vset.pattern.permute.xlu0 0
        %2226 = vperm.xlu0 %2225, %v1921
        %v2227 = vpop.permute.xlu0 %2226
        %2228 = vset.pattern.permute.xlu0 0
        %2229 = vperm.xlu0 %2228, %v1930
        %v2230 = vpop.permute.xlu0 %2229
        %2231 = vset.pattern.permute.xlu0 0
        %2232 = vperm.xlu0 %2231, %v1939
        %v2233 = vpop.permute.xlu0 %2232
        %2234 = vset.pattern.permute.xlu0 0
        %2235 = vperm.xlu0 %2234, %v1948
        %v2236 = vpop.permute.xlu0 %2235
        %2237 = vset.pattern.permute.xlu0 0
        %2238 = vperm.xlu0 %2237, %v1957
        %v2239 = vpop.permute.xlu0 %2238
        %2240 = vset.pattern.permute.xlu0 0
        %2241 = vperm.xlu0 %2240, %v1966
        %v2242 = vpop.permute.xlu0 %2241
        %2243 = vset.pattern.permute.xlu0 0
        %2244 = vperm.xlu0 %2243, %v1975
        %v2245 = vpop.permute.xlu0 %2244
        %2246 = vset.pattern.permute.xlu0 0
        %2247 = vperm.xlu0 %2246, %v1984
        %v2248 = vpop.permute.xlu0 %2247
        %2249 = vset.pattern.permute.xlu0 0
        %2250 = vperm.xlu0 %2249, %v1993
        %v2251 = vpop.permute.xlu0 %2250
        %2252 = vset.pattern.permute.xlu0 0
        %2253 = vperm.xlu0 %2252, %v2002
        %v2254 = vpop.permute.xlu0 %2253
        %2255 = vset.pattern.permute.xlu0 0
        %2256 = vperm.xlu0 %2255, %v2011
        %v2257 = vpop.permute.xlu0 %2256
        %2258 = vset.pattern.permute.xlu0 0
        %2259 = vperm.xlu0 %2258, %v2020
        %v2260 = vpop.permute.xlu0 %2259
        %2261 = vset.pattern.permute.xlu0 0
        %2262 = vperm.xlu0 %2261, %v2029
        %v2263 = vpop.permute.xlu0 %2262
        %2264 = vset.pattern.permute.xlu0 0
        %2265 = vperm.xlu0 %2264, %v2038
        %v2266 = vpop.permute.xlu0 %2265
        %2267 = vset.pattern.permute.xlu0 0
        %2268 = vperm.xlu0 %2267, %v2047
        %v2269 = vpop.permute.xlu0 %2268
        %2270 = vset.pattern.permute.xlu0 0
        %2271 = vperm.xlu0 %2270, %v2056
        %v2272 = vpop.permute.xlu0 %2271
        %2273 = vset.pattern.permute.xlu0 0
        %2274 = vperm.xlu0 %2273, %v2065
        %v2275 = vpop.permute.xlu0 %2274
        %2276 = vset.pattern.permute.xlu0 0
        %2277 = vperm.xlu0 %2276, %v2074
        %v2278 = vpop.permute.xlu0 %2277
        %2279 = vset.pattern.permute.xlu0 0
        %2280 = vperm.xlu0 %2279, %v2083
        %v2281 = vpop.permute.xlu0 %2280
        %2282 = vset.pattern.permute.xlu0 0
        %2283 = vperm.xlu0 %2282, %v2092
        %v2284 = vpop.permute.xlu0 %2283
        %v2285 = vperm.slane %v2095, %v738
        %v2286 = vadd.s32 %v738, 4294967288
        %v2287 = vperm.slane %v2098, %v2286
        %vm2288 = vcmask 130112
        %v2289 = vsel %vm2288, %v2287, %v2285
        %v2290 = vadd.s32 %v738, 4294967280
        %v2291 = vperm.slane %v2101, %v2290
        %vm2292 = vcmask 195712
        %v2293 = vsel %vm2292, %v2291, %v2289
        %v2294 = vadd.s32 %v738, 4294967272
        %v2295 = vperm.slane %v2104, %v2294
        %vm2296 = vcmask 261312
        %v2297 = vsel %vm2296, %v2295, %v2293
        %v2298 = vadd.s32 %v738, 4294967264
        %v2299 = vperm.slane %v2107, %v2298
        %vm2300 = vcmask 326912
        %v2301 = vsel %vm2300, %v2299, %v2297
        %v2302 = vadd.s32 %v738, 4294967256
        %v2303 = vperm.slane %v2110, %v2302
        %vm2304 = vcmask 392512
        %v2305 = vsel %vm2304, %v2303, %v2301
        %v2306 = vadd.s32 %v738, 4294967248
        %v2307 = vperm.slane %v2113, %v2306
        %vm2308 = vcmask 458112
        %v2309 = vsel %vm2308, %v2307, %v2305
        %v2310 = vadd.s32 %v738, 4294967240
        %v2311 = vperm.slane %v2116, %v2310
        %vm2312 = vcmask 523712
        %v2313 = vsel %vm2312, %v2311, %v2309
        %v2314 = vadd.s32 %v738, 4294967232
        %v2315 = vperm.slane %v2119, %v2314
        %vm2316 = vcmask 589312
        %v2317 = vsel %vm2316, %v2315, %v2313
        %v2318 = vadd.s32 %v738, 4294967224
        %v2319 = vperm.slane %v2122, %v2318
        %vm2320 = vcmask 654912
        %v2321 = vsel %vm2320, %v2319, %v2317
        %v2322 = vadd.s32 %v738, 4294967216
        %v2323 = vperm.slane %v2125, %v2322
        %vm2324 = vcmask 720512
        %v2325 = vsel %vm2324, %v2323, %v2321
        %v2326 = vadd.s32 %v738, 4294967208
        %v2327 = vperm.slane %v2128, %v2326
        %vm2328 = vcmask 786112
        %v2329 = vsel %vm2328, %v2327, %v2325
        %v2330 = vadd.s32 %v738, 4294967200
        %v2331 = vperm.slane %v2131, %v2330
        %vm2332 = vcmask 851712
        %v2333 = vsel %vm2332, %v2331, %v2329
        %v2334 = vadd.s32 %v738, 4294967192
        %v2335 = vperm.slane %v2134, %v2334
        %vm2336 = vcmask 917312
        %v2337 = vsel %vm2336, %v2335, %v2333
        %v2338 = vadd.s32 %v738, 4294967184
        %v2339 = vperm.slane %v2137, %v2338
        %vm2340 = vcmask 982912
        %v2341 = vsel %vm2340, %v2339, %v2337
        %v2342 = vadd.s32 %v738, 4294967176
        %v2343 = vperm.slane %v2140, %v2342
        %vm2344 = vcmask 1048512
        %v2345 = vsel %vm2344, %v2343, %v2341
        %v2346 = vperm.slane %v2143, %v738
        %v2347 = vperm.slane %v2146, %v2286
        %v2348 = vsel %vm2288, %v2347, %v2346
        %v2349 = vperm.slane %v2149, %v2290
        %v2350 = vsel %vm2292, %v2349, %v2348
        %v2351 = vperm.slane %v2152, %v2294
        %v2352 = vsel %vm2296, %v2351, %v2350
        %v2353 = vperm.slane %v2155, %v2298
        %v2354 = vsel %vm2300, %v2353, %v2352
        %v2355 = vperm.slane %v2158, %v2302
        %v2356 = vsel %vm2304, %v2355, %v2354
        %v2357 = vperm.slane %v2161, %v2306
        %v2358 = vsel %vm2308, %v2357, %v2356
        %v2359 = vperm.slane %v2164, %v2310
        %v2360 = vsel %vm2312, %v2359, %v2358
        %v2361 = vperm.slane %v2167, %v2314
        %v2362 = vsel %vm2316, %v2361, %v2360
        %v2363 = vperm.slane %v2170, %v2318
        %v2364 = vsel %vm2320, %v2363, %v2362
        %v2365 = vperm.slane %v2173, %v2322
        %v2366 = vsel %vm2324, %v2365, %v2364
        %v2367 = vperm.slane %v2176, %v2326
        %v2368 = vsel %vm2328, %v2367, %v2366
        %v2369 = vperm.slane %v2179, %v2330
        %v2370 = vsel %vm2332, %v2369, %v2368
        %v2371 = vperm.slane %v2182, %v2334
        %v2372 = vsel %vm2336, %v2371, %v2370
        %v2373 = vperm.slane %v2185, %v2338
        %v2374 = vsel %vm2340, %v2373, %v2372
        %v2375 = vperm.slane %v2188, %v2342
        %v2376 = vsel %vm2344, %v2375, %v2374
        %v2377 = vperm.slane %v2191, %v738
        %v2378 = vperm.slane %v2194, %v2286
        %v2379 = vsel %vm2288, %v2378, %v2377
        %v2380 = vperm.slane %v2197, %v2290
        %v2381 = vsel %vm2292, %v2380, %v2379
        %v2382 = vperm.slane %v2200, %v2294
        %v2383 = vsel %vm2296, %v2382, %v2381
        %v2384 = vperm.slane %v2203, %v2298
        %v2385 = vsel %vm2300, %v2384, %v2383
        %v2386 = vperm.slane %v2206, %v2302
        %v2387 = vsel %vm2304, %v2386, %v2385
        %v2388 = vperm.slane %v2209, %v2306
        %v2389 = vsel %vm2308, %v2388, %v2387
        %v2390 = vperm.slane %v2212, %v2310
        %v2391 = vsel %vm2312, %v2390, %v2389
        %v2392 = vperm.slane %v2215, %v2314
        %v2393 = vsel %vm2316, %v2392, %v2391
        %v2394 = vperm.slane %v2218, %v2318
        %v2395 = vsel %vm2320, %v2394, %v2393
        %v2396 = vperm.slane %v2221, %v2322
        %v2397 = vsel %vm2324, %v2396, %v2395
        %v2398 = vperm.slane %v2224, %v2326
        %v2399 = vsel %vm2328, %v2398, %v2397
        %v2400 = vperm.slane %v2227, %v2330
        %v2401 = vsel %vm2332, %v2400, %v2399
        %v2402 = vperm.slane %v2230, %v2334
        %v2403 = vsel %vm2336, %v2402, %v2401
        %v2404 = vperm.slane %v2233, %v2338
        %v2405 = vsel %vm2340, %v2404, %v2403
        %v2406 = vperm.slane %v2236, %v2342
        %v2407 = vsel %vm2344, %v2406, %v2405
        %v2408 = vperm.slane %v2239, %v738
        %v2409 = vperm.slane %v2242, %v2286
        %v2410 = vsel %vm2288, %v2409, %v2408
        %v2411 = vperm.slane %v2245, %v2290
        %v2412 = vsel %vm2292, %v2411, %v2410
        %v2413 = vperm.slane %v2248, %v2294
        %v2414 = vsel %vm2296, %v2413, %v2412
        %v2415 = vperm.slane %v2251, %v2298
        %v2416 = vsel %vm2300, %v2415, %v2414
        %v2417 = vperm.slane %v2254, %v2302
        %v2418 = vsel %vm2304, %v2417, %v2416
        %v2419 = vperm.slane %v2257, %v2306
        %v2420 = vsel %vm2308, %v2419, %v2418
        %v2421 = vperm.slane %v2260, %v2310
        %v2422 = vsel %vm2312, %v2421, %v2420
        %v2423 = vperm.slane %v2263, %v2314
        %v2424 = vsel %vm2316, %v2423, %v2422
        %v2425 = vperm.slane %v2266, %v2318
        %v2426 = vsel %vm2320, %v2425, %v2424
        %v2427 = vperm.slane %v2269, %v2322
        %v2428 = vsel %vm2324, %v2427, %v2426
        %v2429 = vperm.slane %v2272, %v2326
        %v2430 = vsel %vm2328, %v2429, %v2428
        %v2431 = vperm.slane %v2275, %v2330
        %v2432 = vsel %vm2332, %v2431, %v2430
        %v2433 = vperm.slane %v2278, %v2334
        %v2434 = vsel %vm2336, %v2433, %v2432
        %v2435 = vperm.slane %v2281, %v2338
        %v2436 = vsel %vm2340, %v2435, %v2434
        %v2437 = vperm.slane %v2284, %v2342
        %v2438 = vsel %vm2344, %v2437, %v2436
        %v2439 = vrot.slane %v2376, 7
        %v2440 = vrot.slane %v2407, 6
        %v2441 = vrot.slane %v2438, 5
        %vm2442 = vcmask 1040384
        %v2443 = vsel %vm2442, %v2345, %v2439
        %vm2444 = vcmask 1042434
        %v2445 = vsel %vm2444, %v2440, %v2441
        %vm2446 = vcmask 1041408
        %v2447 = vsel %vm2446, %v2443, %v2445
        %v2449 = vadd.f32 %v805, %v2447
        %v2450 = vlaneseq
        %vm2451 = vcmp.ge.s32.totalorder %v2450, 0
        %vm2452 = vcmp.lt.s32.totalorder %v2450, 512
        %vm2453 = vmand %vm2451, %vm2452
        %2454 = vst.msk [vmem:[#allocation2] sm:$0xf] %vm2453, %v2449
        %p2455 = scmp.eq.s32.totalorder %s27, 1
        // Predicated region
        $region102: #{tpu_custom_call.1} parent=76 // pred_check
          %p2456 = pneg %p2455
        $region103: #{tpu_custom_call.1} parent=76 // pred_check_branch
          %2458 = sbr.rel (%p2456) target = $region105
        $region104: #{tpu_custom_call.1} parent=76 // pred_region
          %v2459 = vld [vmem:[#allocation2] sm:$0xf]
          %v2460 = vmul.f32 %v2459, 0.004761905
          %v2461 = vld [vmem:[#allocation4] sm:$0xff]
          %v2462 = vld [vmem:[#allocation4 + $0x8] sm:$0xff]
          %v2463 = vld [vmem:[#allocation4 + $0x10] sm:$0xff]
          %v2464 = vld [vmem:[#allocation4 + $0x18] sm:$0xff]
          %v2465 = vld [vmem:[#allocation4 + $0x20] sm:$0xff]
          %v2466 = vld [vmem:[#allocation4 + $0x28] sm:$0xff]
          %v2467 = vld [vmem:[#allocation4 + $0x30] sm:$0xff]
          %v2468 = vld [vmem:[#allocation4 + $0x38] sm:$0xff]
          %v2469 = vld [vmem:[#allocation4 + $0x40] sm:$0xff]
          %v2470 = vld [vmem:[#allocation4 + $0x48] sm:$0xff]
          %v2471 = vld [vmem:[#allocation4 + $0x50] sm:$0xff]
          %v2472 = vld [vmem:[#allocation4 + $0x58] sm:$0xff]
          %v2473 = vld [vmem:[#allocation4 + $0x60] sm:$0xff]
          %v2474 = vld [vmem:[#allocation4 + $0x68] sm:$0xff]
          %v2475 = vld [vmem:[#allocation4 + $0x70] sm:$0xff]
          %v2476 = vld [vmem:[#allocation4 + $0x78] sm:$0xff]
          %v2477 = vld [vmem:[#allocation4 + $0x80] sm:$0xff]
          %v2478 = vld [vmem:[#allocation4 + $0x88] sm:$0xff]
          %v2479 = vld [vmem:[#allocation4 + $0x90] sm:$0xff]
          %v2480 = vld [vmem:[#allocation4 + $0x98] sm:$0xff]
          %v2481 = vld [vmem:[#allocation4 + $0xa0] sm:$0xff]
          %v2482 = vld [vmem:[#allocation4 + $0xa8] sm:$0xff]
          %v2483 = vld [vmem:[#allocation4 + $0xb0] sm:$0xff]
          %v2484 = vld [vmem:[#allocation4 + $0xb8] sm:$0xff]
          %v2485 = vld [vmem:[#allocation4 + $0xc0] sm:$0xff]
          %v2486 = vld [vmem:[#allocation4 + $0xc8] sm:$0xff]
          %v2487 = vld [vmem:[#allocation4 + $0xd0] sm:$0xff]
          %v2488 = vld [vmem:[#allocation4 + $0xd8] sm:$0xff]
          %v2489 = vld [vmem:[#allocation4 + $0xe0] sm:$0xff]
          %v2490 = vld [vmem:[#allocation4 + $0xe8] sm:$0xff]
          %v2491 = vld [vmem:[#allocation4 + $0xf0] sm:$0xff]
          %v2492 = vld [vmem:[#allocation4 + $0xf8] sm:$0xff]
          %v2493 = vld [vmem:[#allocation4 + $0x100] sm:$0xff]
          %v2494 = vld [vmem:[#allocation4 + $0x108] sm:$0xff]
          %v2495 = vld [vmem:[#allocation4 + $0x110] sm:$0xff]
          %v2496 = vld [vmem:[#allocation4 + $0x118] sm:$0xff]
          %v2497 = vld [vmem:[#allocation4 + $0x120] sm:$0xff]
          %v2498 = vld [vmem:[#allocation4 + $0x128] sm:$0xff]
          %v2499 = vld [vmem:[#allocation4 + $0x130] sm:$0xff]
          %v2500 = vld [vmem:[#allocation4 + $0x138] sm:$0xff]
          %v2501 = vld [vmem:[#allocation4 + $0x140] sm:$0xff]
          %v2502 = vld [vmem:[#allocation4 + $0x148] sm:$0xff]
          %v2503 = vld [vmem:[#allocation4 + $0x150] sm:$0xff]
          %v2504 = vld [vmem:[#allocation4 + $0x158] sm:$0xff]
          %v2505 = vld [vmem:[#allocation4 + $0x160] sm:$0xff]
          %v2506 = vld [vmem:[#allocation4 + $0x168] sm:$0xff]
          %v2507 = vld [vmem:[#allocation4 + $0x170] sm:$0xff]
          %v2508 = vld [vmem:[#allocation4 + $0x178] sm:$0xff]
          %v2509 = vld [vmem:[#allocation4 + $0x180] sm:$0xff]
          %v2510 = vld [vmem:[#allocation4 + $0x188] sm:$0xff]
          %v2511 = vld [vmem:[#allocation4 + $0x190] sm:$0xff]
          %v2512 = vld [vmem:[#allocation4 + $0x198] sm:$0xff]
          %v2513 = vld [vmem:[#allocation4 + $0x1a0] sm:$0xff]
          %v2514 = vld [vmem:[#allocation4 + $0x1a8] sm:$0xff]
          %v2515 = vld [vmem:[#allocation4 + $0x1b0] sm:$0xff]
          %v2516 = vld [vmem:[#allocation4 + $0x1b8] sm:$0xff]
          %v2517 = vld [vmem:[#allocation4 + $0x1c0] sm:$0xff]
          %v2518 = vld [vmem:[#allocation4 + $0x1c8] sm:$0xff]
          %v2519 = vld [vmem:[#allocation4 + $0x1d0] sm:$0xff]
          %v2520 = vld [vmem:[#allocation4 + $0x1d8] sm:$0xff]
          %v2521 = vld [vmem:[#allocation4 + $0x1e0] sm:$0xff]
          %v2522 = vld [vmem:[#allocation4 + $0x1e8] sm:$0xff]
          %v2523 = vld [vmem:[#allocation4 + $0x1f0] sm:$0xff]
          %v2524 = vld [vmem:[#allocation4 + $0x1f8] sm:$0xff]
          %v2525 = vld [vmem:[#allocation4 + $0x200] sm:$0xff]
          %v2526 = vld [vmem:[#allocation4 + $0x208] sm:$0xff]
          %v2527 = vld [vmem:[#allocation4 + $0x210] sm:$0xff]
          %v2528 = vld [vmem:[#allocation4 + $0x218] sm:$0xff]
          %v2529 = vld [vmem:[#allocation4 + $0x220] sm:$0xff]
          %v2530 = vld [vmem:[#allocation4 + $0x228] sm:$0xff]
          %v2531 = vld [vmem:[#allocation4 + $0x230] sm:$0xff]
          %v2532 = vld [vmem:[#allocation4 + $0x238] sm:$0xff]
          %v2533 = vld [vmem:[#allocation4 + $0x240] sm:$0xff]
          %v2534 = vld [vmem:[#allocation4 + $0x248] sm:$0xff]
          %v2535 = vld [vmem:[#allocation4 + $0x250] sm:$0xff]
          %v2536 = vld [vmem:[#allocation4 + $0x258] sm:$0xff]
          %v2537 = vld [vmem:[#allocation4 + $0x260] sm:$0xff]
          %v2538 = vld [vmem:[#allocation4 + $0x268] sm:$0xff]
          %v2539 = vld [vmem:[#allocation4 + $0x270] sm:$0xff]
          %v2540 = vld [vmem:[#allocation4 + $0x278] sm:$0xff]
          %v2541 = vld [vmem:[#allocation4 + $0x280] sm:$0xff]
          %v2542 = vld [vmem:[#allocation4 + $0x288] sm:$0xff]
          %v2543 = vld [vmem:[#allocation4 + $0x290] sm:$0xff]
          %v2544 = vld [vmem:[#allocation4 + $0x298] sm:$0xff]
          %v2545 = vld [vmem:[#allocation4 + $0x2a0] sm:$0xff]
          %v2546 = vld [vmem:[#allocation4 + $0x2a8] sm:$0xff]
          %v2547 = vld [vmem:[#allocation4 + $0x2b0] sm:$0xff]
          %v2548 = vld [vmem:[#allocation4 + $0x2b8] sm:$0xff]
          %v2549 = vld [vmem:[#allocation4 + $0x2c0] sm:$0xff]
          %v2550 = vld [vmem:[#allocation4 + $0x2c8] sm:$0xff]
          %v2551 = vld [vmem:[#allocation4 + $0x2d0] sm:$0xff]
          %v2552 = vld [vmem:[#allocation4 + $0x2d8] sm:$0xff]
          %v2553 = vld [vmem:[#allocation4 + $0x2e0] sm:$0xff]
          %v2554 = vld [vmem:[#allocation4 + $0x2e8] sm:$0xff]
          %v2555 = vld [vmem:[#allocation4 + $0x2f0] sm:$0xff]
          %v2556 = vld [vmem:[#allocation4 + $0x2f8] sm:$0xff]
          %v2557 = vld [vmem:[#allocation4 + $0x300] sm:$0xff]
          %v2558 = vld [vmem:[#allocation4 + $0x308] sm:$0xff]
          %v2559 = vld [vmem:[#allocation4 + $0x310] sm:$0xff]
          %v2560 = vld [vmem:[#allocation4 + $0x318] sm:$0xff]
          %v2561 = vld [vmem:[#allocation4 + $0x320] sm:$0xff]
          %v2562 = vld [vmem:[#allocation4 + $0x328] sm:$0xff]
          %v2563 = vld [vmem:[#allocation4 + $0x330] sm:$0xff]
          %v2564 = vld [vmem:[#allocation4 + $0x338] sm:$0xff]
          %v2565 = vld [vmem:[#allocation4 + $0x340] sm:$0xff]
          %v2566 = vld [vmem:[#allocation4 + $0x348] sm:$0xff]
          %v2567 = vld [vmem:[#allocation4 + $0x350] sm:$0xff]
          %v2568 = vld [vmem:[#allocation4 + $0x358] sm:$0xff]
          %v2569 = vld [vmem:[#allocation4 + $0x360] sm:$0xff]
          %v2570 = vld [vmem:[#allocation4 + $0x368] sm:$0xff]
          %v2571 = vld [vmem:[#allocation4 + $0x370] sm:$0xff]
          %v2572 = vld [vmem:[#allocation4 + $0x378] sm:$0xff]
          %v2573 = vld [vmem:[#allocation4 + $0x380] sm:$0xff]
          %v2574 = vld [vmem:[#allocation4 + $0x388] sm:$0xff]
          %v2575 = vld [vmem:[#allocation4 + $0x390] sm:$0xff]
          %v2576 = vld [vmem:[#allocation4 + $0x398] sm:$0xff]
          %v2577 = vld [vmem:[#allocation4 + $0x3a0] sm:$0xff]
          %v2578 = vld [vmem:[#allocation4 + $0x3a8] sm:$0xff]
          %v2579 = vld [vmem:[#allocation4 + $0x3b0] sm:$0xff]
          %v2580 = vld [vmem:[#allocation4 + $0x3b8] sm:$0xff]
          %v2581 = vld [vmem:[#allocation4 + $0x3c0] sm:$0xff]
          %v2582 = vld [vmem:[#allocation4 + $0x3c8] sm:$0xff]
          %v2583 = vld [vmem:[#allocation4 + $0x3d0] sm:$0xff]
          %v2584 = vld [vmem:[#allocation4 + $0x3d8] sm:$0xff]
          %v2585 = vld [vmem:[#allocation4 + $0x3e0] sm:$0xff]
          %v2586 = vld [vmem:[#allocation4 + $0x3e8] sm:$0xff]
          %v2587 = vld [vmem:[#allocation4 + $0x3f0] sm:$0xff]
          %v2588 = vld [vmem:[#allocation4 + $0x3f8] sm:$0xff]
          %v2589 = vld [vmem:[#allocation4 + $0x400] sm:$0xff]
          %v2590 = vld [vmem:[#allocation4 + $0x408] sm:$0xff]
          %v2591 = vld [vmem:[#allocation4 + $0x410] sm:$0xff]
          %v2592 = vld [vmem:[#allocation4 + $0x418] sm:$0xff]
          %v2593 = vld [vmem:[#allocation4 + $0x420] sm:$0xff]
          %v2594 = vld [vmem:[#allocation4 + $0x428] sm:$0xff]
          %v2595 = vld [vmem:[#allocation4 + $0x430] sm:$0xff]
          %v2596 = vld [vmem:[#allocation4 + $0x438] sm:$0xff]
          %v2597 = vld [vmem:[#allocation4 + $0x440] sm:$0xff]
          %v2598 = vld [vmem:[#allocation4 + $0x448] sm:$0xff]
          %v2599 = vld [vmem:[#allocation4 + $0x450] sm:$0xff]
          %v2600 = vld [vmem:[#allocation4 + $0x458] sm:$0xff]
          %v2601 = vld [vmem:[#allocation4 + $0x460] sm:$0xff]
          %v2602 = vld [vmem:[#allocation4 + $0x468] sm:$0xff]
          %v2603 = vld [vmem:[#allocation4 + $0x470] sm:$0xff]
          %v2604 = vld [vmem:[#allocation4 + $0x478] sm:$0xff]
          %v2605 = vld [vmem:[#allocation4 + $0x480] sm:$0xff]
          %v2606 = vld [vmem:[#allocation4 + $0x488] sm:$0xff]
          %v2607 = vld [vmem:[#allocation4 + $0x490] sm:$0xff]
          %v2608 = vld [vmem:[#allocation4 + $0x498] sm:$0xff]
          %v2609 = vld [vmem:[#allocation4 + $0x4a0] sm:$0xff]
          %v2610 = vld [vmem:[#allocation4 + $0x4a8] sm:$0xff]
          %v2611 = vld [vmem:[#allocation4 + $0x4b0] sm:$0xff]
          %v2612 = vld [vmem:[#allocation4 + $0x4b8] sm:$0xff]
          %v2613 = vld [vmem:[#allocation4 + $0x4c0] sm:$0xff]
          %v2614 = vld [vmem:[#allocation4 + $0x4c8] sm:$0xff]
          %v2615 = vld [vmem:[#allocation4 + $0x4d0] sm:$0xff]
          %v2616 = vld [vmem:[#allocation4 + $0x4d8] sm:$0xff]
          %v2617 = vld [vmem:[#allocation4 + $0x4e0] sm:$0xff]
          %v2618 = vld [vmem:[#allocation4 + $0x4e8] sm:$0xff]
          %v2619 = vld [vmem:[#allocation4 + $0x4f0] sm:$0xff]
          %v2620 = vld [vmem:[#allocation4 + $0x4f8] sm:$0xff]
          %v2621 = vld [vmem:[#allocation4 + $0x500] sm:$0xff]
          %v2622 = vld [vmem:[#allocation4 + $0x508] sm:$0xff]
          %v2623 = vld [vmem:[#allocation4 + $0x510] sm:$0xff]
          %v2624 = vld [vmem:[#allocation4 + $0x518] sm:$0xff]
          %v2625 = vld [vmem:[#allocation4 + $0x520] sm:$0xff]
          %v2626 = vld [vmem:[#allocation4 + $0x528] sm:$0xff]
          %v2627 = vld [vmem:[#allocation4 + $0x530] sm:$0xff]
          %v2628 = vld [vmem:[#allocation4 + $0x538] sm:$0xff]
          %v2629 = vld [vmem:[#allocation4 + $0x540] sm:$0xff]
          %v2630 = vld [vmem:[#allocation4 + $0x548] sm:$0xff]
          %v2631 = vld [vmem:[#allocation4 + $0x550] sm:$0xff]
          %v2632 = vld [vmem:[#allocation4 + $0x558] sm:$0xff]
          %v2633 = vld [vmem:[#allocation4 + $0x560] sm:$0xff]
          %v2634 = vld [vmem:[#allocation4 + $0x568] sm:$0xff]
          %v2635 = vld [vmem:[#allocation4 + $0x570] sm:$0xff]
          %v2636 = vld [vmem:[#allocation4 + $0x578] sm:$0xff]
          %v2637 = vld [vmem:[#allocation4 + $0x580] sm:$0xff]
          %v2638 = vld [vmem:[#allocation4 + $0x588] sm:$0xff]
          %v2639 = vld [vmem:[#allocation4 + $0x590] sm:$0xff]
          %v2640 = vld [vmem:[#allocation4 + $0x598] sm:$0xff]
          %v2641 = vld [vmem:[#allocation4 + $0x5a0] sm:$0xff]
          %v2642 = vld [vmem:[#allocation4 + $0x5a8] sm:$0xff]
          %v2643 = vld [vmem:[#allocation4 + $0x5b0] sm:$0xff]
          %v2644 = vld [vmem:[#allocation4 + $0x5b8] sm:$0xff]
          %v2645 = vld [vmem:[#allocation4 + $0x5c0] sm:$0xff]
          %v2646 = vld [vmem:[#allocation4 + $0x5c8] sm:$0xff]
          %v2647 = vld [vmem:[#allocation4 + $0x5d0] sm:$0xff]
          %v2648 = vld [vmem:[#allocation4 + $0x5d8] sm:$0xff]
          %v2649 = vld [vmem:[#allocation4 + $0x5e0] sm:$0xff]
          %v2650 = vld [vmem:[#allocation4 + $0x5e8] sm:$0xff]
          %v2651 = vld [vmem:[#allocation4 + $0x5f0] sm:$0xff]
          %v2652 = vld [vmem:[#allocation4 + $0x5f8] sm:$0xff]
          %v2653 = vld [vmem:[#allocation4 + $0x600] sm:$0xff]
          %v2654 = vld [vmem:[#allocation4 + $0x608] sm:$0xff]
          %v2655 = vld [vmem:[#allocation4 + $0x610] sm:$0xff]
          %v2656 = vld [vmem:[#allocation4 + $0x618] sm:$0xff]
          %v2657 = vld [vmem:[#allocation4 + $0x620] sm:$0xff]
          %v2658 = vld [vmem:[#allocation4 + $0x628] sm:$0xff]
          %v2659 = vld [vmem:[#allocation4 + $0x630] sm:$0xff]
          %v2660 = vld [vmem:[#allocation4 + $0x638] sm:$0xff]
          %v2661 = vld [vmem:[#allocation4 + $0x640] sm:$0xff]
          %v2662 = vld [vmem:[#allocation4 + $0x648] sm:$0xff]
          %v2663 = vld [vmem:[#allocation4 + $0x650] sm:$0xff]
          %v2664 = vld [vmem:[#allocation4 + $0x658] sm:$0xff]
          %v2665 = vld [vmem:[#allocation4 + $0x660] sm:$0xff]
          %v2666 = vld [vmem:[#allocation4 + $0x668] sm:$0xff]
          %v2667 = vld [vmem:[#allocation4 + $0x670] sm:$0xff]
          %v2668 = vld [vmem:[#allocation4 + $0x678] sm:$0xff]
          %v2669 = vld [vmem:[#allocation4 + $0x680] sm:$0xff]
          %v2670 = vld [vmem:[#allocation4 + $0x688] sm:$0xff]
          %v2671 = vld [vmem:[#allocation4 + $0x690] sm:$0xff]
          %v2672 = vld [vmem:[#allocation4 + $0x698] sm:$0xff]
          %v2673 = vld [vmem:[#allocation4 + $0x6a0] sm:$0xff]
          %v2674 = vld [vmem:[#allocation4 + $0x6a8] sm:$0xff]
          %v2675 = vld [vmem:[#allocation4 + $0x6b0] sm:$0xff]
          %v2676 = vld [vmem:[#allocation4 + $0x6b8] sm:$0xff]
          %v2677 = vld [vmem:[#allocation4 + $0x6c0] sm:$0xff]
          %v2678 = vld [vmem:[#allocation4 + $0x6c8] sm:$0xff]
          %v2679 = vld [vmem:[#allocation4 + $0x6d0] sm:$0xff]
          %v2680 = vld [vmem:[#allocation4 + $0x6d8] sm:$0xff]
          %v2681 = vld [vmem:[#allocation4 + $0x6e0] sm:$0xff]
          %v2682 = vld [vmem:[#allocation4 + $0x6e8] sm:$0xff]
          %v2683 = vld [vmem:[#allocation4 + $0x6f0] sm:$0xff]
          %v2684 = vld [vmem:[#allocation4 + $0x6f8] sm:$0xff]
          %v2685 = vld [vmem:[#allocation4 + $0x700] sm:$0xff]
          %v2686 = vld [vmem:[#allocation4 + $0x708] sm:$0xff]
          %v2687 = vld [vmem:[#allocation4 + $0x710] sm:$0xff]
          %v2688 = vld [vmem:[#allocation4 + $0x718] sm:$0xff]
          %v2689 = vld [vmem:[#allocation4 + $0x720] sm:$0xff]
          %v2690 = vld [vmem:[#allocation4 + $0x728] sm:$0xff]
          %v2691 = vld [vmem:[#allocation4 + $0x730] sm:$0xff]
          %v2692 = vld [vmem:[#allocation4 + $0x738] sm:$0xff]
          %v2693 = vld [vmem:[#allocation4 + $0x740] sm:$0xff]
          %v2694 = vld [vmem:[#allocation4 + $0x748] sm:$0xff]
          %v2695 = vld [vmem:[#allocation4 + $0x750] sm:$0xff]
          %v2696 = vld [vmem:[#allocation4 + $0x758] sm:$0xff]
          %v2697 = vld [vmem:[#allocation4 + $0x760] sm:$0xff]
          %v2698 = vld [vmem:[#allocation4 + $0x768] sm:$0xff]
          %v2699 = vld [vmem:[#allocation4 + $0x770] sm:$0xff]
          %v2700 = vld [vmem:[#allocation4 + $0x778] sm:$0xff]
          %v2701 = vld [vmem:[#allocation4 + $0x780] sm:$0xff]
          %v2702 = vld [vmem:[#allocation4 + $0x788] sm:$0xff]
          %v2703 = vld [vmem:[#allocation4 + $0x790] sm:$0xff]
          %v2704 = vld [vmem:[#allocation4 + $0x798] sm:$0xff]
          %v2705 = vld [vmem:[#allocation4 + $0x7a0] sm:$0xff]
          %v2706 = vld [vmem:[#allocation4 + $0x7a8] sm:$0xff]
          %v2707 = vld [vmem:[#allocation4 + $0x7b0] sm:$0xff]
          %v2708 = vld [vmem:[#allocation4 + $0x7b8] sm:$0xff]
          %v2709 = vld [vmem:[#allocation4 + $0x7c0] sm:$0xff]
          %v2710 = vld [vmem:[#allocation4 + $0x7c8] sm:$0xff]
          %v2711 = vld [vmem:[#allocation4 + $0x7d0] sm:$0xff]
          %v2712 = vld [vmem:[#allocation4 + $0x7d8] sm:$0xff]
          %v2713 = vld [vmem:[#allocation4 + $0x7e0] sm:$0xff]
          %v2714 = vld [vmem:[#allocation4 + $0x7e8] sm:$0xff]
          %v2715 = vld [vmem:[#allocation4 + $0x7f0] sm:$0xff]
          %v2716 = vld [vmem:[#allocation4 + $0x7f8] sm:$0xff]
          %v2717 = vld [vmem:[#allocation4 + $0x800] sm:$0xff]
          %v2718 = vld [vmem:[#allocation4 + $0x808] sm:$0xff]
          %v2719 = vld [vmem:[#allocation4 + $0x810] sm:$0xff]
          %v2720 = vld [vmem:[#allocation4 + $0x818] sm:$0xff]
          %v2721 = vld [vmem:[#allocation4 + $0x820] sm:$0xff]
          %v2722 = vld [vmem:[#allocation4 + $0x828] sm:$0xff]
          %v2723 = vld [vmem:[#allocation4 + $0x830] sm:$0xff]
          %v2724 = vld [vmem:[#allocation4 + $0x838] sm:$0xff]
          %v2725 = vld [vmem:[#allocation4 + $0x840] sm:$0xff]
          %v2726 = vld [vmem:[#allocation4 + $0x848] sm:$0xff]
          %v2727 = vld [vmem:[#allocation4 + $0x850] sm:$0xff]
          %v2728 = vld [vmem:[#allocation4 + $0x858] sm:$0xff]
          %v2729 = vld [vmem:[#allocation4 + $0x860] sm:$0xff]
          %v2730 = vld [vmem:[#allocation4 + $0x868] sm:$0xff]
          %v2731 = vld [vmem:[#allocation4 + $0x870] sm:$0xff]
          %v2732 = vld [vmem:[#allocation4 + $0x878] sm:$0xff]
          %v2733 = vld [vmem:[#allocation4 + $0x880] sm:$0xff]
          %v2734 = vld [vmem:[#allocation4 + $0x888] sm:$0xff]
          %v2735 = vld [vmem:[#allocation4 + $0x890] sm:$0xff]
          %v2736 = vld [vmem:[#allocation4 + $0x898] sm:$0xff]
          %v2737 = vld [vmem:[#allocation4 + $0x8a0] sm:$0xff]
          %v2738 = vld [vmem:[#allocation4 + $0x8a8] sm:$0xff]
          %v2739 = vld [vmem:[#allocation4 + $0x8b0] sm:$0xff]
          %v2740 = vld [vmem:[#allocation4 + $0x8b8] sm:$0xff]
          %v2741 = vld [vmem:[#allocation4 + $0x8c0] sm:$0xff]
          %v2742 = vld [vmem:[#allocation4 + $0x8c8] sm:$0xff]
          %v2743 = vld [vmem:[#allocation4 + $0x8d0] sm:$0xff]
          %v2744 = vld [vmem:[#allocation4 + $0x8d8] sm:$0xff]
          %v2745 = vld [vmem:[#allocation4 + $0x8e0] sm:$0xff]
          %v2746 = vld [vmem:[#allocation4 + $0x8e8] sm:$0xff]
          %v2747 = vld [vmem:[#allocation4 + $0x8f0] sm:$0xff]
          %v2748 = vld [vmem:[#allocation4 + $0x8f8] sm:$0xff]
          %v2749 = vld [vmem:[#allocation4 + $0x900] sm:$0xff]
          %v2750 = vld [vmem:[#allocation4 + $0x908] sm:$0xff]
          %v2751 = vld [vmem:[#allocation4 + $0x910] sm:$0xff]
          %v2752 = vld [vmem:[#allocation4 + $0x918] sm:$0xff]
          %v2753 = vld [vmem:[#allocation4 + $0x920] sm:$0xff]
          %v2754 = vld [vmem:[#allocation4 + $0x928] sm:$0xff]
          %v2755 = vld [vmem:[#allocation4 + $0x930] sm:$0xff]
          %v2756 = vld [vmem:[#allocation4 + $0x938] sm:$0xff]
          %v2757 = vld [vmem:[#allocation4 + $0x940] sm:$0xff]
          %v2758 = vld [vmem:[#allocation4 + $0x948] sm:$0xff]
          %v2759 = vld [vmem:[#allocation4 + $0x950] sm:$0xff]
          %v2760 = vld [vmem:[#allocation4 + $0x958] sm:$0xff]
          %v2761 = vld [vmem:[#allocation4 + $0x960] sm:$0xff]
          %v2762 = vld [vmem:[#allocation4 + $0x968] sm:$0xff]
          %v2763 = vld [vmem:[#allocation4 + $0x970] sm:$0xff]
          %v2764 = vld [vmem:[#allocation4 + $0x978] sm:$0xff]
          %v2765 = vld [vmem:[#allocation4 + $0x980] sm:$0xff]
          %v2766 = vld [vmem:[#allocation4 + $0x988] sm:$0xff]
          %v2767 = vld [vmem:[#allocation4 + $0x990] sm:$0xff]
          %v2768 = vld [vmem:[#allocation4 + $0x998] sm:$0xff]
          %v2769 = vld [vmem:[#allocation4 + $0x9a0] sm:$0xff]
          %v2770 = vld [vmem:[#allocation4 + $0x9a8] sm:$0xff]
          %v2771 = vld [vmem:[#allocation4 + $0x9b0] sm:$0xff]
          %v2772 = vld [vmem:[#allocation4 + $0x9b8] sm:$0xff]
          %v2773 = vld [vmem:[#allocation4 + $0x9c0] sm:$0xff]
          %v2774 = vld [vmem:[#allocation4 + $0x9c8] sm:$0xff]
          %v2775 = vld [vmem:[#allocation4 + $0x9d0] sm:$0xff]
          %v2776 = vld [vmem:[#allocation4 + $0x9d8] sm:$0xff]
          %v2777 = vld [vmem:[#allocation4 + $0x9e0] sm:$0xff]
          %v2778 = vld [vmem:[#allocation4 + $0x9e8] sm:$0xff]
          %v2779 = vld [vmem:[#allocation4 + $0x9f0] sm:$0xff]
          %v2780 = vld [vmem:[#allocation4 + $0x9f8] sm:$0xff]
          %v2781 = vld [vmem:[#allocation4 + $0xa00] sm:$0xff]
          %v2782 = vld [vmem:[#allocation4 + $0xa08] sm:$0xff]
          %v2783 = vld [vmem:[#allocation4 + $0xa10] sm:$0xff]
          %v2784 = vld [vmem:[#allocation4 + $0xa18] sm:$0xff]
          %v2785 = vld [vmem:[#allocation4 + $0xa20] sm:$0xff]
          %v2786 = vld [vmem:[#allocation4 + $0xa28] sm:$0xff]
          %v2787 = vld [vmem:[#allocation4 + $0xa30] sm:$0xff]
          %v2788 = vld [vmem:[#allocation4 + $0xa38] sm:$0xff]
          %v2789 = vld [vmem:[#allocation4 + $0xa40] sm:$0xff]
          %v2790 = vld [vmem:[#allocation4 + $0xa48] sm:$0xff]
          %v2791 = vld [vmem:[#allocation4 + $0xa50] sm:$0xff]
          %v2792 = vld [vmem:[#allocation4 + $0xa58] sm:$0xff]
          %v2793 = vld [vmem:[#allocation4 + $0xa60] sm:$0xff]
          %v2794 = vld [vmem:[#allocation4 + $0xa68] sm:$0xff]
          %v2795 = vld [vmem:[#allocation4 + $0xa70] sm:$0xff]
          %v2796 = vld [vmem:[#allocation4 + $0xa78] sm:$0xff]
          %v2797 = vld [vmem:[#allocation4 + $0xa80] sm:$0xff]
          %v2798 = vld [vmem:[#allocation4 + $0xa88] sm:$0xff]
          %v2799 = vld [vmem:[#allocation4 + $0xa90] sm:$0xff]
          %v2800 = vld [vmem:[#allocation4 + $0xa98] sm:$0xff]
          %v2801 = vld [vmem:[#allocation4 + $0xaa0] sm:$0xff]
          %v2802 = vld [vmem:[#allocation4 + $0xaa8] sm:$0xff]
          %v2803 = vld [vmem:[#allocation4 + $0xab0] sm:$0xff]
          %v2804 = vld [vmem:[#allocation4 + $0xab8] sm:$0xff]
          %v2805 = vld [vmem:[#allocation4 + $0xac0] sm:$0xff]
          %v2806 = vld [vmem:[#allocation4 + $0xac8] sm:$0xff]
          %v2807 = vld [vmem:[#allocation4 + $0xad0] sm:$0xff]
          %v2808 = vld [vmem:[#allocation4 + $0xad8] sm:$0xff]
          %v2809 = vld [vmem:[#allocation4 + $0xae0] sm:$0xff]
          %v2810 = vld [vmem:[#allocation4 + $0xae8] sm:$0xff]
          %v2811 = vld [vmem:[#allocation4 + $0xaf0] sm:$0xff]
          %v2812 = vld [vmem:[#allocation4 + $0xaf8] sm:$0xff]
          %v2813 = vld [vmem:[#allocation4 + $0xb00] sm:$0xff]
          %v2814 = vld [vmem:[#allocation4 + $0xb08] sm:$0xff]
          %v2815 = vld [vmem:[#allocation4 + $0xb10] sm:$0xff]
          %v2816 = vld [vmem:[#allocation4 + $0xb18] sm:$0xff]
          %v2817 = vld [vmem:[#allocation4 + $0xb20] sm:$0xff]
          %v2818 = vld [vmem:[#allocation4 + $0xb28] sm:$0xff]
          %v2819 = vld [vmem:[#allocation4 + $0xb30] sm:$0xff]
          %v2820 = vld [vmem:[#allocation4 + $0xb38] sm:$0xff]
          %v2821 = vld [vmem:[#allocation4 + $0xb40] sm:$0xff]
          %v2822 = vld [vmem:[#allocation4 + $0xb48] sm:$0xff]
          %v2823 = vld [vmem:[#allocation4 + $0xb50] sm:$0xff]
          %v2824 = vld [vmem:[#allocation4 + $0xb58] sm:$0xff]
          %v2825 = vld [vmem:[#allocation4 + $0xb60] sm:$0xff]
          %v2826 = vld [vmem:[#allocation4 + $0xb68] sm:$0xff]
          %v2827 = vld [vmem:[#allocation4 + $0xb70] sm:$0xff]
          %v2828 = vld [vmem:[#allocation4 + $0xb78] sm:$0xff]
          %v2829 = vld [vmem:[#allocation4 + $0xb80] sm:$0xff]
          %v2830 = vld [vmem:[#allocation4 + $0xb88] sm:$0xff]
          %v2831 = vld [vmem:[#allocation4 + $0xb90] sm:$0xff]
          %v2832 = vld [vmem:[#allocation4 + $0xb98] sm:$0xff]
          %v2833 = vld [vmem:[#allocation4 + $0xba0] sm:$0xff]
          %v2834 = vld [vmem:[#allocation4 + $0xba8] sm:$0xff]
          %v2835 = vld [vmem:[#allocation4 + $0xbb0] sm:$0xff]
          %v2836 = vld [vmem:[#allocation4 + $0xbb8] sm:$0xff]
          %v2837 = vld [vmem:[#allocation4 + $0xbc0] sm:$0xff]
          %v2838 = vld [vmem:[#allocation4 + $0xbc8] sm:$0xff]
          %v2839 = vld [vmem:[#allocation4 + $0xbd0] sm:$0xff]
          %v2840 = vld [vmem:[#allocation4 + $0xbd8] sm:$0xff]
          %v2841 = vld [vmem:[#allocation4 + $0xbe0] sm:$0xff]
          %v2842 = vld [vmem:[#allocation4 + $0xbe8] sm:$0xff]
          %v2843 = vld [vmem:[#allocation4 + $0xbf0] sm:$0xff]
          %v2844 = vld [vmem:[#allocation4 + $0xbf8] sm:$0xff]
          %v2845 = vld [vmem:[#allocation4 + $0xc00] sm:$0xff]
          %v2846 = vld [vmem:[#allocation4 + $0xc08] sm:$0xff]
          %v2847 = vld [vmem:[#allocation4 + $0xc10] sm:$0xff]
          %v2848 = vld [vmem:[#allocation4 + $0xc18] sm:$0xff]
          %v2849 = vld [vmem:[#allocation4 + $0xc20] sm:$0xff]
          %v2850 = vld [vmem:[#allocation4 + $0xc28] sm:$0xff]
          %v2851 = vld [vmem:[#allocation4 + $0xc30] sm:$0xff]
          %v2852 = vld [vmem:[#allocation4 + $0xc38] sm:$0xff]
          %v2853 = vld [vmem:[#allocation4 + $0xc40] sm:$0xff]
          %v2854 = vld [vmem:[#allocation4 + $0xc48] sm:$0xff]
          %v2855 = vld [vmem:[#allocation4 + $0xc50] sm:$0xff]
          %v2856 = vld [vmem:[#allocation4 + $0xc58] sm:$0xff]
          %v2857 = vld [vmem:[#allocation4 + $0xc60] sm:$0xff]
          %v2858 = vld [vmem:[#allocation4 + $0xc68] sm:$0xff]
          %v2859 = vld [vmem:[#allocation4 + $0xc70] sm:$0xff]
          %v2860 = vld [vmem:[#allocation4 + $0xc78] sm:$0xff]
          %v2861 = vld [vmem:[#allocation4 + $0xc80] sm:$0xff]
          %v2862 = vld [vmem:[#allocation4 + $0xc88] sm:$0xff]
          %v2863 = vld [vmem:[#allocation4 + $0xc90] sm:$0xff]
          %v2864 = vld [vmem:[#allocation4 + $0xc98] sm:$0xff]
          %v2865 = vld [vmem:[#allocation4 + $0xca0] sm:$0xff]
          %v2866 = vld [vmem:[#allocation4 + $0xca8] sm:$0xff]
          %v2867 = vld [vmem:[#allocation4 + $0xcb0] sm:$0xff]
          %v2868 = vld [vmem:[#allocation4 + $0xcb8] sm:$0xff]
          %v2869 = vld [vmem:[#allocation4 + $0xcc0] sm:$0xff]
          %v2870 = vld [vmem:[#allocation4 + $0xcc8] sm:$0xff]
          %v2871 = vld [vmem:[#allocation4 + $0xcd0] sm:$0xff]
          %v2872 = vld [vmem:[#allocation4 + $0xcd8] sm:$0xff]
          %v2873 = vld [vmem:[#allocation4 + $0xce0] sm:$0xff]
          %v2874 = vld [vmem:[#allocation4 + $0xce8] sm:$0xff]
          %v2875 = vld [vmem:[#allocation4 + $0xcf0] sm:$0xff]
          %v2876 = vld [vmem:[#allocation4 + $0xcf8] sm:$0xff]
          %v2877 = vld [vmem:[#allocation4 + $0xd00] sm:$0xff]
          %v2878 = vld [vmem:[#allocation4 + $0xd08] sm:$0xff]
          %v2879 = vld [vmem:[#allocation4 + $0xd10] sm:$0xff]
          %v2880 = vld [vmem:[#allocation4 + $0xd18] sm:$0xff]
          %v2881 = vld [vmem:[#allocation4 + $0xd20] sm:$0xff]
          %v2882 = vld [vmem:[#allocation4 + $0xd28] sm:$0xff]
          %v2883 = vld [vmem:[#allocation4 + $0xd30] sm:$0xff]
          %v2884 = vld [vmem:[#allocation4 + $0xd38] sm:$0xff]
          %v2885 = vld [vmem:[#allocation4 + $0xd40] sm:$0xff]
          %v2886 = vld [vmem:[#allocation4 + $0xd48] sm:$0xff]
          %v2887 = vld [vmem:[#allocation4 + $0xd50] sm:$0xff]
          %v2888 = vld [vmem:[#allocation4 + $0xd58] sm:$0xff]
          %v2889 = vld [vmem:[#allocation4 + $0xd60] sm:$0xff]
          %v2890 = vld [vmem:[#allocation4 + $0xd68] sm:$0xff]
          %v2891 = vld [vmem:[#allocation4 + $0xd70] sm:$0xff]
          %v2892 = vld [vmem:[#allocation4 + $0xd78] sm:$0xff]
          %v2893 = vld [vmem:[#allocation4 + $0xd80] sm:$0xff]
          %v2894 = vld [vmem:[#allocation4 + $0xd88] sm:$0xff]
          %v2895 = vld [vmem:[#allocation4 + $0xd90] sm:$0xff]
          %v2896 = vld [vmem:[#allocation4 + $0xd98] sm:$0xff]
          %v2897 = vld [vmem:[#allocation4 + $0xda0] sm:$0xff]
          %v2898 = vld [vmem:[#allocation4 + $0xda8] sm:$0xff]
          %v2899 = vld [vmem:[#allocation4 + $0xdb0] sm:$0xff]
          %v2900 = vld [vmem:[#allocation4 + $0xdb8] sm:$0xff]
          %v2901 = vld [vmem:[#allocation4 + $0xdc0] sm:$0xff]
          %v2902 = vld [vmem:[#allocation4 + $0xdc8] sm:$0xff]
          %v2903 = vld [vmem:[#allocation4 + $0xdd0] sm:$0xff]
          %v2904 = vld [vmem:[#allocation4 + $0xdd8] sm:$0xff]
          %v2905 = vld [vmem:[#allocation4 + $0xde0] sm:$0xff]
          %v2906 = vld [vmem:[#allocation4 + $0xde8] sm:$0xff]
          %v2907 = vld [vmem:[#allocation4 + $0xdf0] sm:$0xff]
          %v2908 = vld [vmem:[#allocation4 + $0xdf8] sm:$0xff]
          %v2909 = vld [vmem:[#allocation4 + $0xe00] sm:$0xff]
          %v2910 = vld [vmem:[#allocation4 + $0xe08] sm:$0xff]
          %v2911 = vld [vmem:[#allocation4 + $0xe10] sm:$0xff]
          %v2912 = vld [vmem:[#allocation4 + $0xe18] sm:$0xff]
          %v2913 = vld [vmem:[#allocation4 + $0xe20] sm:$0xff]
          %v2914 = vld [vmem:[#allocation4 + $0xe28] sm:$0xff]
          %v2915 = vld [vmem:[#allocation4 + $0xe30] sm:$0xff]
          %v2916 = vld [vmem:[#allocation4 + $0xe38] sm:$0xff]
          %v2917 = vld [vmem:[#allocation4 + $0xe40] sm:$0xff]
          %v2918 = vld [vmem:[#allocation4 + $0xe48] sm:$0xff]
          %v2919 = vld [vmem:[#allocation4 + $0xe50] sm:$0xff]
          %v2920 = vld [vmem:[#allocation4 + $0xe58] sm:$0xff]
          %v2921 = vld [vmem:[#allocation4 + $0xe60] sm:$0xff]
          %v2922 = vld [vmem:[#allocation4 + $0xe68] sm:$0xff]
          %v2923 = vld [vmem:[#allocation4 + $0xe70] sm:$0xff]
          %v2924 = vld [vmem:[#allocation4 + $0xe78] sm:$0xff]
          %v2925 = vld [vmem:[#allocation4 + $0xe80] sm:$0xff]
          %v2926 = vld [vmem:[#allocation4 + $0xe88] sm:$0xff]
          %v2927 = vld [vmem:[#allocation4 + $0xe90] sm:$0xff]
          %v2928 = vld [vmem:[#allocation4 + $0xe98] sm:$0xff]
          %v2929 = vld [vmem:[#allocation4 + $0xea0] sm:$0xff]
          %v2930 = vld [vmem:[#allocation4 + $0xea8] sm:$0xff]
          %v2931 = vld [vmem:[#allocation4 + $0xeb0] sm:$0xff]
          %v2932 = vld [vmem:[#allocation4 + $0xeb8] sm:$0xff]
          %v2933 = vld [vmem:[#allocation4 + $0xec0] sm:$0xff]
          %v2934 = vld [vmem:[#allocation4 + $0xec8] sm:$0xff]
          %v2935 = vld [vmem:[#allocation4 + $0xed0] sm:$0xff]
          %v2936 = vld [vmem:[#allocation4 + $0xed8] sm:$0xff]
          %v2937 = vld [vmem:[#allocation4 + $0xee0] sm:$0xff]
          %v2938 = vld [vmem:[#allocation4 + $0xee8] sm:$0xff]
          %v2939 = vld [vmem:[#allocation4 + $0xef0] sm:$0xff]
          %v2940 = vld [vmem:[#allocation4 + $0xef8] sm:$0xff]
          %v2941 = vld [vmem:[#allocation4 + $0xf00] sm:$0xff]
          %v2942 = vld [vmem:[#allocation4 + $0xf08] sm:$0xff]
          %v2943 = vld [vmem:[#allocation4 + $0xf10] sm:$0xff]
          %v2944 = vld [vmem:[#allocation4 + $0xf18] sm:$0xff]
          %v2945 = vld [vmem:[#allocation4 + $0xf20] sm:$0xff]
          %v2946 = vld [vmem:[#allocation4 + $0xf28] sm:$0xff]
          %v2947 = vld [vmem:[#allocation4 + $0xf30] sm:$0xff]
          %v2948 = vld [vmem:[#allocation4 + $0xf38] sm:$0xff]
          %v2949 = vld [vmem:[#allocation4 + $0xf40] sm:$0xff]
          %v2950 = vld [vmem:[#allocation4 + $0xf48] sm:$0xff]
          %v2951 = vld [vmem:[#allocation4 + $0xf50] sm:$0xff]
          %v2952 = vld [vmem:[#allocation4 + $0xf58] sm:$0xff]
          %v2953 = vld [vmem:[#allocation4 + $0xf60] sm:$0xff]
          %v2954 = vld [vmem:[#allocation4 + $0xf68] sm:$0xff]
          %v2955 = vld [vmem:[#allocation4 + $0xf70] sm:$0xff]
          %v2956 = vld [vmem:[#allocation4 + $0xf78] sm:$0xff]
          %v2957 = vld [vmem:[#allocation4 + $0xf80] sm:$0xff]
          %v2958 = vld [vmem:[#allocation4 + $0xf88] sm:$0xff]
          %v2959 = vld [vmem:[#allocation4 + $0xf90] sm:$0xff]
          %v2960 = vld [vmem:[#allocation4 + $0xf98] sm:$0xff]
          %v2961 = vld [vmem:[#allocation4 + $0xfa0] sm:$0xff]
          %v2962 = vld [vmem:[#allocation4 + $0xfa8] sm:$0xff]
          %v2963 = vld [vmem:[#allocation4 + $0xfb0] sm:$0xff]
          %v2964 = vld [vmem:[#allocation4 + $0xfb8] sm:$0xff]
          %v2965 = vld [vmem:[#allocation4 + $0xfc0] sm:$0xff]
          %v2966 = vld [vmem:[#allocation4 + $0xfc8] sm:$0xff]
          %v2967 = vld [vmem:[#allocation4 + $0xfd0] sm:$0xff]
          %v2968 = vld [vmem:[#allocation4 + $0xfd8] sm:$0xff]
          %v2969 = vld [vmem:[#allocation4 + $0xfe0] sm:$0xff]
          %v2970 = vld [vmem:[#allocation4 + $0xfe8] sm:$0xff]
          %v2971 = vld [vmem:[#allocation4 + $0xff0] sm:$0xff]
          %v2972 = vld [vmem:[#allocation4 + $0xff8] sm:$0xff]
          %v2973 = vld [vmem:[#allocation7] sm:$0xff]
          %v2975 = vperm.slane %v2460, 0
          %v2976 = vperm.slane %v2460, 1
          %v2977 = vperm.slane %v2460, 2
          %v2978 = vperm.slane %v2460, 3
          %v2984 = vperm.slane %v2973, 0
          %v2985 = vperm.slane %v2973, 1
          %v2986 = vperm.slane %v2973, 2
          %v2987 = vperm.slane %v2973, 3
          %v2988 = vperm.slane %v2973, 4
          %v2989 = vperm.slane %v2973, 5
          %v2990 = vperm.slane %v2973, 6
          %v2991 = vperm.slane %v2973, 7
          %3000 = vmatpush.msra.mxu0 %v2581
          %3001 = vmatpush.msra.mxu0 %v2573
          %3002 = vmatpush.msra.mxu0 %v2565
          %3003 = vmatpush.msra.mxu0 %v2557
          %3004 = vmatpush.msra.mxu0 %v2549
          %3005 = vmatpush.msra.mxu0 %v2541
          %3006 = vmatpush.msra.mxu0 %v2533
          %3007 = vmatpush.msra.mxu0 %v2525
          %3008 = vmatpush.msra.mxu0 %v2517
          %3009 = vmatpush.msra.mxu0 %v2509
          %3010 = vmatpush.msra.mxu0 %v2501
          %3011 = vmatpush.msra.mxu0 %v2493
          %3012 = vmatpush.msra.mxu0 %v2485
          %3013 = vmatpush.msra.mxu0 %v2477
          %3014 = vmatpush.msra.mxu0 %v2469
          %3015 = vmatpush.msra.mxu0 %v2461
          %3016 = vmatmul.f32.gmra.mxu0 %v2975
          %v3017 = vpop.f32.mrf.mxu0
          %v3018 = vadd.f32 %v2984, %v3017
          %3019 = vdwg.mxu0
          %3020 = vmatpush.msra.mxu0 %v2709
          %3021 = vmatpush.msra.mxu0 %v2701
          %3022 = vmatpush.msra.mxu0 %v2693
          %3023 = vmatpush.msra.mxu0 %v2685
          %3024 = vmatpush.msra.mxu0 %v2677
          %3025 = vmatpush.msra.mxu0 %v2669
          %3026 = vmatpush.msra.mxu0 %v2661
          %3027 = vmatpush.msra.mxu0 %v2653
          %3028 = vmatpush.msra.mxu0 %v2645
          %3029 = vmatpush.msra.mxu0 %v2637
          %3030 = vmatpush.msra.mxu0 %v2629
          %3031 = vmatpush.msra.mxu0 %v2621
          %3032 = vmatpush.msra.mxu0 %v2613
          %3033 = vmatpush.msra.mxu0 %v2605
          %3034 = vmatpush.msra.mxu0 %v2597
          %3035 = vmatpush.msra.mxu0 %v2589
          %3036 = vmatmul.f32.gmra.mxu0 %v2976
          %v3037 = vpop.f32.mrf.mxu0
          %v3038 = vadd.f32 %v3018, %v3037
          %3039 = vdwg.mxu0
          %3040 = vmatpush.msra.mxu0 %v2837
          %3041 = vmatpush.msra.mxu0 %v2829
          %3042 = vmatpush.msra.mxu0 %v2821
          %3043 = vmatpush.msra.mxu0 %v2813
          %3044 = vmatpush.msra.mxu0 %v2805
          %3045 = vmatpush.msra.mxu0 %v2797
          %3046 = vmatpush.msra.mxu0 %v2789
          %3047 = vmatpush.msra.mxu0 %v2781
          %3048 = vmatpush.msra.mxu0 %v2773
          %3049 = vmatpush.msra.mxu0 %v2765
          %3050 = vmatpush.msra.mxu0 %v2757
          %3051 = vmatpush.msra.mxu0 %v2749
          %3052 = vmatpush.msra.mxu0 %v2741
          %3053 = vmatpush.msra.mxu0 %v2733
          %3054 = vmatpush.msra.mxu0 %v2725
          %3055 = vmatpush.msra.mxu0 %v2717
          %3056 = vmatmul.f32.gmra.mxu0 %v2977
          %v3057 = vpop.f32.mrf.mxu0
          %v3058 = vadd.f32 %v3038, %v3057
          %3059 = vdwg.mxu0
          %3060 = vmatpush.msra.mxu0 %v2965
          %3061 = vmatpush.msra.mxu0 %v2957
          %3062 = vmatpush.msra.mxu0 %v2949
          %3063 = vmatpush.msra.mxu0 %v2941
          %3064 = vmatpush.msra.mxu0 %v2933
          %3065 = vmatpush.msra.mxu0 %v2925
          %3066 = vmatpush.msra.mxu0 %v2917
          %3067 = vmatpush.msra.mxu0 %v2909
          %3068 = vmatpush.msra.mxu0 %v2901
          %3069 = vmatpush.msra.mxu0 %v2893
          %3070 = vmatpush.msra.mxu0 %v2885
          %3071 = vmatpush.msra.mxu0 %v2877
          %3072 = vmatpush.msra.mxu0 %v2869
          %3073 = vmatpush.msra.mxu0 %v2861
          %3074 = vmatpush.msra.mxu0 %v2853
          %3075 = vmatpush.msra.mxu0 %v2845
          %3076 = vmatmul.f32.gmra.mxu0 %v2978
          %v3077 = vpop.f32.mrf.mxu0
          %v3078 = vadd.f32 %v3058, %v3077
          %3079 = vdwg.mxu0
          %3080 = vmatpush.msra.mxu0 %v2582
          %3081 = vmatpush.msra.mxu0 %v2574
          %3082 = vmatpush.msra.mxu0 %v2566
          %3083 = vmatpush.msra.mxu0 %v2558
          %3084 = vmatpush.msra.mxu0 %v2550
          %3085 = vmatpush.msra.mxu0 %v2542
          %3086 = vmatpush.msra.mxu0 %v2534
          %3087 = vmatpush.msra.mxu0 %v2526
          %3088 = vmatpush.msra.mxu0 %v2518
          %3089 = vmatpush.msra.mxu0 %v2510
          %3090 = vmatpush.msra.mxu0 %v2502
          %3091 = vmatpush.msra.mxu0 %v2494
          %3092 = vmatpush.msra.mxu0 %v2486
          %3093 = vmatpush.msra.mxu0 %v2478
          %3094 = vmatpush.msra.mxu0 %v2470
          %3095 = vmatpush.msra.mxu0 %v2462
          %3096 = vmatmul.f32.gmra.mxu0 %v2975
          %v3097 = vpop.f32.mrf.mxu0
          %v3098 = vadd.f32 %v2985, %v3097
          %3099 = vdwg.mxu0
          %3100 = vmatpush.msra.mxu0 %v2710
          %3101 = vmatpush.msra.mxu0 %v2702
          %3102 = vmatpush.msra.mxu0 %v2694
          %3103 = vmatpush.msra.mxu0 %v2686
          %3104 = vmatpush.msra.mxu0 %v2678
          %3105 = vmatpush.msra.mxu0 %v2670
          %3106 = vmatpush.msra.mxu0 %v2662
          %3107 = vmatpush.msra.mxu0 %v2654
          %3108 = vmatpush.msra.mxu0 %v2646
          %3109 = vmatpush.msra.mxu0 %v2638
          %3110 = vmatpush.msra.mxu0 %v2630
          %3111 = vmatpush.msra.mxu0 %v2622
          %3112 = vmatpush.msra.mxu0 %v2614
          %3113 = vmatpush.msra.mxu0 %v2606
          %3114 = vmatpush.msra.mxu0 %v2598
          %3115 = vmatpush.msra.mxu0 %v2590
          %3116 = vmatmul.f32.gmra.mxu0 %v2976
          %v3117 = vpop.f32.mrf.mxu0
          %v3118 = vadd.f32 %v3098, %v3117
          %3119 = vdwg.mxu0
          %3120 = vmatpush.msra.mxu0 %v2838
          %3121 = vmatpush.msra.mxu0 %v2830
          %3122 = vmatpush.msra.mxu0 %v2822
          %3123 = vmatpush.msra.mxu0 %v2814
          %3124 = vmatpush.msra.mxu0 %v2806
          %3125 = vmatpush.msra.mxu0 %v2798
          %3126 = vmatpush.msra.mxu0 %v2790
          %3127 = vmatpush.msra.mxu0 %v2782
          %3128 = vmatpush.msra.mxu0 %v2774
          %3129 = vmatpush.msra.mxu0 %v2766
          %3130 = vmatpush.msra.mxu0 %v2758
          %3131 = vmatpush.msra.mxu0 %v2750
          %3132 = vmatpush.msra.mxu0 %v2742
          %3133 = vmatpush.msra.mxu0 %v2734
          %3134 = vmatpush.msra.mxu0 %v2726
          %3135 = vmatpush.msra.mxu0 %v2718
          %3136 = vmatmul.f32.gmra.mxu0 %v2977
          %v3137 = vpop.f32.mrf.mxu0
          %v3138 = vadd.f32 %v3118, %v3137
          %3139 = vdwg.mxu0
          %3140 = vmatpush.msra.mxu0 %v2966
          %3141 = vmatpush.msra.mxu0 %v2958
          %3142 = vmatpush.msra.mxu0 %v2950
          %3143 = vmatpush.msra.mxu0 %v2942
          %3144 = vmatpush.msra.mxu0 %v2934
          %3145 = vmatpush.msra.mxu0 %v2926
          %3146 = vmatpush.msra.mxu0 %v2918
          %3147 = vmatpush.msra.mxu0 %v2910
          %3148 = vmatpush.msra.mxu0 %v2902
          %3149 = vmatpush.msra.mxu0 %v2894
          %3150 = vmatpush.msra.mxu0 %v2886
          %3151 = vmatpush.msra.mxu0 %v2878
          %3152 = vmatpush.msra.mxu0 %v2870
          %3153 = vmatpush.msra.mxu0 %v2862
          %3154 = vmatpush.msra.mxu0 %v2854
          %3155 = vmatpush.msra.mxu0 %v2846
          %3156 = vmatmul.f32.gmra.mxu0 %v2978
          %v3157 = vpop.f32.mrf.mxu0
          %v3158 = vadd.f32 %v3138, %v3157
          %3159 = vdwg.mxu0
          %3160 = vmatpush.msra.mxu0 %v2583
          %3161 = vmatpush.msra.mxu0 %v2575
          %3162 = vmatpush.msra.mxu0 %v2567
          %3163 = vmatpush.msra.mxu0 %v2559
          %3164 = vmatpush.msra.mxu0 %v2551
          %3165 = vmatpush.msra.mxu0 %v2543
          %3166 = vmatpush.msra.mxu0 %v2535
          %3167 = vmatpush.msra.mxu0 %v2527
          %3168 = vmatpush.msra.mxu0 %v2519
          %3169 = vmatpush.msra.mxu0 %v2511
          %3170 = vmatpush.msra.mxu0 %v2503
          %3171 = vmatpush.msra.mxu0 %v2495
          %3172 = vmatpush.msra.mxu0 %v2487
          %3173 = vmatpush.msra.mxu0 %v2479
          %3174 = vmatpush.msra.mxu0 %v2471
          %3175 = vmatpush.msra.mxu0 %v2463
          %3176 = vmatmul.f32.gmra.mxu0 %v2975
          %v3177 = vpop.f32.mrf.mxu0
          %v3178 = vadd.f32 %v2986, %v3177
          %3179 = vdwg.mxu0
          %3180 = vmatpush.msra.mxu0 %v2711
          %3181 = vmatpush.msra.mxu0 %v2703
          %3182 = vmatpush.msra.mxu0 %v2695
          %3183 = vmatpush.msra.mxu0 %v2687
          %3184 = vmatpush.msra.mxu0 %v2679
          %3185 = vmatpush.msra.mxu0 %v2671
          %3186 = vmatpush.msra.mxu0 %v2663
          %3187 = vmatpush.msra.mxu0 %v2655
          %3188 = vmatpush.msra.mxu0 %v2647
          %3189 = vmatpush.msra.mxu0 %v2639
          %3190 = vmatpush.msra.mxu0 %v2631
          %3191 = vmatpush.msra.mxu0 %v2623
          %3192 = vmatpush.msra.mxu0 %v2615
          %3193 = vmatpush.msra.mxu0 %v2607
          %3194 = vmatpush.msra.mxu0 %v2599
          %3195 = vmatpush.msra.mxu0 %v2591
          %3196 = vmatmul.f32.gmra.mxu0 %v2976
          %v3197 = vpop.f32.mrf.mxu0
          %v3198 = vadd.f32 %v3178, %v3197
          %3199 = vdwg.mxu0
          %3200 = vmatpush.msra.mxu0 %v2839
          %3201 = vmatpush.msra.mxu0 %v2831
          %3202 = vmatpush.msra.mxu0 %v2823
          %3203 = vmatpush.msra.mxu0 %v2815
          %3204 = vmatpush.msra.mxu0 %v2807
          %3205 = vmatpush.msra.mxu0 %v2799
          %3206 = vmatpush.msra.mxu0 %v2791
          %3207 = vmatpush.msra.mxu0 %v2783
          %3208 = vmatpush.msra.mxu0 %v2775
          %3209 = vmatpush.msra.mxu0 %v2767
          %3210 = vmatpush.msra.mxu0 %v2759
          %3211 = vmatpush.msra.mxu0 %v2751
          %3212 = vmatpush.msra.mxu0 %v2743
          %3213 = vmatpush.msra.mxu0 %v2735
          %3214 = vmatpush.msra.mxu0 %v2727
          %3215 = vmatpush.msra.mxu0 %v2719
          %3216 = vmatmul.f32.gmra.mxu0 %v2977
          %v3217 = vpop.f32.mrf.mxu0
          %v3218 = vadd.f32 %v3198, %v3217
          %3219 = vdwg.mxu0
          %3220 = vmatpush.msra.mxu0 %v2967
          %3221 = vmatpush.msra.mxu0 %v2959
          %3222 = vmatpush.msra.mxu0 %v2951
          %3223 = vmatpush.msra.mxu0 %v2943
          %3224 = vmatpush.msra.mxu0 %v2935
          %3225 = vmatpush.msra.mxu0 %v2927
          %3226 = vmatpush.msra.mxu0 %v2919
          %3227 = vmatpush.msra.mxu0 %v2911
          %3228 = vmatpush.msra.mxu0 %v2903
          %3229 = vmatpush.msra.mxu0 %v2895
          %3230 = vmatpush.msra.mxu0 %v2887
          %3231 = vmatpush.msra.mxu0 %v2879
          %3232 = vmatpush.msra.mxu0 %v2871
          %3233 = vmatpush.msra.mxu0 %v2863
          %3234 = vmatpush.msra.mxu0 %v2855
          %3235 = vmatpush.msra.mxu0 %v2847
          %3236 = vmatmul.f32.gmra.mxu0 %v2978
          %v3237 = vpop.f32.mrf.mxu0
          %v3238 = vadd.f32 %v3218, %v3237
          %3239 = vdwg.mxu0
          %3240 = vmatpush.msra.mxu0 %v2584
          %3241 = vmatpush.msra.mxu0 %v2576
          %3242 = vmatpush.msra.mxu0 %v2568
          %3243 = vmatpush.msra.mxu0 %v2560
          %3244 = vmatpush.msra.mxu0 %v2552
          %3245 = vmatpush.msra.mxu0 %v2544
          %3246 = vmatpush.msra.mxu0 %v2536
          %3247 = vmatpush.msra.mxu0 %v2528
          %3248 = vmatpush.msra.mxu0 %v2520
          %3249 = vmatpush.msra.mxu0 %v2512
          %3250 = vmatpush.msra.mxu0 %v2504
          %3251 = vmatpush.msra.mxu0 %v2496
          %3252 = vmatpush.msra.mxu0 %v2488
          %3253 = vmatpush.msra.mxu0 %v2480
          %3254 = vmatpush.msra.mxu0 %v2472
          %3255 = vmatpush.msra.mxu0 %v2464
          %3256 = vmatmul.f32.gmra.mxu0 %v2975
          %v3257 = vpop.f32.mrf.mxu0
          %v3258 = vadd.f32 %v2987, %v3257
          %3259 = vdwg.mxu0
          %3260 = vmatpush.msra.mxu0 %v2712
          %3261 = vmatpush.msra.mxu0 %v2704
          %3262 = vmatpush.msra.mxu0 %v2696
          %3263 = vmatpush.msra.mxu0 %v2688
          %3264 = vmatpush.msra.mxu0 %v2680
          %3265 = vmatpush.msra.mxu0 %v2672
          %3266 = vmatpush.msra.mxu0 %v2664
          %3267 = vmatpush.msra.mxu0 %v2656
          %3268 = vmatpush.msra.mxu0 %v2648
          %3269 = vmatpush.msra.mxu0 %v2640
          %3270 = vmatpush.msra.mxu0 %v2632
          %3271 = vmatpush.msra.mxu0 %v2624
          %3272 = vmatpush.msra.mxu0 %v2616
          %3273 = vmatpush.msra.mxu0 %v2608
          %3274 = vmatpush.msra.mxu0 %v2600
          %3275 = vmatpush.msra.mxu0 %v2592
          %3276 = vmatmul.f32.gmra.mxu0 %v2976
          %v3277 = vpop.f32.mrf.mxu0
          %v3278 = vadd.f32 %v3258, %v3277
          %3279 = vdwg.mxu0
          %3280 = vmatpush.msra.mxu0 %v2840
          %3281 = vmatpush.msra.mxu0 %v2832
          %3282 = vmatpush.msra.mxu0 %v2824
          %3283 = vmatpush.msra.mxu0 %v2816
          %3284 = vmatpush.msra.mxu0 %v2808
          %3285 = vmatpush.msra.mxu0 %v2800
          %3286 = vmatpush.msra.mxu0 %v2792
          %3287 = vmatpush.msra.mxu0 %v2784
          %3288 = vmatpush.msra.mxu0 %v2776
          %3289 = vmatpush.msra.mxu0 %v2768
          %3290 = vmatpush.msra.mxu0 %v2760
          %3291 = vmatpush.msra.mxu0 %v2752
          %3292 = vmatpush.msra.mxu0 %v2744
          %3293 = vmatpush.msra.mxu0 %v2736
          %3294 = vmatpush.msra.mxu0 %v2728
          %3295 = vmatpush.msra.mxu0 %v2720
          %3296 = vmatmul.f32.gmra.mxu0 %v2977
          %v3297 = vpop.f32.mrf.mxu0
          %v3298 = vadd.f32 %v3278, %v3297
          %3299 = vdwg.mxu0
          %3300 = vmatpush.msra.mxu0 %v2968
          %3301 = vmatpush.msra.mxu0 %v2960
          %3302 = vmatpush.msra.mxu0 %v2952
          %3303 = vmatpush.msra.mxu0 %v2944
          %3304 = vmatpush.msra.mxu0 %v2936
          %3305 = vmatpush.msra.mxu0 %v2928
          %3306 = vmatpush.msra.mxu0 %v2920
          %3307 = vmatpush.msra.mxu0 %v2912
          %3308 = vmatpush.msra.mxu0 %v2904
          %3309 = vmatpush.msra.mxu0 %v2896
          %3310 = vmatpush.msra.mxu0 %v2888
          %3311 = vmatpush.msra.mxu0 %v2880
          %3312 = vmatpush.msra.mxu0 %v2872
          %3313 = vmatpush.msra.mxu0 %v2864
          %3314 = vmatpush.msra.mxu0 %v2856
          %3315 = vmatpush.msra.mxu0 %v2848
          %3316 = vmatmul.f32.gmra.mxu0 %v2978
          %v3317 = vpop.f32.mrf.mxu0
          %v3318 = vadd.f32 %v3298, %v3317
          %3319 = vdwg.mxu0
          %3320 = vmatpush.msra.mxu0 %v2585
          %3321 = vmatpush.msra.mxu0 %v2577
          %3322 = vmatpush.msra.mxu0 %v2569
          %3323 = vmatpush.msra.mxu0 %v2561
          %3324 = vmatpush.msra.mxu0 %v2553
          %3325 = vmatpush.msra.mxu0 %v2545
          %3326 = vmatpush.msra.mxu0 %v2537
          %3327 = vmatpush.msra.mxu0 %v2529
          %3328 = vmatpush.msra.mxu0 %v2521
          %3329 = vmatpush.msra.mxu0 %v2513
          %3330 = vmatpush.msra.mxu0 %v2505
          %3331 = vmatpush.msra.mxu0 %v2497
          %3332 = vmatpush.msra.mxu0 %v2489
          %3333 = vmatpush.msra.mxu0 %v2481
          %3334 = vmatpush.msra.mxu0 %v2473
          %3335 = vmatpush.msra.mxu0 %v2465
          %3336 = vmatmul.f32.gmra.mxu0 %v2975
          %v3337 = vpop.f32.mrf.mxu0
          %v3338 = vadd.f32 %v2988, %v3337
          %3339 = vdwg.mxu0
          %3340 = vmatpush.msra.mxu0 %v2713
          %3341 = vmatpush.msra.mxu0 %v2705
          %3342 = vmatpush.msra.mxu0 %v2697
          %3343 = vmatpush.msra.mxu0 %v2689
          %3344 = vmatpush.msra.mxu0 %v2681
          %3345 = vmatpush.msra.mxu0 %v2673
          %3346 = vmatpush.msra.mxu0 %v2665
          %3347 = vmatpush.msra.mxu0 %v2657
          %3348 = vmatpush.msra.mxu0 %v2649
          %3349 = vmatpush.msra.mxu0 %v2641
          %3350 = vmatpush.msra.mxu0 %v2633
          %3351 = vmatpush.msra.mxu0 %v2625
          %3352 = vmatpush.msra.mxu0 %v2617
          %3353 = vmatpush.msra.mxu0 %v2609
          %3354 = vmatpush.msra.mxu0 %v2601
          %3355 = vmatpush.msra.mxu0 %v2593
          %3356 = vmatmul.f32.gmra.mxu0 %v2976
          %v3357 = vpop.f32.mrf.mxu0
          %v3358 = vadd.f32 %v3338, %v3357
          %3359 = vdwg.mxu0
          %3360 = vmatpush.msra.mxu0 %v2841
          %3361 = vmatpush.msra.mxu0 %v2833
          %3362 = vmatpush.msra.mxu0 %v2825
          %3363 = vmatpush.msra.mxu0 %v2817
          %3364 = vmatpush.msra.mxu0 %v2809
          %3365 = vmatpush.msra.mxu0 %v2801
          %3366 = vmatpush.msra.mxu0 %v2793
          %3367 = vmatpush.msra.mxu0 %v2785
          %3368 = vmatpush.msra.mxu0 %v2777
          %3369 = vmatpush.msra.mxu0 %v2769
          %3370 = vmatpush.msra.mxu0 %v2761
          %3371 = vmatpush.msra.mxu0 %v2753
          %3372 = vmatpush.msra.mxu0 %v2745
          %3373 = vmatpush.msra.mxu0 %v2737
          %3374 = vmatpush.msra.mxu0 %v2729
          %3375 = vmatpush.msra.mxu0 %v2721
          %3376 = vmatmul.f32.gmra.mxu0 %v2977
          %v3377 = vpop.f32.mrf.mxu0
          %v3378 = vadd.f32 %v3358, %v3377
          %3379 = vdwg.mxu0
          %3380 = vmatpush.msra.mxu0 %v2969
          %3381 = vmatpush.msra.mxu0 %v2961
          %3382 = vmatpush.msra.mxu0 %v2953
          %3383 = vmatpush.msra.mxu0 %v2945
          %3384 = vmatpush.msra.mxu0 %v2937
          %3385 = vmatpush.msra.mxu0 %v2929
          %3386 = vmatpush.msra.mxu0 %v2921
          %3387 = vmatpush.msra.mxu0 %v2913
          %3388 = vmatpush.msra.mxu0 %v2905
          %3389 = vmatpush.msra.mxu0 %v2897
          %3390 = vmatpush.msra.mxu0 %v2889
          %3391 = vmatpush.msra.mxu0 %v2881
          %3392 = vmatpush.msra.mxu0 %v2873
          %3393 = vmatpush.msra.mxu0 %v2865
          %3394 = vmatpush.msra.mxu0 %v2857
          %3395 = vmatpush.msra.mxu0 %v2849
          %3396 = vmatmul.f32.gmra.mxu0 %v2978
          %v3397 = vpop.f32.mrf.mxu0
          %v3398 = vadd.f32 %v3378, %v3397
          %3399 = vdwg.mxu0
          %3400 = vmatpush.msra.mxu0 %v2586
          %3401 = vmatpush.msra.mxu0 %v2578
          %3402 = vmatpush.msra.mxu0 %v2570
          %3403 = vmatpush.msra.mxu0 %v2562
          %3404 = vmatpush.msra.mxu0 %v2554
          %3405 = vmatpush.msra.mxu0 %v2546
          %3406 = vmatpush.msra.mxu0 %v2538
          %3407 = vmatpush.msra.mxu0 %v2530
          %3408 = vmatpush.msra.mxu0 %v2522
          %3409 = vmatpush.msra.mxu0 %v2514
          %3410 = vmatpush.msra.mxu0 %v2506
          %3411 = vmatpush.msra.mxu0 %v2498
          %3412 = vmatpush.msra.mxu0 %v2490
          %3413 = vmatpush.msra.mxu0 %v2482
          %3414 = vmatpush.msra.mxu0 %v2474
          %3415 = vmatpush.msra.mxu0 %v2466
          %3416 = vmatmul.f32.gmra.mxu0 %v2975
          %v3417 = vpop.f32.mrf.mxu0
          %v3418 = vadd.f32 %v2989, %v3417
          %3419 = vdwg.mxu0
          %3420 = vmatpush.msra.mxu0 %v2714
          %3421 = vmatpush.msra.mxu0 %v2706
          %3422 = vmatpush.msra.mxu0 %v2698
          %3423 = vmatpush.msra.mxu0 %v2690
          %3424 = vmatpush.msra.mxu0 %v2682
          %3425 = vmatpush.msra.mxu0 %v2674
          %3426 = vmatpush.msra.mxu0 %v2666
          %3427 = vmatpush.msra.mxu0 %v2658
          %3428 = vmatpush.msra.mxu0 %v2650
          %3429 = vmatpush.msra.mxu0 %v2642
          %3430 = vmatpush.msra.mxu0 %v2634
          %3431 = vmatpush.msra.mxu0 %v2626
          %3432 = vmatpush.msra.mxu0 %v2618
          %3433 = vmatpush.msra.mxu0 %v2610
          %3434 = vmatpush.msra.mxu0 %v2602
          %3435 = vmatpush.msra.mxu0 %v2594
          %3436 = vmatmul.f32.gmra.mxu0 %v2976
          %v3437 = vpop.f32.mrf.mxu0
          %v3438 = vadd.f32 %v3418, %v3437
          %3439 = vdwg.mxu0
          %3440 = vmatpush.msra.mxu0 %v2842
          %3441 = vmatpush.msra.mxu0 %v2834
          %3442 = vmatpush.msra.mxu0 %v2826
          %3443 = vmatpush.msra.mxu0 %v2818
          %3444 = vmatpush.msra.mxu0 %v2810
          %3445 = vmatpush.msra.mxu0 %v2802
          %3446 = vmatpush.msra.mxu0 %v2794
          %3447 = vmatpush.msra.mxu0 %v2786
          %3448 = vmatpush.msra.mxu0 %v2778
          %3449 = vmatpush.msra.mxu0 %v2770
          %3450 = vmatpush.msra.mxu0 %v2762
          %3451 = vmatpush.msra.mxu0 %v2754
          %3452 = vmatpush.msra.mxu0 %v2746
          %3453 = vmatpush.msra.mxu0 %v2738
          %3454 = vmatpush.msra.mxu0 %v2730
          %3455 = vmatpush.msra.mxu0 %v2722
          %3456 = vmatmul.f32.gmra.mxu0 %v2977
          %v3457 = vpop.f32.mrf.mxu0
          %v3458 = vadd.f32 %v3438, %v3457
          %3459 = vdwg.mxu0
          %3460 = vmatpush.msra.mxu0 %v2970
          %3461 = vmatpush.msra.mxu0 %v2962
          %3462 = vmatpush.msra.mxu0 %v2954
          %3463 = vmatpush.msra.mxu0 %v2946
          %3464 = vmatpush.msra.mxu0 %v2938
          %3465 = vmatpush.msra.mxu0 %v2930
          %3466 = vmatpush.msra.mxu0 %v2922
          %3467 = vmatpush.msra.mxu0 %v2914
          %3468 = vmatpush.msra.mxu0 %v2906
          %3469 = vmatpush.msra.mxu0 %v2898
          %3470 = vmatpush.msra.mxu0 %v2890
          %3471 = vmatpush.msra.mxu0 %v2882
          %3472 = vmatpush.msra.mxu0 %v2874
          %3473 = vmatpush.msra.mxu0 %v2866
          %3474 = vmatpush.msra.mxu0 %v2858
          %3475 = vmatpush.msra.mxu0 %v2850
          %3476 = vmatmul.f32.gmra.mxu0 %v2978
          %v3477 = vpop.f32.mrf.mxu0
          %v3478 = vadd.f32 %v3458, %v3477
          %3479 = vdwg.mxu0
          %3480 = vmatpush.msra.mxu0 %v2587
          %3481 = vmatpush.msra.mxu0 %v2579
          %3482 = vmatpush.msra.mxu0 %v2571
          %3483 = vmatpush.msra.mxu0 %v2563
          %3484 = vmatpush.msra.mxu0 %v2555
          %3485 = vmatpush.msra.mxu0 %v2547
          %3486 = vmatpush.msra.mxu0 %v2539
          %3487 = vmatpush.msra.mxu0 %v2531
          %3488 = vmatpush.msra.mxu0 %v2523
          %3489 = vmatpush.msra.mxu0 %v2515
          %3490 = vmatpush.msra.mxu0 %v2507
          %3491 = vmatpush.msra.mxu0 %v2499
          %3492 = vmatpush.msra.mxu0 %v2491
          %3493 = vmatpush.msra.mxu0 %v2483
          %3494 = vmatpush.msra.mxu0 %v2475
          %3495 = vmatpush.msra.mxu0 %v2467
          %3496 = vmatmul.f32.gmra.mxu0 %v2975
          %v3497 = vpop.f32.mrf.mxu0
          %v3498 = vadd.f32 %v2990, %v3497
          %3499 = vdwg.mxu0
          %3500 = vmatpush.msra.mxu0 %v2715
          %3501 = vmatpush.msra.mxu0 %v2707
          %3502 = vmatpush.msra.mxu0 %v2699
          %3503 = vmatpush.msra.mxu0 %v2691
          %3504 = vmatpush.msra.mxu0 %v2683
          %3505 = vmatpush.msra.mxu0 %v2675
          %3506 = vmatpush.msra.mxu0 %v2667
          %3507 = vmatpush.msra.mxu0 %v2659
          %3508 = vmatpush.msra.mxu0 %v2651
          %3509 = vmatpush.msra.mxu0 %v2643
          %3510 = vmatpush.msra.mxu0 %v2635
          %3511 = vmatpush.msra.mxu0 %v2627
          %3512 = vmatpush.msra.mxu0 %v2619
          %3513 = vmatpush.msra.mxu0 %v2611
          %3514 = vmatpush.msra.mxu0 %v2603
          %3515 = vmatpush.msra.mxu0 %v2595
          %3516 = vmatmul.f32.gmra.mxu0 %v2976
          %v3517 = vpop.f32.mrf.mxu0
          %v3518 = vadd.f32 %v3498, %v3517
          %3519 = vdwg.mxu0
          %3520 = vmatpush.msra.mxu0 %v2843
          %3521 = vmatpush.msra.mxu0 %v2835
          %3522 = vmatpush.msra.mxu0 %v2827
          %3523 = vmatpush.msra.mxu0 %v2819
          %3524 = vmatpush.msra.mxu0 %v2811
          %3525 = vmatpush.msra.mxu0 %v2803
          %3526 = vmatpush.msra.mxu0 %v2795
          %3527 = vmatpush.msra.mxu0 %v2787
          %3528 = vmatpush.msra.mxu0 %v2779
          %3529 = vmatpush.msra.mxu0 %v2771
          %3530 = vmatpush.msra.mxu0 %v2763
          %3531 = vmatpush.msra.mxu0 %v2755
          %3532 = vmatpush.msra.mxu0 %v2747
          %3533 = vmatpush.msra.mxu0 %v2739
          %3534 = vmatpush.msra.mxu0 %v2731
          %3535 = vmatpush.msra.mxu0 %v2723
          %3536 = vmatmul.f32.gmra.mxu0 %v2977
          %v3537 = vpop.f32.mrf.mxu0
          %v3538 = vadd.f32 %v3518, %v3537
          %3539 = vdwg.mxu0
          %3540 = vmatpush.msra.mxu0 %v2971
          %3541 = vmatpush.msra.mxu0 %v2963
          %3542 = vmatpush.msra.mxu0 %v2955
          %3543 = vmatpush.msra.mxu0 %v2947
          %3544 = vmatpush.msra.mxu0 %v2939
          %3545 = vmatpush.msra.mxu0 %v2931
          %3546 = vmatpush.msra.mxu0 %v2923
          %3547 = vmatpush.msra.mxu0 %v2915
          %3548 = vmatpush.msra.mxu0 %v2907
          %3549 = vmatpush.msra.mxu0 %v2899
          %3550 = vmatpush.msra.mxu0 %v2891
          %3551 = vmatpush.msra.mxu0 %v2883
          %3552 = vmatpush.msra.mxu0 %v2875
          %3553 = vmatpush.msra.mxu0 %v2867
          %3554 = vmatpush.msra.mxu0 %v2859
          %3555 = vmatpush.msra.mxu0 %v2851
          %3556 = vmatmul.f32.gmra.mxu0 %v2978
          %v3557 = vpop.f32.mrf.mxu0
          %v3558 = vadd.f32 %v3538, %v3557
          %3559 = vdwg.mxu0
          %3560 = vmatpush.msra.mxu0 %v2588
          %3561 = vmatpush.msra.mxu0 %v2580
          %3562 = vmatpush.msra.mxu0 %v2572
          %3563 = vmatpush.msra.mxu0 %v2564
          %3564 = vmatpush.msra.mxu0 %v2556
          %3565 = vmatpush.msra.mxu0 %v2548
          %3566 = vmatpush.msra.mxu0 %v2540
          %3567 = vmatpush.msra.mxu0 %v2532
          %3568 = vmatpush.msra.mxu0 %v2524
          %3569 = vmatpush.msra.mxu0 %v2516
          %3570 = vmatpush.msra.mxu0 %v2508
          %3571 = vmatpush.msra.mxu0 %v2500
          %3572 = vmatpush.msra.mxu0 %v2492
          %3573 = vmatpush.msra.mxu0 %v2484
          %3574 = vmatpush.msra.mxu0 %v2476
          %3575 = vmatpush.msra.mxu0 %v2468
          %3576 = vmatmul.f32.gmra.mxu0 %v2975
          %v3577 = vpop.f32.mrf.mxu0
          %v3578 = vadd.f32 %v2991, %v3577
          %3579 = vdwg.mxu0
          %3580 = vmatpush.msra.mxu0 %v2716
          %3581 = vmatpush.msra.mxu0 %v2708
          %3582 = vmatpush.msra.mxu0 %v2700
          %3583 = vmatpush.msra.mxu0 %v2692
          %3584 = vmatpush.msra.mxu0 %v2684
          %3585 = vmatpush.msra.mxu0 %v2676
          %3586 = vmatpush.msra.mxu0 %v2668
          %3587 = vmatpush.msra.mxu0 %v2660
          %3588 = vmatpush.msra.mxu0 %v2652
          %3589 = vmatpush.msra.mxu0 %v2644
          %3590 = vmatpush.msra.mxu0 %v2636
          %3591 = vmatpush.msra.mxu0 %v2628
          %3592 = vmatpush.msra.mxu0 %v2620
          %3593 = vmatpush.msra.mxu0 %v2612
          %3594 = vmatpush.msra.mxu0 %v2604
          %3595 = vmatpush.msra.mxu0 %v2596
          %3596 = vmatmul.f32.gmra.mxu0 %v2976
          %v3597 = vpop.f32.mrf.mxu0
          %v3598 = vadd.f32 %v3578, %v3597
          %3599 = vdwg.mxu0
          %3600 = vmatpush.msra.mxu0 %v2844
          %3601 = vmatpush.msra.mxu0 %v2836
          %3602 = vmatpush.msra.mxu0 %v2828
          %3603 = vmatpush.msra.mxu0 %v2820
          %3604 = vmatpush.msra.mxu0 %v2812
          %3605 = vmatpush.msra.mxu0 %v2804
          %3606 = vmatpush.msra.mxu0 %v2796
          %3607 = vmatpush.msra.mxu0 %v2788
          %3608 = vmatpush.msra.mxu0 %v2780
          %3609 = vmatpush.msra.mxu0 %v2772
          %3610 = vmatpush.msra.mxu0 %v2764
          %3611 = vmatpush.msra.mxu0 %v2756
          %3612 = vmatpush.msra.mxu0 %v2748
          %3613 = vmatpush.msra.mxu0 %v2740
          %3614 = vmatpush.msra.mxu0 %v2732
          %3615 = vmatpush.msra.mxu0 %v2724
          %3616 = vmatmul.f32.gmra.mxu0 %v2977
          %v3617 = vpop.f32.mrf.mxu0
          %v3618 = vadd.f32 %v3598, %v3617
          %3619 = vdwg.mxu0
          %3620 = vmatpush.msra.mxu0 %v2972
          %3621 = vmatpush.msra.mxu0 %v2964
          %3622 = vmatpush.msra.mxu0 %v2956
          %3623 = vmatpush.msra.mxu0 %v2948
          %3624 = vmatpush.msra.mxu0 %v2940
          %3625 = vmatpush.msra.mxu0 %v2932
          %3626 = vmatpush.msra.mxu0 %v2924
          %3627 = vmatpush.msra.mxu0 %v2916
          %3628 = vmatpush.msra.mxu0 %v2908
          %3629 = vmatpush.msra.mxu0 %v2900
          %3630 = vmatpush.msra.mxu0 %v2892
          %3631 = vmatpush.msra.mxu0 %v2884
          %3632 = vmatpush.msra.mxu0 %v2876
          %3633 = vmatpush.msra.mxu0 %v2868
          %3634 = vmatpush.msra.mxu0 %v2860
          %3635 = vmatpush.msra.mxu0 %v2852
          %3636 = vmatmul.f32.gmra.mxu0 %v2978
          %v3637 = vpop.f32.mrf.mxu0
          %v3638 = vadd.f32 %v3618, %v3637
          %3639 = vdwg.mxu0
          %v3640 = vmax.f32 %v3078, 0.0
          %v3641 = vmax.f32 %v3158, 0.0
          %v3642 = vmax.f32 %v3238, 0.0
          %v3643 = vmax.f32 %v3318, 0.0
          %v3644 = vmax.f32 %v3398, 0.0
          %v3645 = vmax.f32 %v3478, 0.0
          %v3646 = vmax.f32 %v3558, 0.0
          %v3647 = vmax.f32 %v3638, 0.0
          %v3648 = vld [vmem:[#allocation9] sm:$0xff]
          %v3649 = vld [vmem:[#allocation9 + $0x8] sm:$0xff]
          %v3650 = vld [vmem:[#allocation9 + $0x10] sm:$0xff]
          %v3651 = vld [vmem:[#allocation9 + $0x18] sm:$0xff]
          %v3652 = vld [vmem:[#allocation9 + $0x20] sm:$0xff]
          %v3653 = vld [vmem:[#allocation9 + $0x28] sm:$0xff]
          %v3654 = vld [vmem:[#allocation9 + $0x30] sm:$0xff]
          %v3655 = vld [vmem:[#allocation9 + $0x38] sm:$0xff]
          %v3656 = vld [vmem:[#allocation9 + $0x40] sm:$0xff]
          %v3657 = vld [vmem:[#allocation9 + $0x48] sm:$0xff]
          %v3658 = vld [vmem:[#allocation9 + $0x50] sm:$0xff]
          %v3659 = vld [vmem:[#allocation9 + $0x58] sm:$0xff]
          %v3660 = vld [vmem:[#allocation9 + $0x60] sm:$0xff]
          %v3661 = vld [vmem:[#allocation9 + $0x68] sm:$0xff]
          %v3662 = vld [vmem:[#allocation9 + $0x70] sm:$0xff]
          %v3663 = vld [vmem:[#allocation9 + $0x78] sm:$0xff]
          %v3664 = vld [vmem:[#allocation9 + $0x80] sm:$0xff]
          %v3665 = vld [vmem:[#allocation9 + $0x88] sm:$0xff]
          %v3666 = vld [vmem:[#allocation9 + $0x90] sm:$0xff]
          %v3667 = vld [vmem:[#allocation9 + $0x98] sm:$0xff]
          %v3668 = vld [vmem:[#allocation9 + $0xa0] sm:$0xff]
          %v3669 = vld [vmem:[#allocation9 + $0xa8] sm:$0xff]
          %v3670 = vld [vmem:[#allocation9 + $0xb0] sm:$0xff]
          %v3671 = vld [vmem:[#allocation9 + $0xb8] sm:$0xff]
          %v3672 = vld [vmem:[#allocation9 + $0xc0] sm:$0xff]
          %v3673 = vld [vmem:[#allocation9 + $0xc8] sm:$0xff]
          %v3674 = vld [vmem:[#allocation9 + $0xd0] sm:$0xff]
          %v3675 = vld [vmem:[#allocation9 + $0xd8] sm:$0xff]
          %v3676 = vld [vmem:[#allocation9 + $0xe0] sm:$0xff]
          %v3677 = vld [vmem:[#allocation9 + $0xe8] sm:$0xff]
          %v3678 = vld [vmem:[#allocation9 + $0xf0] sm:$0xff]
          %v3679 = vld [vmem:[#allocation9 + $0xf8] sm:$0xff]
          %v3680 = vld [vmem:[#allocation9 + $0x100] sm:$0xff]
          %v3681 = vld [vmem:[#allocation9 + $0x108] sm:$0xff]
          %v3682 = vld [vmem:[#allocation9 + $0x110] sm:$0xff]
          %v3683 = vld [vmem:[#allocation9 + $0x118] sm:$0xff]
          %v3684 = vld [vmem:[#allocation9 + $0x120] sm:$0xff]
          %v3685 = vld [vmem:[#allocation9 + $0x128] sm:$0xff]
          %v3686 = vld [vmem:[#allocation9 + $0x130] sm:$0xff]
          %v3687 = vld [vmem:[#allocation9 + $0x138] sm:$0xff]
          %v3688 = vld [vmem:[#allocation9 + $0x140] sm:$0xff]
          %v3689 = vld [vmem:[#allocation9 + $0x148] sm:$0xff]
          %v3690 = vld [vmem:[#allocation9 + $0x150] sm:$0xff]
          %v3691 = vld [vmem:[#allocation9 + $0x158] sm:$0xff]
          %v3692 = vld [vmem:[#allocation9 + $0x160] sm:$0xff]
          %v3693 = vld [vmem:[#allocation9 + $0x168] sm:$0xff]
          %v3694 = vld [vmem:[#allocation9 + $0x170] sm:$0xff]
          %v3695 = vld [vmem:[#allocation9 + $0x178] sm:$0xff]
          %v3696 = vld [vmem:[#allocation9 + $0x180] sm:$0xff]
          %v3697 = vld [vmem:[#allocation9 + $0x188] sm:$0xff]
          %v3698 = vld [vmem:[#allocation9 + $0x190] sm:$0xff]
          %v3699 = vld [vmem:[#allocation9 + $0x198] sm:$0xff]
          %v3700 = vld [vmem:[#allocation9 + $0x1a0] sm:$0xff]
          %v3701 = vld [vmem:[#allocation9 + $0x1a8] sm:$0xff]
          %v3702 = vld [vmem:[#allocation9 + $0x1b0] sm:$0xff]
          %v3703 = vld [vmem:[#allocation9 + $0x1b8] sm:$0xff]
          %v3704 = vld [vmem:[#allocation9 + $0x1c0] sm:$0xff]
          %v3705 = vld [vmem:[#allocation9 + $0x1c8] sm:$0xff]
          %v3706 = vld [vmem:[#allocation9 + $0x1d0] sm:$0xff]
          %v3707 = vld [vmem:[#allocation9 + $0x1d8] sm:$0xff]
          %v3708 = vld [vmem:[#allocation9 + $0x1e0] sm:$0xff]
          %v3709 = vld [vmem:[#allocation9 + $0x1e8] sm:$0xff]
          %v3710 = vld [vmem:[#allocation9 + $0x1f0] sm:$0xff]
          %v3711 = vld [vmem:[#allocation9 + $0x1f8] sm:$0xff]
          %v3712 = vld [vmem:[#allocation9 + $0x200] sm:$0xff]
          %v3713 = vld [vmem:[#allocation9 + $0x208] sm:$0xff]
          %v3714 = vld [vmem:[#allocation9 + $0x210] sm:$0xff]
          %v3715 = vld [vmem:[#allocation9 + $0x218] sm:$0xff]
          %v3716 = vld [vmem:[#allocation9 + $0x220] sm:$0xff]
          %v3717 = vld [vmem:[#allocation9 + $0x228] sm:$0xff]
          %v3718 = vld [vmem:[#allocation9 + $0x230] sm:$0xff]
          %v3719 = vld [vmem:[#allocation9 + $0x238] sm:$0xff]
          %v3720 = vld [vmem:[#allocation9 + $0x240] sm:$0xff]
          %v3721 = vld [vmem:[#allocation9 + $0x248] sm:$0xff]
          %v3722 = vld [vmem:[#allocation9 + $0x250] sm:$0xff]
          %v3723 = vld [vmem:[#allocation9 + $0x258] sm:$0xff]
          %v3724 = vld [vmem:[#allocation9 + $0x260] sm:$0xff]
          %v3725 = vld [vmem:[#allocation9 + $0x268] sm:$0xff]
          %v3726 = vld [vmem:[#allocation9 + $0x270] sm:$0xff]
          %v3727 = vld [vmem:[#allocation9 + $0x278] sm:$0xff]
          %v3728 = vld [vmem:[#allocation9 + $0x280] sm:$0xff]
          %v3729 = vld [vmem:[#allocation9 + $0x288] sm:$0xff]
          %v3730 = vld [vmem:[#allocation9 + $0x290] sm:$0xff]
          %v3731 = vld [vmem:[#allocation9 + $0x298] sm:$0xff]
          %v3732 = vld [vmem:[#allocation9 + $0x2a0] sm:$0xff]
          %v3733 = vld [vmem:[#allocation9 + $0x2a8] sm:$0xff]
          %v3734 = vld [vmem:[#allocation9 + $0x2b0] sm:$0xff]
          %v3735 = vld [vmem:[#allocation9 + $0x2b8] sm:$0xff]
          %v3736 = vld [vmem:[#allocation9 + $0x2c0] sm:$0xff]
          %v3737 = vld [vmem:[#allocation9 + $0x2c8] sm:$0xff]
          %v3738 = vld [vmem:[#allocation9 + $0x2d0] sm:$0xff]
          %v3739 = vld [vmem:[#allocation9 + $0x2d8] sm:$0xff]
          %v3740 = vld [vmem:[#allocation9 + $0x2e0] sm:$0xff]
          %v3741 = vld [vmem:[#allocation9 + $0x2e8] sm:$0xff]
          %v3742 = vld [vmem:[#allocation9 + $0x2f0] sm:$0xff]
          %v3743 = vld [vmem:[#allocation9 + $0x2f8] sm:$0xff]
          %v3744 = vld [vmem:[#allocation9 + $0x300] sm:$0xff]
          %v3745 = vld [vmem:[#allocation9 + $0x308] sm:$0xff]
          %v3746 = vld [vmem:[#allocation9 + $0x310] sm:$0xff]
          %v3747 = vld [vmem:[#allocation9 + $0x318] sm:$0xff]
          %v3748 = vld [vmem:[#allocation9 + $0x320] sm:$0xff]
          %v3749 = vld [vmem:[#allocation9 + $0x328] sm:$0xff]
          %v3750 = vld [vmem:[#allocation9 + $0x330] sm:$0xff]
          %v3751 = vld [vmem:[#allocation9 + $0x338] sm:$0xff]
          %v3752 = vld [vmem:[#allocation9 + $0x340] sm:$0xff]
          %v3753 = vld [vmem:[#allocation9 + $0x348] sm:$0xff]
          %v3754 = vld [vmem:[#allocation9 + $0x350] sm:$0xff]
          %v3755 = vld [vmem:[#allocation9 + $0x358] sm:$0xff]
          %v3756 = vld [vmem:[#allocation9 + $0x360] sm:$0xff]
          %v3757 = vld [vmem:[#allocation9 + $0x368] sm:$0xff]
          %v3758 = vld [vmem:[#allocation9 + $0x370] sm:$0xff]
          %v3759 = vld [vmem:[#allocation9 + $0x378] sm:$0xff]
          %v3760 = vld [vmem:[#allocation9 + $0x380] sm:$0xff]
          %v3761 = vld [vmem:[#allocation9 + $0x388] sm:$0xff]
          %v3762 = vld [vmem:[#allocation9 + $0x390] sm:$0xff]
          %v3763 = vld [vmem:[#allocation9 + $0x398] sm:$0xff]
          %v3764 = vld [vmem:[#allocation9 + $0x3a0] sm:$0xff]
          %v3765 = vld [vmem:[#allocation9 + $0x3a8] sm:$0xff]
          %v3766 = vld [vmem:[#allocation9 + $0x3b0] sm:$0xff]
          %v3767 = vld [vmem:[#allocation9 + $0x3b8] sm:$0xff]
          %v3768 = vld [vmem:[#allocation9 + $0x3c0] sm:$0xff]
          %v3769 = vld [vmem:[#allocation9 + $0x3c8] sm:$0xff]
          %v3770 = vld [vmem:[#allocation9 + $0x3d0] sm:$0xff]
          %v3771 = vld [vmem:[#allocation9 + $0x3d8] sm:$0xff]
          %v3772 = vld [vmem:[#allocation9 + $0x3e0] sm:$0xff]
          %v3773 = vld [vmem:[#allocation9 + $0x3e8] sm:$0xff]
          %v3774 = vld [vmem:[#allocation9 + $0x3f0] sm:$0xff]
          %v3775 = vld [vmem:[#allocation9 + $0x3f8] sm:$0xff]
          %v3776 = vld [vmem:[#allocation10] sm:$0x1]
          %3777 = vmatpush.msra.mxu0 %v3663
          %3778 = vmatpush.msra.mxu0 %v3662
          %3779 = vmatpush.msra.mxu0 %v3661
          %3780 = vmatpush.msra.mxu0 %v3660
          %3781 = vmatpush.msra.mxu0 %v3659
          %3782 = vmatpush.msra.mxu0 %v3658
          %3783 = vmatpush.msra.mxu0 %v3657
          %3784 = vmatpush.msra.mxu0 %v3656
          %3785 = vmatpush.msra.mxu0 %v3655
          %3786 = vmatpush.msra.mxu0 %v3654
          %3787 = vmatpush.msra.mxu0 %v3653
          %3788 = vmatpush.msra.mxu0 %v3652
          %3789 = vmatpush.msra.mxu0 %v3651
          %3790 = vmatpush.msra.mxu0 %v3650
          %3791 = vmatpush.msra.mxu0 %v3649
          %3792 = vmatpush.msra.mxu0 %v3648
          %3793 = vmatmul.f32.gmra.mxu0 %v3640
          %v3794 = vpop.f32.mrf.mxu0
          %v3795 = vadd.f32 %v3776, %v3794
          %3796 = vdwg.mxu0
          %3797 = vmatpush.msra.mxu0 %v3679
          %3798 = vmatpush.msra.mxu0 %v3678
          %3799 = vmatpush.msra.mxu0 %v3677
          %3800 = vmatpush.msra.mxu0 %v3676
          %3801 = vmatpush.msra.mxu0 %v3675
          %3802 = vmatpush.msra.mxu0 %v3674
          %3803 = vmatpush.msra.mxu0 %v3673
          %3804 = vmatpush.msra.mxu0 %v3672
          %3805 = vmatpush.msra.mxu0 %v3671
          %3806 = vmatpush.msra.mxu0 %v3670
          %3807 = vmatpush.msra.mxu0 %v3669
          %3808 = vmatpush.msra.mxu0 %v3668
          %3809 = vmatpush.msra.mxu0 %v3667
          %3810 = vmatpush.msra.mxu0 %v3666
          %3811 = vmatpush.msra.mxu0 %v3665
          %3812 = vmatpush.msra.mxu0 %v3664
          %3813 = vmatmul.f32.gmra.mxu0 %v3641
          %v3814 = vpop.f32.mrf.mxu0
          %v3815 = vadd.f32 %v3795, %v3814
          %3816 = vdwg.mxu0
          %3817 = vmatpush.msra.mxu0 %v3695
          %3818 = vmatpush.msra.mxu0 %v3694
          %3819 = vmatpush.msra.mxu0 %v3693
          %3820 = vmatpush.msra.mxu0 %v3692
          %3821 = vmatpush.msra.mxu0 %v3691
          %3822 = vmatpush.msra.mxu0 %v3690
          %3823 = vmatpush.msra.mxu0 %v3689
          %3824 = vmatpush.msra.mxu0 %v3688
          %3825 = vmatpush.msra.mxu0 %v3687
          %3826 = vmatpush.msra.mxu0 %v3686
          %3827 = vmatpush.msra.mxu0 %v3685
          %3828 = vmatpush.msra.mxu0 %v3684
          %3829 = vmatpush.msra.mxu0 %v3683
          %3830 = vmatpush.msra.mxu0 %v3682
          %3831 = vmatpush.msra.mxu0 %v3681
          %3832 = vmatpush.msra.mxu0 %v3680
          %3833 = vmatmul.f32.gmra.mxu0 %v3642
          %v3834 = vpop.f32.mrf.mxu0
          %v3835 = vadd.f32 %v3815, %v3834
          %3836 = vdwg.mxu0
          %3837 = vmatpush.msra.mxu0 %v3711
          %3838 = vmatpush.msra.mxu0 %v3710
          %3839 = vmatpush.msra.mxu0 %v3709
          %3840 = vmatpush.msra.mxu0 %v3708
          %3841 = vmatpush.msra.mxu0 %v3707
          %3842 = vmatpush.msra.mxu0 %v3706
          %3843 = vmatpush.msra.mxu0 %v3705
          %3844 = vmatpush.msra.mxu0 %v3704
          %3845 = vmatpush.msra.mxu0 %v3703
          %3846 = vmatpush.msra.mxu0 %v3702
          %3847 = vmatpush.msra.mxu0 %v3701
          %3848 = vmatpush.msra.mxu0 %v3700
          %3849 = vmatpush.msra.mxu0 %v3699
          %3850 = vmatpush.msra.mxu0 %v3698
          %3851 = vmatpush.msra.mxu0 %v3697
          %3852 = vmatpush.msra.mxu0 %v3696
          %3853 = vmatmul.f32.gmra.mxu0 %v3643
          %v3854 = vpop.f32.mrf.mxu0
          %v3855 = vadd.f32 %v3835, %v3854
          %3856 = vdwg.mxu0
          %3857 = vmatpush.msra.mxu0 %v3727
          %3858 = vmatpush.msra.mxu0 %v3726
          %3859 = vmatpush.msra.mxu0 %v3725
          %3860 = vmatpush.msra.mxu0 %v3724
          %3861 = vmatpush.msra.mxu0 %v3723
          %3862 = vmatpush.msra.mxu0 %v3722
          %3863 = vmatpush.msra.mxu0 %v3721
          %3864 = vmatpush.msra.mxu0 %v3720
          %3865 = vmatpush.msra.mxu0 %v3719
          %3866 = vmatpush.msra.mxu0 %v3718
          %3867 = vmatpush.msra.mxu0 %v3717
          %3868 = vmatpush.msra.mxu0 %v3716
          %3869 = vmatpush.msra.mxu0 %v3715
          %3870 = vmatpush.msra.mxu0 %v3714
          %3871 = vmatpush.msra.mxu0 %v3713
          %3872 = vmatpush.msra.mxu0 %v3712
          %3873 = vmatmul.f32.gmra.mxu0 %v3644
          %v3874 = vpop.f32.mrf.mxu0
          %v3875 = vadd.f32 %v3855, %v3874
          %3876 = vdwg.mxu0
          %3877 = vmatpush.msra.mxu0 %v3743
          %3878 = vmatpush.msra.mxu0 %v3742
          %3879 = vmatpush.msra.mxu0 %v3741
          %3880 = vmatpush.msra.mxu0 %v3740
          %3881 = vmatpush.msra.mxu0 %v3739
          %3882 = vmatpush.msra.mxu0 %v3738
          %3883 = vmatpush.msra.mxu0 %v3737
          %3884 = vmatpush.msra.mxu0 %v3736
          %3885 = vmatpush.msra.mxu0 %v3735
          %3886 = vmatpush.msra.mxu0 %v3734
          %3887 = vmatpush.msra.mxu0 %v3733
          %3888 = vmatpush.msra.mxu0 %v3732
          %3889 = vmatpush.msra.mxu0 %v3731
          %3890 = vmatpush.msra.mxu0 %v3730
          %3891 = vmatpush.msra.mxu0 %v3729
          %3892 = vmatpush.msra.mxu0 %v3728
          %3893 = vmatmul.f32.gmra.mxu0 %v3645
          %v3894 = vpop.f32.mrf.mxu0
          %v3895 = vadd.f32 %v3875, %v3894
          %3896 = vdwg.mxu0
          %3897 = vmatpush.msra.mxu0 %v3759
          %3898 = vmatpush.msra.mxu0 %v3758
          %3899 = vmatpush.msra.mxu0 %v3757
          %3900 = vmatpush.msra.mxu0 %v3756
          %3901 = vmatpush.msra.mxu0 %v3755
          %3902 = vmatpush.msra.mxu0 %v3754
          %3903 = vmatpush.msra.mxu0 %v3753
          %3904 = vmatpush.msra.mxu0 %v3752
          %3905 = vmatpush.msra.mxu0 %v3751
          %3906 = vmatpush.msra.mxu0 %v3750
          %3907 = vmatpush.msra.mxu0 %v3749
          %3908 = vmatpush.msra.mxu0 %v3748
          %3909 = vmatpush.msra.mxu0 %v3747
          %3910 = vmatpush.msra.mxu0 %v3746
          %3911 = vmatpush.msra.mxu0 %v3745
          %3912 = vmatpush.msra.mxu0 %v3744
          %3913 = vmatmul.f32.gmra.mxu0 %v3646
          %v3914 = vpop.f32.mrf.mxu0
          %v3915 = vadd.f32 %v3895, %v3914
          %3916 = vdwg.mxu0
          %3917 = vmatpush.msra.mxu0 %v3775
          %3918 = vmatpush.msra.mxu0 %v3774
          %3919 = vmatpush.msra.mxu0 %v3773
          %3920 = vmatpush.msra.mxu0 %v3772
          %3921 = vmatpush.msra.mxu0 %v3771
          %3922 = vmatpush.msra.mxu0 %v3770
          %3923 = vmatpush.msra.mxu0 %v3769
          %3924 = vmatpush.msra.mxu0 %v3768
          %3925 = vmatpush.msra.mxu0 %v3767
          %3926 = vmatpush.msra.mxu0 %v3766
          %3927 = vmatpush.msra.mxu0 %v3765
          %3928 = vmatpush.msra.mxu0 %v3764
          %3929 = vmatpush.msra.mxu0 %v3763
          %3930 = vmatpush.msra.mxu0 %v3762
          %3931 = vmatpush.msra.mxu0 %v3761
          %3932 = vmatpush.msra.mxu0 %v3760
          %3933 = vmatmul.f32.gmra.mxu0 %v3647
          %v3934 = vpop.f32.mrf.mxu0
          %v3935 = vadd.f32 %v3915, %v3934
          %3936 = vdwg.mxu0
          %3937 = vst [vmem:[%s595] sm:$0x1] %v3935
        $region105: #{tpu_custom_call.1} parent=76 // pred_fallthru
          _
        %s3938 = sand.u32 %s154, 1
        %s3939 = scalar_lea.sflag [#allocation6], %s3938
        %s3940 = sand.u32 %s154, 1
        %s3941 = scalar_lea.vmem [#allocation12], %s3940
        // Predicated region
        $region106: #{tpu_custom_call.1} parent=76 // pred_check
          %p3942 = pneg %p164
        $region107: #{tpu_custom_call.1} parent=76 // pred_check_branch
          %3944 = sbr.rel (%p3942) target = $region109
        $region108: #{tpu_custom_call.1} parent=76 // pred_region
          %3946 = vsyncadd %s3939, 0
          %s3947 = scalar_lea.hbm %s5, %s26
          %s3949 = sshll.u32 %s3941, 4
          %s3950 = int_to_ptr.vmem [resolvable:$true] %s3949
          %s3951 = sshll.u32 %s3947, 4
          %s3952 = int_to_ptr.hbm [resolvable:$true] %s3951
          %3954 = dma.vmem_to_hbm [thread:$0]  %s3950, 16, %s3952, %s3939
        $region109: #{tpu_custom_call.1} parent=76 // pred_fallthru
          _
      $region77: #{tpu_custom_call.1} parent=5 // pred_fallthru
        _
      %p3955 = scmp.le.s32.totalorder 2, %s17
      // Predicated region
      $region110: #{tpu_custom_call.1} parent=5 // pred_check
        %p3956 = pneg %p3955
      $region111: #{tpu_custom_call.1} parent=5 // pred_check_branch
        %3958 = sbr.rel (%p3956) target = $region113
      $region112: #{tpu_custom_call.1} parent=5 // pred_region
        %s3959 = ssub.s32 %s17, 2
        // Predicated region
        $region114: #{tpu_custom_call.1} parent=112 // pred_check
          %p3960 = pneg %p170
        $region115: #{tpu_custom_call.1} parent=112 // pred_check_branch
          %3962 = sbr.rel (%p3960) target = $region117
        $region116: #{tpu_custom_call.1} parent=112 // pred_region
          %s3963 = sand.u32 %s155, 1
          %s3964 = scalar_lea.sflag [#allocation6], %s3963
          %s3965 = sand.u32 %s155, 1
          %s3966 = scalar_lea.vmem [#allocation12], %s3965
          %3968 = dma.done %s3964, 16
        $region117: #{tpu_custom_call.1} parent=112 // pred_fallthru
          _
      $region113: #{tpu_custom_call.1} parent=5 // pred_fallthru
        _
    $region6: #{tpu_custom_call.1} parent=1 // loop_footer
      %s21 = sadd.s32 1, %s17
    $region7: #{tpu_custom_call.1} parent=1 // loop_footer_branch
      %16 = sbr.rel target = $region3
    $region8: #{tpu_custom_call.1} parent=1 // loop_exit
      _
    %3969 = vsyncpa [#allocation5], 1
    %s3970 = scalar_lea.sflag [#allocation5], 1
    %3971 = vsyncpa %s3970, 1
    %3972 = vsyncpa [#allocation8], 1
    %3973 = vsyncpa [#allocation11], 1
    %3974 = vsyncpa [#allocation6], 1
    %s3975 = scalar_lea.sflag [#allocation6], 1
    %3976 = vsyncpa %s3975, 1

</llo_original>
